<compile_context>
chip_gen: v6e
topology: v6e:2x2x1
jax: 0.10.0
libtpu: 0.0.40
codegen_flags: <defaults>
</compile_context>

<pallas_src>
import functools
import math

import jax
import jax.numpy as jnp
from jax import lax
from jax.experimental import pallas as pl
from jax.experimental.pallas import tpu as pltpu  # noqa: F401  (kept for TPU-specific params if needed)


# ------------------------------ Pallas kernel ------------------------------- #

def _layernorm(x, g, b, eps=1e-5):
    mu = jnp.mean(x, axis=-1, keepdims=True)
    var = jnp.mean((x - mu) ** 2, axis=-1, keepdims=True)
    return (x - mu) * lax.rsqrt(var + eps) * g + b


def fused_forward_kernel(x_ref, ids_ref,
                         wq_ref, wk_ref, wv_ref, bq_ref, bk_ref, bv_ref,
                         wo_ref, bo_ref, cross_ref,
                         g1_ref, be1_ref, g2_ref, be2_ref,
                         w1_ref, bf1_ref, w2_ref, bf2_ref,
                         g3_ref, be3_ref,
                         wp_ref, bp_ref,
                         o_ref, *, batch, seq_len, n_heads, n_layers):
    BL, E = x_ref.shape
    dh = E // n_heads
    scale = 1.0 / math.sqrt(dh)
    NEG = jnp.float32(-1e30)

    x = x_ref[...]                                   # (B*L, E) activation, stays resident

    # ---- additive attention mask built in-kernel (no (B, L, L) HBM array) ----
    row = lax.broadcasted_iota(jnp.int32, (BL, BL), 0)
    col = lax.broadcasted_iota(jnp.int32, (BL, BL), 1)
    same = None                                      # block-diagonal "same sequence" mask
    for b in range(batch):                           # static unroll, batch is small
        lo = b * seq_len
        hi = lo + seq_len
        blk = (row >= lo) & (row < hi) & (col >= lo) & (col < hi)
        same = blk if same is None else (same | blk)
    not_pad = ids_ref[...] != 0                      # (1, B*L) key-padding from ids
    allowed = same & (col <= row) & not_pad
    mask = jnp.where(allowed, 0.0, NEG)              # (B*L, B*L) additive mask

    # ---- post-norm decoder layers, fully unrolled (weights stacked over layers) ----
    for layer in range(n_layers):
        # masked multi-head self-attention with per-head weight slabs
        attn = jnp.zeros((BL, E), jnp.float32)
        for h in range(n_heads):
            idx = layer * n_heads + h
            q = jnp.dot(x, wq_ref[idx], preferred_element_type=jnp.float32) + bq_ref[idx]
            k = jnp.dot(x, wk_ref[idx], preferred_element_type=jnp.float32) + bk_ref[idx]
            v = jnp.dot(x, wv_ref[idx], preferred_element_type=jnp.float32) + bv_ref[idx]
            # scores = q @ k^T via dot_general (contract last dims), no explicit transpose
            s = lax.dot_general(q, k, (((1,), (1,)), ((), ())),
                                preferred_element_type=jnp.float32) * scale + mask
            s = s - jnp.max(s, axis=-1, keepdims=True)
            p = jnp.exp(s)
            p = p * pl.reciprocal(jnp.sum(p, axis=-1, keepdims=True), approx=True)
            hv = jnp.dot(p, v, preferred_element_type=jnp.float32)          # (B*L, dh)
            attn = attn + jnp.dot(hv, wo_ref[idx], preferred_element_type=jnp.float32)
        attn = attn + bo_ref[layer]

        x = _layernorm(x + attn, g1_ref[layer], be1_ref[layer])
        # cross-attention over an all-zero memory == constant out_proj(v_bias)
        x = _layernorm(x + cross_ref[layer], g2_ref[layer], be2_ref[layer])
        # feed-forward (relu)
        ff = jnp.dot(x, w1_ref[layer], preferred_element_type=jnp.float32) + bf1_ref[layer]
        ff = jnp.maximum(ff, 0.0)
        ff = jnp.dot(ff, w2_ref[layer], preferred_element_type=jnp.float32) + bf2_ref[layer]
        x = _layernorm(x + ff, g3_ref[layer], be3_ref[layer])

    # ---- final projection onto the lane-dense (padded) item vocabulary ----
    o_ref[...] = (jnp.dot(x, wp_ref[...], preferred_element_type=jnp.float32)
                  + bp_ref[...])


# ------------------------------ JAX wrapper ---------------------------------- #

_WEIGHT_ORDER = ("wq", "wk", "wv", "bq", "bk", "bv", "wo", "bo", "cross",
                 "g1", "be1", "g2", "be2", "w1", "bf1", "w2", "bf2",
                 "g3", "be3", "wp", "bp")


def pack_params(params, *, n_heads):
    """Pre-transpose, split per head, stack over layers, pad the vocab projection.

    Runs once at trace time; removes all in-kernel transposes / lane slicing."""
    E = params["embed"].shape[1]
    dh = E // n_heads
    layers = params["layers"]

    def stack(key):
        return jnp.stack([p[key] for p in layers], axis=0)

    wq, wk, wv, bq, bk, bv, wo = [], [], [], [], [], [], []
    for p in layers:
        for h in range(n_heads):
            sl = slice(h * dh, (h + 1) * dh)
            wq.append(p["wq"].T[:, sl]); bq.append(p["bq"][:, sl])
            wk.append(p["wk"].T[:, sl]); bk.append(p["bk"][:, sl])
            wv.append(p["wv"].T[:, sl]); bv.append(p["bv"][:, sl])
            wo.append(p["wo"].T[sl, :])

    packed = dict(
        wq=jnp.stack(wq), wk=jnp.stack(wk), wv=jnp.stack(wv),      # (NL*H, E, dh)
        bq=jnp.stack(bq), bk=jnp.stack(bk), bv=jnp.stack(bv),      # (NL*H, 1, dh)
        wo=jnp.stack(wo),                                           # (NL*H, dh, E)
        bo=stack("bo"), cross=stack("cross"),                       # (NL, 1, E)
        g1=stack("g1"), be1=stack("be1"),
        g2=stack("g2"), be2=stack("be2"),
        w1=jnp.stack([p["w1"].T for p in layers]),                  # (NL, E, F)
        bf1=stack("bf1"),                                           # (NL, 1, F)
        w2=jnp.stack([p["w2"].T for p in layers]),                  # (NL, F, E)
        bf2=stack("bf2"),
        g3=stack("g3"), be3=stack("be3"),
    )

    n_item = params["proj_w"].shape[0]
    v_pad = ((n_item + 127) // 128) * 128                           # lane-dense output
    wp = jnp.zeros((E, v_pad), jnp.float32).at[:, :n_item].set(params["proj_w"].T)
    bp = jnp.zeros((1, v_pad), jnp.float32).at[:, :n_item].set(params["proj_b"])
    packed["wp"], packed["bp"] = wp, bp
    return packed, v_pad


def sample_net_forward(ids, params, *, n_heads):
    B, L = ids.shape
    E = params["embed"].shape[1]
    n_item = params["proj_w"].shape[0]
    n_layers = len(params["layers"])

    # glue: embedding lookup (padding row 0 is zero) * sqrt(E) + sinusoidal PE
    x = jnp.take(params["embed"], ids, axis=0) * math.sqrt(E)
    x = x + params["pe"][:L][None, :, :]
    # TODO(synk): F.dropout omitted (eval-mode / inference, no-op).

    packed, v_pad = pack_params(params, n_heads=n_heads)
    weights = [packed[k] for k in _WEIGHT_ORDER]

    x_flat = x.reshape(B * L, E).astype(jnp.float32)
    ids_flat = ids.reshape(1, B * L).astype(jnp.int32)

    kernel = functools.partial(fused_forward_kernel, batch=B, seq_len=L,
                               n_heads=n_heads, n_layers=n_layers)
    # Single fused, gridless call: every operand is a whole-array VMEM block.
    logits_pad = pl.pallas_call(
        kernel,
        out_shape=jax.ShapeDtypeStruct((B * L, v_pad), jnp.float32),
    )(x_flat, ids_flat, *weights)

    return logits_pad[:, :n_item].reshape(B, L, n_item)


# --------------------------- parameter construction -------------------------- #

def init_params(key, n_item, max_len, n_layers, emb_dim, ffn_dim):
    E, F = emb_dim, ffn_dim
    k_embed, k_proj, *k_layers = jax.random.split(key, 2 + n_layers)

    def nrm(k, shape, s=0.02):
        return (jax.random.normal(k, shape, jnp.float32) * s).astype(jnp.float32)

    embed = nrm(k_embed, (n_item + 1, E))
    embed = embed.at[0].set(0.0)                    # padding_idx = 0

    # standard sinusoidal positional encoding, (max_len, E)
    pos = jnp.arange(max_len, dtype=jnp.float32)[:, None]
    div = jnp.exp(jnp.arange(0, E, 2, dtype=jnp.float32) * (-math.log(10000.0) / E))
    pe = jnp.zeros((max_len, E), jnp.float32)
    pe = pe.at[:, 0::2].set(jnp.sin(pos * div))
    pe = pe.at[:, 1::2].set(jnp.cos(pos * div))

    layers = []
    for kl in k_layers:
        ks = jax.random.split(kl, 16)
        wq, wk, wv = nrm(ks[0], (E, E)), nrm(ks[1], (E, E)), nrm(ks[2], (E, E))
        bq, bk, bv = nrm(ks[3], (1, E)), nrm(ks[4], (1, E)), nrm(ks[5], (1, E))
        wo, bo = nrm(ks[6], (E, E)), nrm(ks[7], (1, E))
        # cross-attention over zero memory: only out_proj(value_bias) survives (exact)
        wo_c, bo_c, bv_c = nrm(ks[8], (E, E)), nrm(ks[9], (1, E)), nrm(ks[10], (1, E))
        cross = (bv_c @ wo_c.T + bo_c).astype(jnp.float32)          # (1, E)
        w1, bf1 = nrm(ks[11], (F, E)), nrm(ks[12], (1, F))
        w2, bf2 = nrm(ks[13], (E, F)), nrm(ks[14], (1, E))
        layers.append(dict(
            wq=wq, wk=wk, wv=wv, bq=bq, bk=bk, bv=bv, wo=wo, bo=bo, cross=cross,
            g1=jnp.ones((1, E), jnp.float32), be1=jnp.zeros((1, E), jnp.float32),
            g2=jnp.ones((1, E), jnp.float32), be2=jnp.zeros((1, E), jnp.float32),
            w1=w1, bf1=bf1, w2=w2, bf2=bf2,
            g3=jnp.ones((1, E), jnp.float32), be3=jnp.zeros((1, E), jnp.float32),
        ))

    kw, kb = jax.random.split(k_proj)
    proj_w = nrm(kw, (n_item, E))
    proj_b = nrm(kb, (1, n_item))
    return dict(embed=embed, pe=pe, layers=layers, proj_w=proj_w, proj_b=proj_b)


# ----------------------------------- main ------------------------------------ #

if __name__ == "__main__":
    # config: n_item=64, max_len=8, n_layers=2, n_heads=2, emb_dim=32, ffn_dim=64
    B, L = 2, 8
    n_item, n_layers, n_heads, emb_dim, ffn_dim = 64, 2, 2, 32, 64

    root = jax.random.PRNGKey(0)
    k_params, k_ids = jax.random.split(root)
    params = init_params(k_params, n_item, L, n_layers, emb_dim, ffn_dim)

    ids = jax.random.randint(k_ids, (B, L), 1, n_item + 1).astype(jnp.int32)
    ids = ids.at[0, L - 1].set(0)          # one PAD token exercises the key-padding mask

    fwd = jax.jit(functools.partial(sample_net_forward, n_heads=n_heads))
    out = jax.block_until_ready(fwd(ids, params))

    assert out.shape == (B, L, n_item)
    assert bool(jnp.all(jnp.isfinite(out)))
    print("KERNEL_OK")
</pallas_src>

<mosaic_0001>
module attributes {stable_mosaic.version = 11 : i64} {
  func.func @fused_forward_kernel(%arg0: memref<16x32xf32, #tpu.memory_space<vmem>>, %arg1: memref<1x16xi32, #tpu.memory_space<vmem>>, %arg2: memref<4x32x16xf32, #tpu.memory_space<vmem>>, %arg3: memref<4x32x16xf32, #tpu.memory_space<vmem>>, %arg4: memref<4x32x16xf32, #tpu.memory_space<vmem>>, %arg5: memref<4x1x16xf32, #tpu.memory_space<vmem>>, %arg6: memref<4x1x16xf32, #tpu.memory_space<vmem>>, %arg7: memref<4x1x16xf32, #tpu.memory_space<vmem>>, %arg8: memref<4x16x32xf32, #tpu.memory_space<vmem>>, %arg9: memref<2x1x32xf32, #tpu.memory_space<vmem>>, %arg10: memref<2x1x32xf32, #tpu.memory_space<vmem>>, %arg11: memref<2x1x32xf32, #tpu.memory_space<vmem>>, %arg12: memref<2x1x32xf32, #tpu.memory_space<vmem>>, %arg13: memref<2x1x32xf32, #tpu.memory_space<vmem>>, %arg14: memref<2x1x32xf32, #tpu.memory_space<vmem>>, %arg15: memref<2x32x64xf32, #tpu.memory_space<vmem>>, %arg16: memref<2x1x64xf32, #tpu.memory_space<vmem>>, %arg17: memref<2x64x32xf32, #tpu.memory_space<vmem>>, %arg18: memref<2x1x32xf32, #tpu.memory_space<vmem>>, %arg19: memref<2x1x32xf32, #tpu.memory_space<vmem>>, %arg20: memref<2x1x32xf32, #tpu.memory_space<vmem>>, %arg21: memref<32x128xf32, #tpu.memory_space<vmem>>, %arg22: memref<1x128xf32, #tpu.memory_space<vmem>>, %arg23: memref<16x128xf32, #tpu.memory_space<vmem>>) attributes {dimension_semantics = [], scalar_prefetch = 0 : i64, scratch_operands = 0 : i64, tpu.core_type = #tpu.core_type<tc>} {
    %c0 = arith.constant 0 : index
    %c0_0 = arith.constant 0 : index
    %0 = vector.load %arg0[%c0, %c0_0] : memref<16x32xf32, #tpu.memory_space<vmem>>, vector<16x32xf32>
    %1 = tpu.iota {dimensions = array<i32: 0>} : vector<16x16xi32>
    %2 = tpu.iota {dimensions = array<i32: 1>} : vector<16x16xi32>
    %c0_i32 = arith.constant 0 : i32
    %3 = vector.broadcast %c0_i32 : i32 to vector<16x16xi32>
    %4 = arith.cmpi sge, %1, %3 : vector<16x16xi32>
    %c8_i32 = arith.constant 8 : i32
    %5 = vector.broadcast %c8_i32 : i32 to vector<16x16xi32>
    %6 = arith.cmpi slt, %1, %5 : vector<16x16xi32>
    %7 = arith.andi %4, %6 : vector<16x16xi1>
    %c0_i32_1 = arith.constant 0 : i32
    %8 = vector.broadcast %c0_i32_1 : i32 to vector<16x16xi32>
    %9 = arith.cmpi sge, %2, %8 : vector<16x16xi32>
    %10 = arith.andi %7, %9 : vector<16x16xi1>
    %c8_i32_2 = arith.constant 8 : i32
    %11 = vector.broadcast %c8_i32_2 : i32 to vector<16x16xi32>
    %12 = arith.cmpi slt, %2, %11 : vector<16x16xi32>
    %13 = arith.andi %10, %12 : vector<16x16xi1>
    %c8_i32_3 = arith.constant 8 : i32
    %14 = vector.broadcast %c8_i32_3 : i32 to vector<16x16xi32>
    %15 = arith.cmpi sge, %1, %14 : vector<16x16xi32>
    %c16_i32 = arith.constant 16 : i32
    %16 = vector.broadcast %c16_i32 : i32 to vector<16x16xi32>
    %17 = arith.cmpi slt, %1, %16 : vector<16x16xi32>
    %18 = arith.andi %15, %17 : vector<16x16xi1>
    %c8_i32_4 = arith.constant 8 : i32
    %19 = vector.broadcast %c8_i32_4 : i32 to vector<16x16xi32>
    %20 = arith.cmpi sge, %2, %19 : vector<16x16xi32>
    %21 = arith.andi %18, %20 : vector<16x16xi1>
    %c16_i32_5 = arith.constant 16 : i32
    %22 = vector.broadcast %c16_i32_5 : i32 to vector<16x16xi32>
    %23 = arith.cmpi slt, %2, %22 : vector<16x16xi32>
    %24 = arith.andi %21, %23 : vector<16x16xi1>
    %25 = arith.ori %13, %24 : vector<16x16xi1>
    %c0_6 = arith.constant 0 : index
    %c0_7 = arith.constant 0 : index
    %26 = vector.load %arg1[%c0_6, %c0_7] : memref<1x16xi32, #tpu.memory_space<vmem>>, vector<1x16xi32>
    %c0_i32_8 = arith.constant 0 : i32
    %27 = vector.broadcast %c0_i32_8 : i32 to vector<1x16xi32>
    %28 = arith.cmpi ne, %26, %27 : vector<1x16xi32>
    %29 = arith.cmpi sle, %2, %1 : vector<16x16xi32>
    %30 = arith.andi %25, %29 : vector<16x16xi1>
    %31 = vector.broadcast %28 : vector<1x16xi1> to vector<16x16xi1>
    %32 = arith.andi %30, %31 : vector<16x16xi1>
    %cst = arith.constant 0.000000e+00 : f32
    %cst_9 = arith.constant -1.000000e+30 : f32
    %33 = vector.broadcast %cst : f32 to vector<16x16xf32>
    %34 = vector.broadcast %cst_9 : f32 to vector<16x16xf32>
    %35 = arith.select %32, %33, %34 : vector<16x16xi1>, vector<16x16xf32>
    %cst_10 = arith.constant 0.000000e+00 : f32
    %36 = vector.broadcast %cst_10 : f32 to vector<16x32xf32>
    %c0_11 = arith.constant 0 : index
    %c0_12 = arith.constant 0 : index
    %c0_13 = arith.constant 0 : index
    %37 = vector.load %arg2[%c0_11, %c0_12, %c0_13] : memref<4x32x16xf32, #tpu.memory_space<vmem>>, vector<1x32x16xf32>
    %38 = vector.shape_cast %37 : vector<1x32x16xf32> to vector<32x16xf32>
    %cst_14 = arith.constant dense<0.000000e+00> : vector<16x16xf32>
    %39 = tpu.matmul %0, %38, %cst_14 {dimension_numbers = #tpu.dot_dimension_numbers<[1], [0], [0], [1], [0, 0, 1, 1], [], []>} : vector<16x32xf32>, vector<32x16xf32>, vector<16x16xf32> -> vector<16x16xf32>
    %c0_15 = arith.constant 0 : index
    %c0_16 = arith.constant 0 : index
    %c0_17 = arith.constant 0 : index
    %40 = vector.load %arg5[%c0_15, %c0_16, %c0_17] : memref<4x1x16xf32, #tpu.memory_space<vmem>>, vector<1x1x16xf32>
    %41 = vector.shape_cast %40 : vector<1x1x16xf32> to vector<1x16xf32>
    %42 = vector.broadcast %41 : vector<1x16xf32> to vector<16x16xf32>
    %43 = arith.addf %39, %42 : vector<16x16xf32>
    %c0_18 = arith.constant 0 : index
    %c0_19 = arith.constant 0 : index
    %c0_20 = arith.constant 0 : index
    %44 = vector.load %arg3[%c0_18, %c0_19, %c0_20] : memref<4x32x16xf32, #tpu.memory_space<vmem>>, vector<1x32x16xf32>
    %45 = vector.shape_cast %44 : vector<1x32x16xf32> to vector<32x16xf32>
    %cst_21 = arith.constant dense<0.000000e+00> : vector<16x16xf32>
    %46 = tpu.matmul %0, %45, %cst_21 {dimension_numbers = #tpu.dot_dimension_numbers<[1], [0], [0], [1], [0, 0, 1, 1], [], []>} : vector<16x32xf32>, vector<32x16xf32>, vector<16x16xf32> -> vector<16x16xf32>
    %c0_22 = arith.constant 0 : index
    %c0_23 = arith.constant 0 : index
    %c0_24 = arith.constant 0 : index
    %47 = vector.load %arg6[%c0_22, %c0_23, %c0_24] : memref<4x1x16xf32, #tpu.memory_space<vmem>>, vector<1x1x16xf32>
    %48 = vector.shape_cast %47 : vector<1x1x16xf32> to vector<1x16xf32>
    %49 = vector.broadcast %48 : vector<1x16xf32> to vector<16x16xf32>
    %50 = arith.addf %46, %49 : vector<16x16xf32>
    %c0_25 = arith.constant 0 : index
    %c0_26 = arith.constant 0 : index
    %c0_27 = arith.constant 0 : index
    %51 = vector.load %arg4[%c0_25, %c0_26, %c0_27] : memref<4x32x16xf32, #tpu.memory_space<vmem>>, vector<1x32x16xf32>
    %52 = vector.shape_cast %51 : vector<1x32x16xf32> to vector<32x16xf32>
    %cst_28 = arith.constant dense<0.000000e+00> : vector<16x16xf32>
    %53 = tpu.matmul %0, %52, %cst_28 {dimension_numbers = #tpu.dot_dimension_numbers<[1], [0], [0], [1], [0, 0, 1, 1], [], []>} : vector<16x32xf32>, vector<32x16xf32>, vector<16x16xf32> -> vector<16x16xf32>
    %c0_29 = arith.constant 0 : index
    %c0_30 = arith.constant 0 : index
    %c0_31 = arith.constant 0 : index
    %54 = vector.load %arg7[%c0_29, %c0_30, %c0_31] : memref<4x1x16xf32, #tpu.memory_space<vmem>>, vector<1x1x16xf32>
    %55 = vector.shape_cast %54 : vector<1x1x16xf32> to vector<1x16xf32>
    %56 = vector.broadcast %55 : vector<1x16xf32> to vector<16x16xf32>
    %57 = arith.addf %53, %56 : vector<16x16xf32>
    %cst_32 = arith.constant dense<0.000000e+00> : vector<16x16xf32>
    %58 = tpu.matmul %43, %50, %cst_32 {dimension_numbers = #tpu.dot_dimension_numbers<[1], [1], [0], [0], [0, 0, 1, 0], [], []>} : vector<16x16xf32>, vector<16x16xf32>, vector<16x16xf32> -> vector<16x16xf32>
    %cst_33 = arith.constant 2.500000e-01 : f32
    %59 = vector.broadcast %cst_33 : f32 to vector<16x16xf32>
    %60 = arith.mulf %58, %59 : vector<16x16xf32>
    %61 = arith.addf %60, %35 : vector<16x16xf32>
    %cst_34 = arith.constant dense<0xFF800000> : vector<16xf32>
    %62 = vector.multi_reduction <maximumf>, %61, %cst_34 [1] : vector<16x16xf32> to vector<16xf32>
    %63 = vector.shape_cast %62 : vector<16xf32> to vector<16x1xf32>
    %64 = vector.broadcast %63 : vector<16x1xf32> to vector<16x16xf32>
    %65 = arith.subf %61, %64 : vector<16x16xf32>
    %66 = math.exp %65 : vector<16x16xf32>
    %cst_35 = arith.constant dense<0.000000e+00> : vector<16xf32>
    %67 = vector.multi_reduction <add>, %66, %cst_35 [1] : vector<16x16xf32> to vector<16xf32>
    %68 = vector.shape_cast %67 : vector<16xf32> to vector<16x1xf32>
    %69 = tpu.reciprocal %68 {approx = true} : vector<16x1xf32> -> vector<16x1xf32>
    %70 = vector.broadcast %69 : vector<16x1xf32> to vector<16x16xf32>
    %71 = arith.mulf %66, %70 : vector<16x16xf32>
    %cst_36 = arith.constant dense<0.000000e+00> : vector<16x16xf32>
    %72 = tpu.matmul %71, %57, %cst_36 {dimension_numbers = #tpu.dot_dimension_numbers<[1], [0], [0], [1], [0, 0, 1, 1], [], []>} : vector<16x16xf32>, vector<16x16xf32>, vector<16x16xf32> -> vector<16x16xf32>
    %c0_37 = arith.constant 0 : index
    %c0_38 = arith.constant 0 : index
    %c0_39 = arith.constant 0 : index
    %73 = vector.load %arg8[%c0_37, %c0_38, %c0_39] : memref<4x16x32xf32, #tpu.memory_space<vmem>>, vector<1x16x32xf32>
    %74 = vector.shape_cast %73 : vector<1x16x32xf32> to vector<16x32xf32>
    %cst_40 = arith.constant dense<0.000000e+00> : vector<16x32xf32>
    %75 = tpu.matmul %72, %74, %cst_40 {dimension_numbers = #tpu.dot_dimension_numbers<[1], [0], [0], [1], [0, 0, 1, 1], [], []>} : vector<16x16xf32>, vector<16x32xf32>, vector<16x32xf32> -> vector<16x32xf32>
    %76 = arith.addf %36, %75 : vector<16x32xf32>
    %c1 = arith.constant 1 : index
    %c0_41 = arith.constant 0 : index
    %c0_42 = arith.constant 0 : index
    %77 = vector.load %arg2[%c1, %c0_41, %c0_42] : memref<4x32x16xf32, #tpu.memory_space<vmem>>, vector<1x32x16xf32>
    %78 = vector.shape_cast %77 : vector<1x32x16xf32> to vector<32x16xf32>
    %cst_43 = arith.constant dense<0.000000e+00> : vector<16x16xf32>
    %79 = tpu.matmul %0, %78, %cst_43 {dimension_numbers = #tpu.dot_dimension_numbers<[1], [0], [0], [1], [0, 0, 1, 1], [], []>} : vector<16x32xf32>, vector<32x16xf32>, vector<16x16xf32> -> vector<16x16xf32>
    %c1_44 = arith.constant 1 : index
    %c0_45 = arith.constant 0 : index
    %c0_46 = arith.constant 0 : index
    %80 = vector.load %arg5[%c1_44, %c0_45, %c0_46] : memref<4x1x16xf32, #tpu.memory_space<vmem>>, vector<1x1x16xf32>
    %81 = vector.shape_cast %80 : vector<1x1x16xf32> to vector<1x16xf32>
    %82 = vector.broadcast %81 : vector<1x16xf32> to vector<16x16xf32>
    %83 = arith.addf %79, %82 : vector<16x16xf32>
    %c1_47 = arith.constant 1 : index
    %c0_48 = arith.constant 0 : index
    %c0_49 = arith.constant 0 : index
    %84 = vector.load %arg3[%c1_47, %c0_48, %c0_49] : memref<4x32x16xf32, #tpu.memory_space<vmem>>, vector<1x32x16xf32>
    %85 = vector.shape_cast %84 : vector<1x32x16xf32> to vector<32x16xf32>
    %cst_50 = arith.constant dense<0.000000e+00> : vector<16x16xf32>
    %86 = tpu.matmul %0, %85, %cst_50 {dimension_numbers = #tpu.dot_dimension_numbers<[1], [0], [0], [1], [0, 0, 1, 1], [], []>} : vector<16x32xf32>, vector<32x16xf32>, vector<16x16xf32> -> vector<16x16xf32>
    %c1_51 = arith.constant 1 : index
    %c0_52 = arith.constant 0 : index
    %c0_53 = arith.constant 0 : index
    %87 = vector.load %arg6[%c1_51, %c0_52, %c0_53] : memref<4x1x16xf32, #tpu.memory_space<vmem>>, vector<1x1x16xf32>
    %88 = vector.shape_cast %87 : vector<1x1x16xf32> to vector<1x16xf32>
    %89 = vector.broadcast %88 : vector<1x16xf32> to vector<16x16xf32>
    %90 = arith.addf %86, %89 : vector<16x16xf32>
    %c1_54 = arith.constant 1 : index
    %c0_55 = arith.constant 0 : index
    %c0_56 = arith.constant 0 : index
    %91 = vector.load %arg4[%c1_54, %c0_55, %c0_56] : memref<4x32x16xf32, #tpu.memory_space<vmem>>, vector<1x32x16xf32>
    %92 = vector.shape_cast %91 : vector<1x32x16xf32> to vector<32x16xf32>
    %cst_57 = arith.constant dense<0.000000e+00> : vector<16x16xf32>
    %93 = tpu.matmul %0, %92, %cst_57 {dimension_numbers = #tpu.dot_dimension_numbers<[1], [0], [0], [1], [0, 0, 1, 1], [], []>} : vector<16x32xf32>, vector<32x16xf32>, vector<16x16xf32> -> vector<16x16xf32>
    %c1_58 = arith.constant 1 : index
    %c0_59 = arith.constant 0 : index
    %c0_60 = arith.constant 0 : index
    %94 = vector.load %arg7[%c1_58, %c0_59, %c0_60] : memref<4x1x16xf32, #tpu.memory_space<vmem>>, vector<1x1x16xf32>
    %95 = vector.shape_cast %94 : vector<1x1x16xf32> to vector<1x16xf32>
    %96 = vector.broadcast %95 : vector<1x16xf32> to vector<16x16xf32>
    %97 = arith.addf %93, %96 : vector<16x16xf32>
    %cst_61 = arith.constant dense<0.000000e+00> : vector<16x16xf32>
    %98 = tpu.matmul %83, %90, %cst_61 {dimension_numbers = #tpu.dot_dimension_numbers<[1], [1], [0], [0], [0, 0, 1, 0], [], []>} : vector<16x16xf32>, vector<16x16xf32>, vector<16x16xf32> -> vector<16x16xf32>
    %cst_62 = arith.constant 2.500000e-01 : f32
    %99 = vector.broadcast %cst_62 : f32 to vector<16x16xf32>
    %100 = arith.mulf %98, %99 : vector<16x16xf32>
    %101 = arith.addf %100, %35 : vector<16x16xf32>
    %cst_63 = arith.constant dense<0xFF800000> : vector<16xf32>
    %102 = vector.multi_reduction <maximumf>, %101, %cst_63 [1] : vector<16x16xf32> to vector<16xf32>
    %103 = vector.shape_cast %102 : vector<16xf32> to vector<16x1xf32>
    %104 = vector.broadcast %103 : vector<16x1xf32> to vector<16x16xf32>
    %105 = arith.subf %101, %104 : vector<16x16xf32>
    %106 = math.exp %105 : vector<16x16xf32>
    %cst_64 = arith.constant dense<0.000000e+00> : vector<16xf32>
    %107 = vector.multi_reduction <add>, %106, %cst_64 [1] : vector<16x16xf32> to vector<16xf32>
    %108 = vector.shape_cast %107 : vector<16xf32> to vector<16x1xf32>
    %109 = tpu.reciprocal %108 {approx = true} : vector<16x1xf32> -> vector<16x1xf32>
    %110 = vector.broadcast %109 : vector<16x1xf32> to vector<16x16xf32>
    %111 = arith.mulf %106, %110 : vector<16x16xf32>
    %cst_65 = arith.constant dense<0.000000e+00> : vector<16x16xf32>
    %112 = tpu.matmul %111, %97, %cst_65 {dimension_numbers = #tpu.dot_dimension_numbers<[1], [0], [0], [1], [0, 0, 1, 1], [], []>} : vector<16x16xf32>, vector<16x16xf32>, vector<16x16xf32> -> vector<16x16xf32>
    %c1_66 = arith.constant 1 : index
    %c0_67 = arith.constant 0 : index
    %c0_68 = arith.constant 0 : index
    %113 = vector.load %arg8[%c1_66, %c0_67, %c0_68] : memref<4x16x32xf32, #tpu.memory_space<vmem>>, vector<1x16x32xf32>
    %114 = vector.shape_cast %113 : vector<1x16x32xf32> to vector<16x32xf32>
    %cst_69 = arith.constant dense<0.000000e+00> : vector<16x32xf32>
    %115 = tpu.matmul %112, %114, %cst_69 {dimension_numbers = #tpu.dot_dimension_numbers<[1], [0], [0], [1], [0, 0, 1, 1], [], []>} : vector<16x16xf32>, vector<16x32xf32>, vector<16x32xf32> -> vector<16x32xf32>
    %116 = arith.addf %76, %115 : vector<16x32xf32>
    %c0_70 = arith.constant 0 : index
    %c0_71 = arith.constant 0 : index
    %c0_72 = arith.constant 0 : index
    %117 = vector.load %arg9[%c0_70, %c0_71, %c0_72] : memref<2x1x32xf32, #tpu.memory_space<vmem>>, vector<1x1x32xf32>
    %118 = vector.shape_cast %117 : vector<1x1x32xf32> to vector<1x32xf32>
    %119 = vector.broadcast %118 : vector<1x32xf32> to vector<16x32xf32>
    %120 = arith.addf %116, %119 : vector<16x32xf32>
    %121 = arith.addf %0, %120 : vector<16x32xf32>
    %c0_73 = arith.constant 0 : index
    %c0_74 = arith.constant 0 : index
    %c0_75 = arith.constant 0 : index
    %122 = vector.load %arg11[%c0_73, %c0_74, %c0_75] : memref<2x1x32xf32, #tpu.memory_space<vmem>>, vector<1x1x32xf32>
    %123 = vector.shape_cast %122 : vector<1x1x32xf32> to vector<1x32xf32>
    %c0_76 = arith.constant 0 : index
    %c0_77 = arith.constant 0 : index
    %c0_78 = arith.constant 0 : index
    %124 = vector.load %arg12[%c0_76, %c0_77, %c0_78] : memref<2x1x32xf32, #tpu.memory_space<vmem>>, vector<1x1x32xf32>
    %125 = vector.shape_cast %124 : vector<1x1x32xf32> to vector<1x32xf32>
    %cst_79 = arith.constant dense<0.000000e+00> : vector<16xf32>
    %126 = vector.multi_reduction <add>, %121, %cst_79 [1] : vector<16x32xf32> to vector<16xf32>
    %127 = vector.shape_cast %126 : vector<16xf32> to vector<16x1xf32>
    %cst_80 = arith.constant 3.200000e+01 : f32
    %128 = vector.broadcast %cst_80 : f32 to vector<16x1xf32>
    %129 = arith.divf %127, %128 : vector<16x1xf32>
    %130 = vector.broadcast %129 : vector<16x1xf32> to vector<16x32xf32>
    %131 = arith.subf %121, %130 : vector<16x32xf32>
    %132 = arith.mulf %131, %131 : vector<16x32xf32>
    %cst_81 = arith.constant dense<0.000000e+00> : vector<16xf32>
    %133 = vector.multi_reduction <add>, %132, %cst_81 [1] : vector<16x32xf32> to vector<16xf32>
    %134 = vector.shape_cast %133 : vector<16xf32> to vector<16x1xf32>
    %cst_82 = arith.constant 3.200000e+01 : f32
    %135 = vector.broadcast %cst_82 : f32 to vector<16x1xf32>
    %136 = arith.divf %134, %135 : vector<16x1xf32>
    %137 = vector.broadcast %129 : vector<16x1xf32> to vector<16x32xf32>
    %138 = arith.subf %121, %137 : vector<16x32xf32>
    %cst_83 = arith.constant 9.99999974E-6 : f32
    %139 = vector.broadcast %cst_83 : f32 to vector<16x1xf32>
    %140 = arith.addf %136, %139 : vector<16x1xf32>
    %141 = math.rsqrt %140 : vector<16x1xf32>
    %142 = vector.broadcast %141 : vector<16x1xf32> to vector<16x32xf32>
    %143 = arith.mulf %138, %142 : vector<16x32xf32>
    %144 = vector.broadcast %123 : vector<1x32xf32> to vector<16x32xf32>
    %145 = arith.mulf %143, %144 : vector<16x32xf32>
    %146 = vector.broadcast %125 : vector<1x32xf32> to vector<16x32xf32>
    %147 = arith.addf %145, %146 : vector<16x32xf32>
    %c0_84 = arith.constant 0 : index
    %c0_85 = arith.constant 0 : index
    %c0_86 = arith.constant 0 : index
    %148 = vector.load %arg10[%c0_84, %c0_85, %c0_86] : memref<2x1x32xf32, #tpu.memory_space<vmem>>, vector<1x1x32xf32>
    %149 = vector.shape_cast %148 : vector<1x1x32xf32> to vector<1x32xf32>
    %150 = vector.broadcast %149 : vector<1x32xf32> to vector<16x32xf32>
    %151 = arith.addf %147, %150 : vector<16x32xf32>
    %c0_87 = arith.constant 0 : index
    %c0_88 = arith.constant 0 : index
    %c0_89 = arith.constant 0 : index
    %152 = vector.load %arg13[%c0_87, %c0_88, %c0_89] : memref<2x1x32xf32, #tpu.memory_space<vmem>>, vector<1x1x32xf32>
    %153 = vector.shape_cast %152 : vector<1x1x32xf32> to vector<1x32xf32>
    %c0_90 = arith.constant 0 : index
    %c0_91 = arith.constant 0 : index
    %c0_92 = arith.constant 0 : index
    %154 = vector.load %arg14[%c0_90, %c0_91, %c0_92] : memref<2x1x32xf32, #tpu.memory_space<vmem>>, vector<1x1x32xf32>
    %155 = vector.shape_cast %154 : vector<1x1x32xf32> to vector<1x32xf32>
    %cst_93 = arith.constant dense<0.000000e+00> : vector<16xf32>
    %156 = vector.multi_reduction <add>, %151, %cst_93 [1] : vector<16x32xf32> to vector<16xf32>
    %157 = vector.shape_cast %156 : vector<16xf32> to vector<16x1xf32>
    %cst_94 = arith.constant 3.200000e+01 : f32
    %158 = vector.broadcast %cst_94 : f32 to vector<16x1xf32>
    %159 = arith.divf %157, %158 : vector<16x1xf32>
    %160 = vector.broadcast %159 : vector<16x1xf32> to vector<16x32xf32>
    %161 = arith.subf %151, %160 : vector<16x32xf32>
    %162 = arith.mulf %161, %161 : vector<16x32xf32>
    %cst_95 = arith.constant dense<0.000000e+00> : vector<16xf32>
    %163 = vector.multi_reduction <add>, %162, %cst_95 [1] : vector<16x32xf32> to vector<16xf32>
    %164 = vector.shape_cast %163 : vector<16xf32> to vector<16x1xf32>
    %cst_96 = arith.constant 3.200000e+01 : f32
    %165 = vector.broadcast %cst_96 : f32 to vector<16x1xf32>
    %166 = arith.divf %164, %165 : vector<16x1xf32>
    %167 = vector.broadcast %159 : vector<16x1xf32> to vector<16x32xf32>
    %168 = arith.subf %151, %167 : vector<16x32xf32>
    %cst_97 = arith.constant 9.99999974E-6 : f32
    %169 = vector.broadcast %cst_97 : f32 to vector<16x1xf32>
    %170 = arith.addf %166, %169 : vector<16x1xf32>
    %171 = math.rsqrt %170 : vector<16x1xf32>
    %172 = vector.broadcast %171 : vector<16x1xf32> to vector<16x32xf32>
    %173 = arith.mulf %168, %172 : vector<16x32xf32>
    %174 = vector.broadcast %153 : vector<1x32xf32> to vector<16x32xf32>
    %175 = arith.mulf %173, %174 : vector<16x32xf32>
    %176 = vector.broadcast %155 : vector<1x32xf32> to vector<16x32xf32>
    %177 = arith.addf %175, %176 : vector<16x32xf32>
    %c0_98 = arith.constant 0 : index
    %c0_99 = arith.constant 0 : index
    %c0_100 = arith.constant 0 : index
    %178 = vector.load %arg15[%c0_98, %c0_99, %c0_100] : memref<2x32x64xf32, #tpu.memory_space<vmem>>, vector<1x32x64xf32>
    %179 = vector.shape_cast %178 : vector<1x32x64xf32> to vector<32x64xf32>
    %cst_101 = arith.constant dense<0.000000e+00> : vector<16x64xf32>
    %180 = tpu.matmul %177, %179, %cst_101 {dimension_numbers = #tpu.dot_dimension_numbers<[1], [0], [0], [1], [0, 0, 1, 1], [], []>} : vector<16x32xf32>, vector<32x64xf32>, vector<16x64xf32> -> vector<16x64xf32>
    %c0_102 = arith.constant 0 : index
    %c0_103 = arith.constant 0 : index
    %c0_104 = arith.constant 0 : index
    %181 = vector.load %arg16[%c0_102, %c0_103, %c0_104] : memref<2x1x64xf32, #tpu.memory_space<vmem>>, vector<1x1x64xf32>
    %182 = vector.shape_cast %181 : vector<1x1x64xf32> to vector<1x64xf32>
    %183 = vector.broadcast %182 : vector<1x64xf32> to vector<16x64xf32>
    %184 = arith.addf %180, %183 : vector<16x64xf32>
    %cst_105 = arith.constant 0.000000e+00 : f32
    %185 = vector.broadcast %cst_105 : f32 to vector<16x64xf32>
    %186 = arith.maximumf %184, %185 : vector<16x64xf32>
    %c0_106 = arith.constant 0 : index
    %c0_107 = arith.constant 0 : index
    %c0_108 = arith.constant 0 : index
    %187 = vector.load %arg17[%c0_106, %c0_107, %c0_108] : memref<2x64x32xf32, #tpu.memory_space<vmem>>, vector<1x64x32xf32>
    %188 = vector.shape_cast %187 : vector<1x64x32xf32> to vector<64x32xf32>
    %cst_109 = arith.constant dense<0.000000e+00> : vector<16x32xf32>
    %189 = tpu.matmul %186, %188, %cst_109 {dimension_numbers = #tpu.dot_dimension_numbers<[1], [0], [0], [1], [0, 0, 1, 1], [], []>} : vector<16x64xf32>, vector<64x32xf32>, vector<16x32xf32> -> vector<16x32xf32>
    %c0_110 = arith.constant 0 : index
    %c0_111 = arith.constant 0 : index
    %c0_112 = arith.constant 0 : index
    %190 = vector.load %arg18[%c0_110, %c0_111, %c0_112] : memref<2x1x32xf32, #tpu.memory_space<vmem>>, vector<1x1x32xf32>
    %191 = vector.shape_cast %190 : vector<1x1x32xf32> to vector<1x32xf32>
    %192 = vector.broadcast %191 : vector<1x32xf32> to vector<16x32xf32>
    %193 = arith.addf %189, %192 : vector<16x32xf32>
    %194 = arith.addf %177, %193 : vector<16x32xf32>
    %c0_113 = arith.constant 0 : index
    %c0_114 = arith.constant 0 : index
    %c0_115 = arith.constant 0 : index
    %195 = vector.load %arg19[%c0_113, %c0_114, %c0_115] : memref<2x1x32xf32, #tpu.memory_space<vmem>>, vector<1x1x32xf32>
    %196 = vector.shape_cast %195 : vector<1x1x32xf32> to vector<1x32xf32>
    %c0_116 = arith.constant 0 : index
    %c0_117 = arith.constant 0 : index
    %c0_118 = arith.constant 0 : index
    %197 = vector.load %arg20[%c0_116, %c0_117, %c0_118] : memref<2x1x32xf32, #tpu.memory_space<vmem>>, vector<1x1x32xf32>
    %198 = vector.shape_cast %197 : vector<1x1x32xf32> to vector<1x32xf32>
    %cst_119 = arith.constant dense<0.000000e+00> : vector<16xf32>
    %199 = vector.multi_reduction <add>, %194, %cst_119 [1] : vector<16x32xf32> to vector<16xf32>
    %200 = vector.shape_cast %199 : vector<16xf32> to vector<16x1xf32>
    %cst_120 = arith.constant 3.200000e+01 : f32
    %201 = vector.broadcast %cst_120 : f32 to vector<16x1xf32>
    %202 = arith.divf %200, %201 : vector<16x1xf32>
    %203 = vector.broadcast %202 : vector<16x1xf32> to vector<16x32xf32>
    %204 = arith.subf %194, %203 : vector<16x32xf32>
    %205 = arith.mulf %204, %204 : vector<16x32xf32>
    %cst_121 = arith.constant dense<0.000000e+00> : vector<16xf32>
    %206 = vector.multi_reduction <add>, %205, %cst_121 [1] : vector<16x32xf32> to vector<16xf32>
    %207 = vector.shape_cast %206 : vector<16xf32> to vector<16x1xf32>
    %cst_122 = arith.constant 3.200000e+01 : f32
    %208 = vector.broadcast %cst_122 : f32 to vector<16x1xf32>
    %209 = arith.divf %207, %208 : vector<16x1xf32>
    %210 = vector.broadcast %202 : vector<16x1xf32> to vector<16x32xf32>
    %211 = arith.subf %194, %210 : vector<16x32xf32>
    %cst_123 = arith.constant 9.99999974E-6 : f32
    %212 = vector.broadcast %cst_123 : f32 to vector<16x1xf32>
    %213 = arith.addf %209, %212 : vector<16x1xf32>
    %214 = math.rsqrt %213 : vector<16x1xf32>
    %215 = vector.broadcast %214 : vector<16x1xf32> to vector<16x32xf32>
    %216 = arith.mulf %211, %215 : vector<16x32xf32>
    %217 = vector.broadcast %196 : vector<1x32xf32> to vector<16x32xf32>
    %218 = arith.mulf %216, %217 : vector<16x32xf32>
    %219 = vector.broadcast %198 : vector<1x32xf32> to vector<16x32xf32>
    %220 = arith.addf %218, %219 : vector<16x32xf32>
    %cst_124 = arith.constant 0.000000e+00 : f32
    %221 = vector.broadcast %cst_124 : f32 to vector<16x32xf32>
    %c2 = arith.constant 2 : index
    %c0_125 = arith.constant 0 : index
    %c0_126 = arith.constant 0 : index
    %222 = vector.load %arg2[%c2, %c0_125, %c0_126] : memref<4x32x16xf32, #tpu.memory_space<vmem>>, vector<1x32x16xf32>
    %223 = vector.shape_cast %222 : vector<1x32x16xf32> to vector<32x16xf32>
    %cst_127 = arith.constant dense<0.000000e+00> : vector<16x16xf32>
    %224 = tpu.matmul %220, %223, %cst_127 {dimension_numbers = #tpu.dot_dimension_numbers<[1], [0], [0], [1], [0, 0, 1, 1], [], []>} : vector<16x32xf32>, vector<32x16xf32>, vector<16x16xf32> -> vector<16x16xf32>
    %c2_128 = arith.constant 2 : index
    %c0_129 = arith.constant 0 : index
    %c0_130 = arith.constant 0 : index
    %225 = vector.load %arg5[%c2_128, %c0_129, %c0_130] : memref<4x1x16xf32, #tpu.memory_space<vmem>>, vector<1x1x16xf32>
    %226 = vector.shape_cast %225 : vector<1x1x16xf32> to vector<1x16xf32>
    %227 = vector.broadcast %226 : vector<1x16xf32> to vector<16x16xf32>
    %228 = arith.addf %224, %227 : vector<16x16xf32>
    %c2_131 = arith.constant 2 : index
    %c0_132 = arith.constant 0 : index
    %c0_133 = arith.constant 0 : index
    %229 = vector.load %arg3[%c2_131, %c0_132, %c0_133] : memref<4x32x16xf32, #tpu.memory_space<vmem>>, vector<1x32x16xf32>
    %230 = vector.shape_cast %229 : vector<1x32x16xf32> to vector<32x16xf32>
    %cst_134 = arith.constant dense<0.000000e+00> : vector<16x16xf32>
    %231 = tpu.matmul %220, %230, %cst_134 {dimension_numbers = #tpu.dot_dimension_numbers<[1], [0], [0], [1], [0, 0, 1, 1], [], []>} : vector<16x32xf32>, vector<32x16xf32>, vector<16x16xf32> -> vector<16x16xf32>
    %c2_135 = arith.constant 2 : index
    %c0_136 = arith.constant 0 : index
    %c0_137 = arith.constant 0 : index
    %232 = vector.load %arg6[%c2_135, %c0_136, %c0_137] : memref<4x1x16xf32, #tpu.memory_space<vmem>>, vector<1x1x16xf32>
    %233 = vector.shape_cast %232 : vector<1x1x16xf32> to vector<1x16xf32>
    %234 = vector.broadcast %233 : vector<1x16xf32> to vector<16x16xf32>
    %235 = arith.addf %231, %234 : vector<16x16xf32>
    %c2_138 = arith.constant 2 : index
    %c0_139 = arith.constant 0 : index
    %c0_140 = arith.constant 0 : index
    %236 = vector.load %arg4[%c2_138, %c0_139, %c0_140] : memref<4x32x16xf32, #tpu.memory_space<vmem>>, vector<1x32x16xf32>
    %237 = vector.shape_cast %236 : vector<1x32x16xf32> to vector<32x16xf32>
    %cst_141 = arith.constant dense<0.000000e+00> : vector<16x16xf32>
    %238 = tpu.matmul %220, %237, %cst_141 {dimension_numbers = #tpu.dot_dimension_numbers<[1], [0], [0], [1], [0, 0, 1, 1], [], []>} : vector<16x32xf32>, vector<32x16xf32>, vector<16x16xf32> -> vector<16x16xf32>
    %c2_142 = arith.constant 2 : index
    %c0_143 = arith.constant 0 : index
    %c0_144 = arith.constant 0 : index
    %239 = vector.load %arg7[%c2_142, %c0_143, %c0_144] : memref<4x1x16xf32, #tpu.memory_space<vmem>>, vector<1x1x16xf32>
    %240 = vector.shape_cast %239 : vector<1x1x16xf32> to vector<1x16xf32>
    %241 = vector.broadcast %240 : vector<1x16xf32> to vector<16x16xf32>
    %242 = arith.addf %238, %241 : vector<16x16xf32>
    %cst_145 = arith.constant dense<0.000000e+00> : vector<16x16xf32>
    %243 = tpu.matmul %228, %235, %cst_145 {dimension_numbers = #tpu.dot_dimension_numbers<[1], [1], [0], [0], [0, 0, 1, 0], [], []>} : vector<16x16xf32>, vector<16x16xf32>, vector<16x16xf32> -> vector<16x16xf32>
    %cst_146 = arith.constant 2.500000e-01 : f32
    %244 = vector.broadcast %cst_146 : f32 to vector<16x16xf32>
    %245 = arith.mulf %243, %244 : vector<16x16xf32>
    %246 = arith.addf %245, %35 : vector<16x16xf32>
    %cst_147 = arith.constant dense<0xFF800000> : vector<16xf32>
    %247 = vector.multi_reduction <maximumf>, %246, %cst_147 [1] : vector<16x16xf32> to vector<16xf32>
    %248 = vector.shape_cast %247 : vector<16xf32> to vector<16x1xf32>
    %249 = vector.broadcast %248 : vector<16x1xf32> to vector<16x16xf32>
    %250 = arith.subf %246, %249 : vector<16x16xf32>
    %251 = math.exp %250 : vector<16x16xf32>
    %cst_148 = arith.constant dense<0.000000e+00> : vector<16xf32>
    %252 = vector.multi_reduction <add>, %251, %cst_148 [1] : vector<16x16xf32> to vector<16xf32>
    %253 = vector.shape_cast %252 : vector<16xf32> to vector<16x1xf32>
    %254 = tpu.reciprocal %253 {approx = true} : vector<16x1xf32> -> vector<16x1xf32>
    %255 = vector.broadcast %254 : vector<16x1xf32> to vector<16x16xf32>
    %256 = arith.mulf %251, %255 : vector<16x16xf32>
    %cst_149 = arith.constant dense<0.000000e+00> : vector<16x16xf32>
    %257 = tpu.matmul %256, %242, %cst_149 {dimension_numbers = #tpu.dot_dimension_numbers<[1], [0], [0], [1], [0, 0, 1, 1], [], []>} : vector<16x16xf32>, vector<16x16xf32>, vector<16x16xf32> -> vector<16x16xf32>
    %c2_150 = arith.constant 2 : index
    %c0_151 = arith.constant 0 : index
    %c0_152 = arith.constant 0 : index
    %258 = vector.load %arg8[%c2_150, %c0_151, %c0_152] : memref<4x16x32xf32, #tpu.memory_space<vmem>>, vector<1x16x32xf32>
    %259 = vector.shape_cast %258 : vector<1x16x32xf32> to vector<16x32xf32>
    %cst_153 = arith.constant dense<0.000000e+00> : vector<16x32xf32>
    %260 = tpu.matmul %257, %259, %cst_153 {dimension_numbers = #tpu.dot_dimension_numbers<[1], [0], [0], [1], [0, 0, 1, 1], [], []>} : vector<16x16xf32>, vector<16x32xf32>, vector<16x32xf32> -> vector<16x32xf32>
    %261 = arith.addf %221, %260 : vector<16x32xf32>
    %c3 = arith.constant 3 : index
    %c0_154 = arith.constant 0 : index
    %c0_155 = arith.constant 0 : index
    %262 = vector.load %arg2[%c3, %c0_154, %c0_155] : memref<4x32x16xf32, #tpu.memory_space<vmem>>, vector<1x32x16xf32>
    %263 = vector.shape_cast %262 : vector<1x32x16xf32> to vector<32x16xf32>
    %cst_156 = arith.constant dense<0.000000e+00> : vector<16x16xf32>
    %264 = tpu.matmul %220, %263, %cst_156 {dimension_numbers = #tpu.dot_dimension_numbers<[1], [0], [0], [1], [0, 0, 1, 1], [], []>} : vector<16x32xf32>, vector<32x16xf32>, vector<16x16xf32> -> vector<16x16xf32>
    %c3_157 = arith.constant 3 : index
    %c0_158 = arith.constant 0 : index
    %c0_159 = arith.constant 0 : index
    %265 = vector.load %arg5[%c3_157, %c0_158, %c0_159] : memref<4x1x16xf32, #tpu.memory_space<vmem>>, vector<1x1x16xf32>
    %266 = vector.shape_cast %265 : vector<1x1x16xf32> to vector<1x16xf32>
    %267 = vector.broadcast %266 : vector<1x16xf32> to vector<16x16xf32>
    %268 = arith.addf %264, %267 : vector<16x16xf32>
    %c3_160 = arith.constant 3 : index
    %c0_161 = arith.constant 0 : index
    %c0_162 = arith.constant 0 : index
    %269 = vector.load %arg3[%c3_160, %c0_161, %c0_162] : memref<4x32x16xf32, #tpu.memory_space<vmem>>, vector<1x32x16xf32>
    %270 = vector.shape_cast %269 : vector<1x32x16xf32> to vector<32x16xf32>
    %cst_163 = arith.constant dense<0.000000e+00> : vector<16x16xf32>
    %271 = tpu.matmul %220, %270, %cst_163 {dimension_numbers = #tpu.dot_dimension_numbers<[1], [0], [0], [1], [0, 0, 1, 1], [], []>} : vector<16x32xf32>, vector<32x16xf32>, vector<16x16xf32> -> vector<16x16xf32>
    %c3_164 = arith.constant 3 : index
    %c0_165 = arith.constant 0 : index
    %c0_166 = arith.constant 0 : index
    %272 = vector.load %arg6[%c3_164, %c0_165, %c0_166] : memref<4x1x16xf32, #tpu.memory_space<vmem>>, vector<1x1x16xf32>
    %273 = vector.shape_cast %272 : vector<1x1x16xf32> to vector<1x16xf32>
    %274 = vector.broadcast %273 : vector<1x16xf32> to vector<16x16xf32>
    %275 = arith.addf %271, %274 : vector<16x16xf32>
    %c3_167 = arith.constant 3 : index
    %c0_168 = arith.constant 0 : index
    %c0_169 = arith.constant 0 : index
    %276 = vector.load %arg4[%c3_167, %c0_168, %c0_169] : memref<4x32x16xf32, #tpu.memory_space<vmem>>, vector<1x32x16xf32>
    %277 = vector.shape_cast %276 : vector<1x32x16xf32> to vector<32x16xf32>
    %cst_170 = arith.constant dense<0.000000e+00> : vector<16x16xf32>
    %278 = tpu.matmul %220, %277, %cst_170 {dimension_numbers = #tpu.dot_dimension_numbers<[1], [0], [0], [1], [0, 0, 1, 1], [], []>} : vector<16x32xf32>, vector<32x16xf32>, vector<16x16xf32> -> vector<16x16xf32>
    %c3_171 = arith.constant 3 : index
    %c0_172 = arith.constant 0 : index
    %c0_173 = arith.constant 0 : index
    %279 = vector.load %arg7[%c3_171, %c0_172, %c0_173] : memref<4x1x16xf32, #tpu.memory_space<vmem>>, vector<1x1x16xf32>
    %280 = vector.shape_cast %279 : vector<1x1x16xf32> to vector<1x16xf32>
    %281 = vector.broadcast %280 : vector<1x16xf32> to vector<16x16xf32>
    %282 = arith.addf %278, %281 : vector<16x16xf32>
    %cst_174 = arith.constant dense<0.000000e+00> : vector<16x16xf32>
    %283 = tpu.matmul %268, %275, %cst_174 {dimension_numbers = #tpu.dot_dimension_numbers<[1], [1], [0], [0], [0, 0, 1, 0], [], []>} : vector<16x16xf32>, vector<16x16xf32>, vector<16x16xf32> -> vector<16x16xf32>
    %cst_175 = arith.constant 2.500000e-01 : f32
    %284 = vector.broadcast %cst_175 : f32 to vector<16x16xf32>
    %285 = arith.mulf %283, %284 : vector<16x16xf32>
    %286 = arith.addf %285, %35 : vector<16x16xf32>
    %cst_176 = arith.constant dense<0xFF800000> : vector<16xf32>
    %287 = vector.multi_reduction <maximumf>, %286, %cst_176 [1] : vector<16x16xf32> to vector<16xf32>
    %288 = vector.shape_cast %287 : vector<16xf32> to vector<16x1xf32>
    %289 = vector.broadcast %288 : vector<16x1xf32> to vector<16x16xf32>
    %290 = arith.subf %286, %289 : vector<16x16xf32>
    %291 = math.exp %290 : vector<16x16xf32>
    %cst_177 = arith.constant dense<0.000000e+00> : vector<16xf32>
    %292 = vector.multi_reduction <add>, %291, %cst_177 [1] : vector<16x16xf32> to vector<16xf32>
    %293 = vector.shape_cast %292 : vector<16xf32> to vector<16x1xf32>
    %294 = tpu.reciprocal %293 {approx = true} : vector<16x1xf32> -> vector<16x1xf32>
    %295 = vector.broadcast %294 : vector<16x1xf32> to vector<16x16xf32>
    %296 = arith.mulf %291, %295 : vector<16x16xf32>
    %cst_178 = arith.constant dense<0.000000e+00> : vector<16x16xf32>
    %297 = tpu.matmul %296, %282, %cst_178 {dimension_numbers = #tpu.dot_dimension_numbers<[1], [0], [0], [1], [0, 0, 1, 1], [], []>} : vector<16x16xf32>, vector<16x16xf32>, vector<16x16xf32> -> vector<16x16xf32>
    %c3_179 = arith.constant 3 : index
    %c0_180 = arith.constant 0 : index
    %c0_181 = arith.constant 0 : index
    %298 = vector.load %arg8[%c3_179, %c0_180, %c0_181] : memref<4x16x32xf32, #tpu.memory_space<vmem>>, vector<1x16x32xf32>
    %299 = vector.shape_cast %298 : vector<1x16x32xf32> to vector<16x32xf32>
    %cst_182 = arith.constant dense<0.000000e+00> : vector<16x32xf32>
    %300 = tpu.matmul %297, %299, %cst_182 {dimension_numbers = #tpu.dot_dimension_numbers<[1], [0], [0], [1], [0, 0, 1, 1], [], []>} : vector<16x16xf32>, vector<16x32xf32>, vector<16x32xf32> -> vector<16x32xf32>
    %301 = arith.addf %261, %300 : vector<16x32xf32>
    %c1_183 = arith.constant 1 : index
    %c0_184 = arith.constant 0 : index
    %c0_185 = arith.constant 0 : index
    %302 = vector.load %arg9[%c1_183, %c0_184, %c0_185] : memref<2x1x32xf32, #tpu.memory_space<vmem>>, vector<1x1x32xf32>
    %303 = vector.shape_cast %302 : vector<1x1x32xf32> to vector<1x32xf32>
    %304 = vector.broadcast %303 : vector<1x32xf32> to vector<16x32xf32>
    %305 = arith.addf %301, %304 : vector<16x32xf32>
    %306 = arith.addf %220, %305 : vector<16x32xf32>
    %c1_186 = arith.constant 1 : index
    %c0_187 = arith.constant 0 : index
    %c0_188 = arith.constant 0 : index
    %307 = vector.load %arg11[%c1_186, %c0_187, %c0_188] : memref<2x1x32xf32, #tpu.memory_space<vmem>>, vector<1x1x32xf32>
    %308 = vector.shape_cast %307 : vector<1x1x32xf32> to vector<1x32xf32>
    %c1_189 = arith.constant 1 : index
    %c0_190 = arith.constant 0 : index
    %c0_191 = arith.constant 0 : index
    %309 = vector.load %arg12[%c1_189, %c0_190, %c0_191] : memref<2x1x32xf32, #tpu.memory_space<vmem>>, vector<1x1x32xf32>
    %310 = vector.shape_cast %309 : vector<1x1x32xf32> to vector<1x32xf32>
    %cst_192 = arith.constant dense<0.000000e+00> : vector<16xf32>
    %311 = vector.multi_reduction <add>, %306, %cst_192 [1] : vector<16x32xf32> to vector<16xf32>
    %312 = vector.shape_cast %311 : vector<16xf32> to vector<16x1xf32>
    %cst_193 = arith.constant 3.200000e+01 : f32
    %313 = vector.broadcast %cst_193 : f32 to vector<16x1xf32>
    %314 = arith.divf %312, %313 : vector<16x1xf32>
    %315 = vector.broadcast %314 : vector<16x1xf32> to vector<16x32xf32>
    %316 = arith.subf %306, %315 : vector<16x32xf32>
    %317 = arith.mulf %316, %316 : vector<16x32xf32>
    %cst_194 = arith.constant dense<0.000000e+00> : vector<16xf32>
    %318 = vector.multi_reduction <add>, %317, %cst_194 [1] : vector<16x32xf32> to vector<16xf32>
    %319 = vector.shape_cast %318 : vector<16xf32> to vector<16x1xf32>
    %cst_195 = arith.constant 3.200000e+01 : f32
    %320 = vector.broadcast %cst_195 : f32 to vector<16x1xf32>
    %321 = arith.divf %319, %320 : vector<16x1xf32>
    %322 = vector.broadcast %314 : vector<16x1xf32> to vector<16x32xf32>
    %323 = arith.subf %306, %322 : vector<16x32xf32>
    %cst_196 = arith.constant 9.99999974E-6 : f32
    %324 = vector.broadcast %cst_196 : f32 to vector<16x1xf32>
    %325 = arith.addf %321, %324 : vector<16x1xf32>
    %326 = math.rsqrt %325 : vector<16x1xf32>
    %327 = vector.broadcast %326 : vector<16x1xf32> to vector<16x32xf32>
    %328 = arith.mulf %323, %327 : vector<16x32xf32>
    %329 = vector.broadcast %308 : vector<1x32xf32> to vector<16x32xf32>
    %330 = arith.mulf %328, %329 : vector<16x32xf32>
    %331 = vector.broadcast %310 : vector<1x32xf32> to vector<16x32xf32>
    %332 = arith.addf %330, %331 : vector<16x32xf32>
    %c1_197 = arith.constant 1 : index
    %c0_198 = arith.constant 0 : index
    %c0_199 = arith.constant 0 : index
    %333 = vector.load %arg10[%c1_197, %c0_198, %c0_199] : memref<2x1x32xf32, #tpu.memory_space<vmem>>, vector<1x1x32xf32>
    %334 = vector.shape_cast %333 : vector<1x1x32xf32> to vector<1x32xf32>
    %335 = vector.broadcast %334 : vector<1x32xf32> to vector<16x32xf32>
    %336 = arith.addf %332, %335 : vector<16x32xf32>
    %c1_200 = arith.constant 1 : index
    %c0_201 = arith.constant 0 : index
    %c0_202 = arith.constant 0 : index
    %337 = vector.load %arg13[%c1_200, %c0_201, %c0_202] : memref<2x1x32xf32, #tpu.memory_space<vmem>>, vector<1x1x32xf32>
    %338 = vector.shape_cast %337 : vector<1x1x32xf32> to vector<1x32xf32>
    %c1_203 = arith.constant 1 : index
    %c0_204 = arith.constant 0 : index
    %c0_205 = arith.constant 0 : index
    %339 = vector.load %arg14[%c1_203, %c0_204, %c0_205] : memref<2x1x32xf32, #tpu.memory_space<vmem>>, vector<1x1x32xf32>
    %340 = vector.shape_cast %339 : vector<1x1x32xf32> to vector<1x32xf32>
    %cst_206 = arith.constant dense<0.000000e+00> : vector<16xf32>
    %341 = vector.multi_reduction <add>, %336, %cst_206 [1] : vector<16x32xf32> to vector<16xf32>
    %342 = vector.shape_cast %341 : vector<16xf32> to vector<16x1xf32>
    %cst_207 = arith.constant 3.200000e+01 : f32
    %343 = vector.broadcast %cst_207 : f32 to vector<16x1xf32>
    %344 = arith.divf %342, %343 : vector<16x1xf32>
    %345 = vector.broadcast %344 : vector<16x1xf32> to vector<16x32xf32>
    %346 = arith.subf %336, %345 : vector<16x32xf32>
    %347 = arith.mulf %346, %346 : vector<16x32xf32>
    %cst_208 = arith.constant dense<0.000000e+00> : vector<16xf32>
    %348 = vector.multi_reduction <add>, %347, %cst_208 [1] : vector<16x32xf32> to vector<16xf32>
    %349 = vector.shape_cast %348 : vector<16xf32> to vector<16x1xf32>
    %cst_209 = arith.constant 3.200000e+01 : f32
    %350 = vector.broadcast %cst_209 : f32 to vector<16x1xf32>
    %351 = arith.divf %349, %350 : vector<16x1xf32>
    %352 = vector.broadcast %344 : vector<16x1xf32> to vector<16x32xf32>
    %353 = arith.subf %336, %352 : vector<16x32xf32>
    %cst_210 = arith.constant 9.99999974E-6 : f32
    %354 = vector.broadcast %cst_210 : f32 to vector<16x1xf32>
    %355 = arith.addf %351, %354 : vector<16x1xf32>
    %356 = math.rsqrt %355 : vector<16x1xf32>
    %357 = vector.broadcast %356 : vector<16x1xf32> to vector<16x32xf32>
    %358 = arith.mulf %353, %357 : vector<16x32xf32>
    %359 = vector.broadcast %338 : vector<1x32xf32> to vector<16x32xf32>
    %360 = arith.mulf %358, %359 : vector<16x32xf32>
    %361 = vector.broadcast %340 : vector<1x32xf32> to vector<16x32xf32>
    %362 = arith.addf %360, %361 : vector<16x32xf32>
    %c1_211 = arith.constant 1 : index
    %c0_212 = arith.constant 0 : index
    %c0_213 = arith.constant 0 : index
    %363 = vector.load %arg15[%c1_211, %c0_212, %c0_213] : memref<2x32x64xf32, #tpu.memory_space<vmem>>, vector<1x32x64xf32>
    %364 = vector.shape_cast %363 : vector<1x32x64xf32> to vector<32x64xf32>
    %cst_214 = arith.constant dense<0.000000e+00> : vector<16x64xf32>
    %365 = tpu.matmul %362, %364, %cst_214 {dimension_numbers = #tpu.dot_dimension_numbers<[1], [0], [0], [1], [0, 0, 1, 1], [], []>} : vector<16x32xf32>, vector<32x64xf32>, vector<16x64xf32> -> vector<16x64xf32>
    %c1_215 = arith.constant 1 : index
    %c0_216 = arith.constant 0 : index
    %c0_217 = arith.constant 0 : index
    %366 = vector.load %arg16[%c1_215, %c0_216, %c0_217] : memref<2x1x64xf32, #tpu.memory_space<vmem>>, vector<1x1x64xf32>
    %367 = vector.shape_cast %366 : vector<1x1x64xf32> to vector<1x64xf32>
    %368 = vector.broadcast %367 : vector<1x64xf32> to vector<16x64xf32>
    %369 = arith.addf %365, %368 : vector<16x64xf32>
    %cst_218 = arith.constant 0.000000e+00 : f32
    %370 = vector.broadcast %cst_218 : f32 to vector<16x64xf32>
    %371 = arith.maximumf %369, %370 : vector<16x64xf32>
    %c1_219 = arith.constant 1 : index
    %c0_220 = arith.constant 0 : index
    %c0_221 = arith.constant 0 : index
    %372 = vector.load %arg17[%c1_219, %c0_220, %c0_221] : memref<2x64x32xf32, #tpu.memory_space<vmem>>, vector<1x64x32xf32>
    %373 = vector.shape_cast %372 : vector<1x64x32xf32> to vector<64x32xf32>
    %cst_222 = arith.constant dense<0.000000e+00> : vector<16x32xf32>
    %374 = tpu.matmul %371, %373, %cst_222 {dimension_numbers = #tpu.dot_dimension_numbers<[1], [0], [0], [1], [0, 0, 1, 1], [], []>} : vector<16x64xf32>, vector<64x32xf32>, vector<16x32xf32> -> vector<16x32xf32>
    %c1_223 = arith.constant 1 : index
    %c0_224 = arith.constant 0 : index
    %c0_225 = arith.constant 0 : index
    %375 = vector.load %arg18[%c1_223, %c0_224, %c0_225] : memref<2x1x32xf32, #tpu.memory_space<vmem>>, vector<1x1x32xf32>
    %376 = vector.shape_cast %375 : vector<1x1x32xf32> to vector<1x32xf32>
    %377 = vector.broadcast %376 : vector<1x32xf32> to vector<16x32xf32>
    %378 = arith.addf %374, %377 : vector<16x32xf32>
    %379 = arith.addf %362, %378 : vector<16x32xf32>
    %c1_226 = arith.constant 1 : index
    %c0_227 = arith.constant 0 : index
    %c0_228 = arith.constant 0 : index
    %380 = vector.load %arg19[%c1_226, %c0_227, %c0_228] : memref<2x1x32xf32, #tpu.memory_space<vmem>>, vector<1x1x32xf32>
    %381 = vector.shape_cast %380 : vector<1x1x32xf32> to vector<1x32xf32>
    %c1_229 = arith.constant 1 : index
    %c0_230 = arith.constant 0 : index
    %c0_231 = arith.constant 0 : index
    %382 = vector.load %arg20[%c1_229, %c0_230, %c0_231] : memref<2x1x32xf32, #tpu.memory_space<vmem>>, vector<1x1x32xf32>
    %383 = vector.shape_cast %382 : vector<1x1x32xf32> to vector<1x32xf32>
    %cst_232 = arith.constant dense<0.000000e+00> : vector<16xf32>
    %384 = vector.multi_reduction <add>, %379, %cst_232 [1] : vector<16x32xf32> to vector<16xf32>
    %385 = vector.shape_cast %384 : vector<16xf32> to vector<16x1xf32>
    %cst_233 = arith.constant 3.200000e+01 : f32
    %386 = vector.broadcast %cst_233 : f32 to vector<16x1xf32>
    %387 = arith.divf %385, %386 : vector<16x1xf32>
    %388 = vector.broadcast %387 : vector<16x1xf32> to vector<16x32xf32>
    %389 = arith.subf %379, %388 : vector<16x32xf32>
    %390 = arith.mulf %389, %389 : vector<16x32xf32>
    %cst_234 = arith.constant dense<0.000000e+00> : vector<16xf32>
    %391 = vector.multi_reduction <add>, %390, %cst_234 [1] : vector<16x32xf32> to vector<16xf32>
    %392 = vector.shape_cast %391 : vector<16xf32> to vector<16x1xf32>
    %cst_235 = arith.constant 3.200000e+01 : f32
    %393 = vector.broadcast %cst_235 : f32 to vector<16x1xf32>
    %394 = arith.divf %392, %393 : vector<16x1xf32>
    %395 = vector.broadcast %387 : vector<16x1xf32> to vector<16x32xf32>
    %396 = arith.subf %379, %395 : vector<16x32xf32>
    %cst_236 = arith.constant 9.99999974E-6 : f32
    %397 = vector.broadcast %cst_236 : f32 to vector<16x1xf32>
    %398 = arith.addf %394, %397 : vector<16x1xf32>
    %399 = math.rsqrt %398 : vector<16x1xf32>
    %400 = vector.broadcast %399 : vector<16x1xf32> to vector<16x32xf32>
    %401 = arith.mulf %396, %400 : vector<16x32xf32>
    %402 = vector.broadcast %381 : vector<1x32xf32> to vector<16x32xf32>
    %403 = arith.mulf %401, %402 : vector<16x32xf32>
    %404 = vector.broadcast %383 : vector<1x32xf32> to vector<16x32xf32>
    %405 = arith.addf %403, %404 : vector<16x32xf32>
    %c0_237 = arith.constant 0 : index
    %c0_238 = arith.constant 0 : index
    %406 = vector.load %arg21[%c0_237, %c0_238] : memref<32x128xf32, #tpu.memory_space<vmem>>, vector<32x128xf32>
    %cst_239 = arith.constant dense<0.000000e+00> : vector<16x128xf32>
    %407 = tpu.matmul %405, %406, %cst_239 {dimension_numbers = #tpu.dot_dimension_numbers<[1], [0], [0], [1], [0, 0, 1, 1], [], []>} : vector<16x32xf32>, vector<32x128xf32>, vector<16x128xf32> -> vector<16x128xf32>
    %c0_240 = arith.constant 0 : index
    %c0_241 = arith.constant 0 : index
    %408 = vector.load %arg22[%c0_240, %c0_241] : memref<1x128xf32, #tpu.memory_space<vmem>>, vector<1x128xf32>
    %409 = vector.broadcast %408 : vector<1x128xf32> to vector<16x128xf32>
    %410 = arith.addf %407, %409 : vector<16x128xf32>
    %c0_242 = arith.constant 0 : index
    %c0_243 = arith.constant 0 : index
    %411 = vector.load %arg23[%c0_242, %c0_243] : memref<16x128xf32, #tpu.memory_space<vmem>>, vector<16x128xf32>
    tpu.vector_store %arg23[%c0_242, %c0_243], %410 {strides = array<i32>} : memref<16x128xf32, #tpu.memory_space<vmem>>, vector<16x128xf32>,
    return
  }
}

</mosaic_0001>

<llo_original>
// kernel: sample_net_forward.1
$region0: #{sample_net_forward.1}
  #allocation0 [shape = 'u32[]', space=smem, size = 0x4, offset = 0x4, fixed_abs, tag = 'smem constant byte address 0x4 - core index']
  #allocation1 [shape = 'u32[144,128]{1,0:T(1,128)}', space=vmem, size = 0x12000, scoped, tag = 'internal scratch']
  %s0 = inlined_call_operand.vmem [shape: f32[16,32], index: 0, kind: input, shape index: {}]
  %s1 = inlined_call_operand.vmem [shape: s32[1,16], index: 1, kind: input, shape index: {}]
  %s2 = inlined_call_operand.vmem [shape: f32[4,32,16], index: 2, kind: input, shape index: {}]
  %s3 = inlined_call_operand.vmem [shape: f32[4,32,16], index: 3, kind: input, shape index: {}]
  %s4 = inlined_call_operand.vmem [shape: f32[4,32,16], index: 4, kind: input, shape index: {}]
  %s5 = inlined_call_operand.vmem [shape: f32[4,1,16], index: 5, kind: input, shape index: {}]
  %s6 = inlined_call_operand.vmem [shape: f32[4,1,16], index: 6, kind: input, shape index: {}]
  %s7 = inlined_call_operand.vmem [shape: f32[4,1,16], index: 7, kind: input, shape index: {}]
  %s8 = inlined_call_operand.vmem [shape: f32[4,16,32], index: 8, kind: input, shape index: {}]
  %s9 = inlined_call_operand.vmem [shape: f32[2,1,32], index: 9, kind: input, shape index: {}]
  %s10 = inlined_call_operand.vmem [shape: f32[2,1,32], index: 10, kind: input, shape index: {}]
  %s11 = inlined_call_operand.vmem [shape: f32[2,1,32], index: 11, kind: input, shape index: {}]
  %s12 = inlined_call_operand.vmem [shape: f32[2,1,32], index: 12, kind: input, shape index: {}]
  %s13 = inlined_call_operand.vmem [shape: f32[2,1,32], index: 13, kind: input, shape index: {}]
  %s14 = inlined_call_operand.vmem [shape: f32[2,1,32], index: 14, kind: input, shape index: {}]
  %s15 = inlined_call_operand.vmem [shape: f32[2,32,64], index: 15, kind: input, shape index: {}]
  %s16 = inlined_call_operand.vmem [shape: f32[2,1,64], index: 16, kind: input, shape index: {}]
  %s17 = inlined_call_operand.vmem [shape: f32[2,64,32], index: 17, kind: input, shape index: {}]
  %s18 = inlined_call_operand.vmem [shape: f32[2,1,32], index: 18, kind: input, shape index: {}]
  %s19 = inlined_call_operand.vmem [shape: f32[2,1,32], index: 19, kind: input, shape index: {}]
  %s20 = inlined_call_operand.vmem [shape: f32[2,1,32], index: 20, kind: input, shape index: {}]
  %s21 = inlined_call_operand.vmem [shape: f32[32,128], index: 21, kind: input, shape index: {}]
  %s22 = inlined_call_operand.vmem [shape: f32[1,128], index: 22, kind: input, shape index: {}]
  %s23 = inlined_call_operand.vmem [shape: f32[16,128], index: 23, kind: output, shape index: {}]
  %s24 = sld [smem:[#allocation0]]
  $region102: #{sample_net_forward.1} parent=0
    _
  %s26 = ssub.s32 1, %s24
  %s27 = scalar_select 0, %s26, %s24
  // Predicated region
  $region2: #{sample_net_forward.1} parent=0 // pred_check
    _
  $region3: #{sample_net_forward.1} parent=0 // pred_check_branch
    %29 = sbr.rel (0) target = $region5
  $region4: #{sample_net_forward.1} parent=0 // pred_region
    _
  $region5: #{sample_net_forward.1} parent=0 // pred_fallthru
    _
  // Predicated region
  $region6: #{sample_net_forward.1} parent=0 // pred_check
    _
  $region7: #{sample_net_forward.1} parent=0 // pred_check_branch
    %31 = sbr.rel (0) target = $region9
  $region8: #{sample_net_forward.1} parent=0 // pred_region
    _
  $region9: #{sample_net_forward.1} parent=0 // pred_fallthru
    _
  // Predicated region
  $region10: #{sample_net_forward.1} parent=0 // pred_check
    _
  $region11: #{sample_net_forward.1} parent=0 // pred_check_branch
    %33 = sbr.rel (0) target = $region13
  $region12: #{sample_net_forward.1} parent=0 // pred_region
    _
  $region13: #{sample_net_forward.1} parent=0 // pred_fallthru
    _
  // Predicated region
  $region14: #{sample_net_forward.1} parent=0 // pred_check
    _
  $region15: #{sample_net_forward.1} parent=0 // pred_check_branch
    %35 = sbr.rel (0) target = $region17
  $region16: #{sample_net_forward.1} parent=0 // pred_region
    _
  $region17: #{sample_net_forward.1} parent=0 // pred_fallthru
    _
  // Predicated region
  $region18: #{sample_net_forward.1} parent=0 // pred_check
    _
  $region19: #{sample_net_forward.1} parent=0 // pred_check_branch
    %37 = sbr.rel (0) target = $region21
  $region20: #{sample_net_forward.1} parent=0 // pred_region
    _
  $region21: #{sample_net_forward.1} parent=0 // pred_fallthru
    _
  // Predicated region
  $region22: #{sample_net_forward.1} parent=0 // pred_check
    _
  $region23: #{sample_net_forward.1} parent=0 // pred_check_branch
    %39 = sbr.rel (0) target = $region25
  $region24: #{sample_net_forward.1} parent=0 // pred_region
    _
  $region25: #{sample_net_forward.1} parent=0 // pred_fallthru
    _
  // Predicated region
  $region26: #{sample_net_forward.1} parent=0 // pred_check
    _
  $region27: #{sample_net_forward.1} parent=0 // pred_check_branch
    %41 = sbr.rel (0) target = $region29
  $region28: #{sample_net_forward.1} parent=0 // pred_region
    _
  $region29: #{sample_net_forward.1} parent=0 // pred_fallthru
    _
  // Predicated region
  $region30: #{sample_net_forward.1} parent=0 // pred_check
    _
  $region31: #{sample_net_forward.1} parent=0 // pred_check_branch
    %43 = sbr.rel (0) target = $region33
  $region32: #{sample_net_forward.1} parent=0 // pred_region
    _
  $region33: #{sample_net_forward.1} parent=0 // pred_fallthru
    _
  // Predicated region
  $region34: #{sample_net_forward.1} parent=0 // pred_check
    _
  $region35: #{sample_net_forward.1} parent=0 // pred_check_branch
    %45 = sbr.rel (0) target = $region37
  $region36: #{sample_net_forward.1} parent=0 // pred_region
    _
  $region37: #{sample_net_forward.1} parent=0 // pred_fallthru
    _
  // Predicated region
  $region38: #{sample_net_forward.1} parent=0 // pred_check
    _
  $region39: #{sample_net_forward.1} parent=0 // pred_check_branch
    %47 = sbr.rel (0) target = $region41
  $region40: #{sample_net_forward.1} parent=0 // pred_region
    _
  $region41: #{sample_net_forward.1} parent=0 // pred_fallthru
    _
  // Predicated region
  $region42: #{sample_net_forward.1} parent=0 // pred_check
    _
  $region43: #{sample_net_forward.1} parent=0 // pred_check_branch
    %49 = sbr.rel (0) target = $region45
  $region44: #{sample_net_forward.1} parent=0 // pred_region
    _
  $region45: #{sample_net_forward.1} parent=0 // pred_fallthru
    _
  // Predicated region
  $region46: #{sample_net_forward.1} parent=0 // pred_check
    _
  $region47: #{sample_net_forward.1} parent=0 // pred_check_branch
    %51 = sbr.rel (0) target = $region49
  $region48: #{sample_net_forward.1} parent=0 // pred_region
    _
  $region49: #{sample_net_forward.1} parent=0 // pred_fallthru
    _
  // Predicated region
  $region50: #{sample_net_forward.1} parent=0 // pred_check
    _
  $region51: #{sample_net_forward.1} parent=0 // pred_check_branch
    %53 = sbr.rel (0) target = $region53
  $region52: #{sample_net_forward.1} parent=0 // pred_region
    _
  $region53: #{sample_net_forward.1} parent=0 // pred_fallthru
    _
  // Predicated region
  $region54: #{sample_net_forward.1} parent=0 // pred_check
    _
  $region55: #{sample_net_forward.1} parent=0 // pred_check_branch
    %55 = sbr.rel (0) target = $region57
  $region56: #{sample_net_forward.1} parent=0 // pred_region
    _
  $region57: #{sample_net_forward.1} parent=0 // pred_fallthru
    _
  // Predicated region
  $region58: #{sample_net_forward.1} parent=0 // pred_check
    _
  $region59: #{sample_net_forward.1} parent=0 // pred_check_branch
    %57 = sbr.rel (0) target = $region61
  $region60: #{sample_net_forward.1} parent=0 // pred_region
    _
  $region61: #{sample_net_forward.1} parent=0 // pred_fallthru
    _
  // Predicated region
  $region62: #{sample_net_forward.1} parent=0 // pred_check
    _
  $region63: #{sample_net_forward.1} parent=0 // pred_check_branch
    %59 = sbr.rel (0) target = $region65
  $region64: #{sample_net_forward.1} parent=0 // pred_region
    _
  $region65: #{sample_net_forward.1} parent=0 // pred_fallthru
    _
  // Predicated region
  $region66: #{sample_net_forward.1} parent=0 // pred_check
    _
  $region67: #{sample_net_forward.1} parent=0 // pred_check_branch
    %61 = sbr.rel (0) target = $region69
  $region68: #{sample_net_forward.1} parent=0 // pred_region
    _
  $region69: #{sample_net_forward.1} parent=0 // pred_fallthru
    _
  // Predicated region
  $region70: #{sample_net_forward.1} parent=0 // pred_check
    _
  $region71: #{sample_net_forward.1} parent=0 // pred_check_branch
    %63 = sbr.rel (0) target = $region73
  $region72: #{sample_net_forward.1} parent=0 // pred_region
    _
  $region73: #{sample_net_forward.1} parent=0 // pred_fallthru
    _
  // Predicated region
  $region74: #{sample_net_forward.1} parent=0 // pred_check
    _
  $region75: #{sample_net_forward.1} parent=0 // pred_check_branch
    %65 = sbr.rel (0) target = $region77
  $region76: #{sample_net_forward.1} parent=0 // pred_region
    _
  $region77: #{sample_net_forward.1} parent=0 // pred_fallthru
    _
  // Predicated region
  $region78: #{sample_net_forward.1} parent=0 // pred_check
    _
  $region79: #{sample_net_forward.1} parent=0 // pred_check_branch
    %67 = sbr.rel (0) target = $region81
  $region80: #{sample_net_forward.1} parent=0 // pred_region
    _
  $region81: #{sample_net_forward.1} parent=0 // pred_fallthru
    _
  // Predicated region
  $region82: #{sample_net_forward.1} parent=0 // pred_check
    _
  $region83: #{sample_net_forward.1} parent=0 // pred_check_branch
    %69 = sbr.rel (0) target = $region85
  $region84: #{sample_net_forward.1} parent=0 // pred_region
    _
  $region85: #{sample_net_forward.1} parent=0 // pred_fallthru
    _
  // Predicated region
  $region86: #{sample_net_forward.1} parent=0 // pred_check
    _
  $region87: #{sample_net_forward.1} parent=0 // pred_check_branch
    %71 = sbr.rel (0) target = $region89
  $region88: #{sample_net_forward.1} parent=0 // pred_region
    _
  $region89: #{sample_net_forward.1} parent=0 // pred_fallthru
    _
  // Predicated region
  $region90: #{sample_net_forward.1} parent=0 // pred_check
    _
  $region91: #{sample_net_forward.1} parent=0 // pred_check_branch
    %73 = sbr.rel (0) target = $region93
  $region92: #{sample_net_forward.1} parent=0 // pred_region
    _
  $region93: #{sample_net_forward.1} parent=0 // pred_fallthru
    _
  %v74 = vld [vmem:[%s0] sm:$0xff]
  %v75 = vld [vmem:[%s0 + $0x8] sm:$0xff]
  %v76 = vlaneseq
  %v77 = vshrl.u32 %v76, 7
  %v78 = vadd.s32 %v77, 8
  %v79 = vlaneseq
  %v80 = vand.u32 %v79, 127
  %vm81 = vcmp.ge.s32.totalorder %v77, 0
  %vm82 = vcmp.ge.s32.totalorder %v78, 0
  %vm83 = vcmp.lt.s32.totalorder %v77, 8
  %vm84 = vcmp.lt.s32.totalorder %v78, 8
  %vm85 = vmand %vm81, %vm83
  %vm86 = vmand %vm82, %vm84
  %vm87 = vcmp.ge.s32.totalorder %v80, 0
  %vm88 = vmand %vm85, %vm87
  %vm89 = vmand %vm86, %vm87
  %vm90 = vcmp.lt.s32.totalorder %v80, 8
  %vm91 = vmand %vm88, %vm90
  %vm92 = vmand %vm89, %vm90
  %vm93 = vcmp.ge.s32.totalorder %v77, 8
  %vm94 = vcmp.ge.s32.totalorder %v78, 8
  %vm95 = vcmp.lt.s32.totalorder %v77, 16
  %vm96 = vcmp.lt.s32.totalorder %v78, 16
  %vm97 = vmand %vm93, %vm95
  %vm98 = vmand %vm94, %vm96
  %vm99 = vcmp.ge.s32.totalorder %v80, 8
  %vm100 = vmand %vm97, %vm99
  %vm101 = vmand %vm98, %vm99
  %vm102 = vcmp.lt.s32.totalorder %v80, 16
  %vm103 = vmand %vm100, %vm102
  %vm104 = vmand %vm101, %vm102
  %vm105 = vmor %vm91, %vm103
  %vm106 = vmor %vm92, %vm104
  %v107 = vld [vmem:[%s1] sm:$0x1]
  %vm108 = vcmp.ne.s32.totalorder %v107, 0
  %vm109 = vcmp.le.s32.totalorder %v80, %v77
  %vm110 = vcmp.le.s32.totalorder %v80, %v78
  %vm111 = vmand %vm105, %vm109
  %vm112 = vmand %vm106, %vm110
  %v113 = vsel %vm108, 1, 0
  %v114 = vlaneseq
  %v115 = vshrl.u32 %v114, 7
  %v116 = vsub.s32 0, %v115
  %v117 = vrot.slane %v113, %v116
  %vm118 = vcmp.eq.s32.totalorder %v117, 1
  %vm119 = vmand %vm111, %vm118
  %vm120 = vmand %vm112, %vm118
  %v121 = vsel %vm119, 0.0, -1e+30
  %v122 = vsel %vm120, 0.0, -1e+30
  %v123 = vld [vmem:[%s2] sm:$0xff]
  %v124 = vld [vmem:[%s2 + $0x8] sm:$0xff]
  %v125 = vld [vmem:[%s2 + $0x10] sm:$0xff]
  %v126 = vld [vmem:[%s2 + $0x18] sm:$0xff]
  %v127 = vld [vmem:[%s5] sm:$0x1]
  %v129 = vlaneseq
  %v130 = vshrl.u32 %v129, 7
  %v131 = vsub.s32 0, %v130
  %v132 = vrot.slane %v127, %v131
  %vm134 = vcmask 261120
  %v136 = vsel %vm134, %v74, 0
  %v139 = vsel %vm134, %v75, 0
  %141 = vmatprep.subr.mxu0 0.0
  %142 = vmatpush1.msra.mxu0 0.0
  %143 = vmatprep.subr.mxu0 0.0
  %144 = vmatpush1.msra.mxu0 0.0
  %145 = vmatprep.subr.mxu0 0.0
  %146 = vmatpush1.msra.mxu0 0.0
  %147 = vmatprep.subr.mxu0 0.0
  %148 = vmatpush1.msra.mxu0 0.0
  %149 = vmatprep.subr.mxu0 0.0
  %150 = vmatpush1.msra.mxu0 0.0
  %151 = vmatprep.subr.mxu0 0.0
  %152 = vmatpush1.msra.mxu0 0.0
  %153 = vmatprep.subr.mxu0 0.0
  %154 = vmatpush1.msra.mxu0 0.0
  %155 = vmatprep.subr.mxu0 0.0
  %156 = vmatpush1.msra.mxu0 0.0
  %157 = vmatprep.subr.mxu0 0.0
  %158 = vmatpush1.msra.mxu0 0.0
  %159 = vmatprep.subr.mxu0 0.0
  %160 = vmatpush1.msra.mxu0 0.0
  %161 = vmatprep.subr.mxu0 0.0
  %162 = vmatpush1.msra.mxu0 0.0
  %163 = vmatprep.subr.mxu0 0.0
  %164 = vmatpush1.msra.mxu0 0.0
  %165 = vmatprep.subr.mxu0 0.0
  %166 = vmatpush1.msra.mxu0 %v126
  %167 = vmatprep.subr.mxu0 0.0
  %168 = vmatpush1.msra.mxu0 %v125
  %169 = vmatprep.subr.mxu0 0.0
  %170 = vmatpush1.msra.mxu0 %v124
  %171 = vmatprep.subr.mxu0 0.0
  %172 = vmatpush1.msra.mxu0 %v123
  %173 = vmatprep.subr.mxu0 0.0
  %174 = vmatpush2.msra.mxu0 0.0
  %175 = vmatprep.subr.mxu0 0.0
  %176 = vmatpush2.msra.mxu0 0.0
  %177 = vmatprep.subr.mxu0 0.0
  %178 = vmatpush2.msra.mxu0 0.0
  %179 = vmatprep.subr.mxu0 0.0
  %180 = vmatpush2.msra.mxu0 0.0
  %181 = vmatprep.subr.mxu0 0.0
  %182 = vmatpush2.msra.mxu0 0.0
  %183 = vmatprep.subr.mxu0 0.0
  %184 = vmatpush2.msra.mxu0 0.0
  %185 = vmatprep.subr.mxu0 0.0
  %186 = vmatpush2.msra.mxu0 0.0
  %187 = vmatprep.subr.mxu0 0.0
  %188 = vmatpush2.msra.mxu0 0.0
  %189 = vmatprep.subr.mxu0 0.0
  %190 = vmatpush2.msra.mxu0 0.0
  %191 = vmatprep.subr.mxu0 0.0
  %192 = vmatpush2.msra.mxu0 0.0
  %193 = vmatprep.subr.mxu0 0.0
  %194 = vmatpush2.msra.mxu0 0.0
  %195 = vmatprep.subr.mxu0 0.0
  %196 = vmatpush2.msra.mxu0 0.0
  %197 = vmatprep.subr.mxu0 0.0
  %198 = vmatpush2.msra.mxu0 0.0
  %199 = vmatprep.subr.mxu0 0.0
  %200 = vmatpush2.msra.mxu0 0.0
  %201 = vmatprep.subr.mxu0 0.0
  %202 = vmatpush2.msra.mxu0 0.0
  %203 = vmatprep.subr.mxu0 0.0
  %204 = vmatpush2.msra.mxu0 0.0
  %205 = vmatprep.mubr.f32.mxu0 0.0
  %206 = vmatmul.mubr.f32.gmra.mxu0 %v136
  %v207 = vpop.f32.mrf.mxu0
  %v208 = vadd.f32 %v132, %v207
  %v209 = vpop.f32.mrf.mxu0
  %210 = vmatprep.mubr.f32.mxu0 0.0
  %211 = vmatmul.mubr.f32.gmra.mxu0 %v139
  %v212 = vpop.f32.mrf.mxu0
  %v213 = vadd.f32 %v132, %v212
  %v214 = vpop.f32.mrf.mxu0
  %215 = vdwg.mxu0
  %v216 = vld [vmem:[%s3] sm:$0xff]
  %v217 = vld [vmem:[%s3 + $0x8] sm:$0xff]
  %v218 = vld [vmem:[%s3 + $0x10] sm:$0xff]
  %v219 = vld [vmem:[%s3 + $0x18] sm:$0xff]
  %v220 = vld [vmem:[%s6] sm:$0x1]
  %v222 = vlaneseq
  %v223 = vshrl.u32 %v222, 7
  %v224 = vsub.s32 0, %v223
  %v225 = vrot.slane %v220, %v224
  %227 = vmatprep.subr.mxu0 0.0
  %228 = vmatpush1.msra.mxu0 0.0
  %229 = vmatprep.subr.mxu0 0.0
  %230 = vmatpush1.msra.mxu0 0.0
  %231 = vmatprep.subr.mxu0 0.0
  %232 = vmatpush1.msra.mxu0 0.0
  %233 = vmatprep.subr.mxu0 0.0
  %234 = vmatpush1.msra.mxu0 0.0
  %235 = vmatprep.subr.mxu0 0.0
  %236 = vmatpush1.msra.mxu0 0.0
  %237 = vmatprep.subr.mxu0 0.0
  %238 = vmatpush1.msra.mxu0 0.0
  %239 = vmatprep.subr.mxu0 0.0
  %240 = vmatpush1.msra.mxu0 0.0
  %241 = vmatprep.subr.mxu0 0.0
  %242 = vmatpush1.msra.mxu0 0.0
  %243 = vmatprep.subr.mxu0 0.0
  %244 = vmatpush1.msra.mxu0 0.0
  %245 = vmatprep.subr.mxu0 0.0
  %246 = vmatpush1.msra.mxu0 0.0
  %247 = vmatprep.subr.mxu0 0.0
  %248 = vmatpush1.msra.mxu0 0.0
  %249 = vmatprep.subr.mxu0 0.0
  %250 = vmatpush1.msra.mxu0 0.0
  %251 = vmatprep.subr.mxu0 0.0
  %252 = vmatpush1.msra.mxu0 %v219
  %253 = vmatprep.subr.mxu0 0.0
  %254 = vmatpush1.msra.mxu0 %v218
  %255 = vmatprep.subr.mxu0 0.0
  %256 = vmatpush1.msra.mxu0 %v217
  %257 = vmatprep.subr.mxu0 0.0
  %258 = vmatpush1.msra.mxu0 %v216
  %259 = vmatprep.subr.mxu0 0.0
  %260 = vmatpush2.msra.mxu0 0.0
  %261 = vmatprep.subr.mxu0 0.0
  %262 = vmatpush2.msra.mxu0 0.0
  %263 = vmatprep.subr.mxu0 0.0
  %264 = vmatpush2.msra.mxu0 0.0
  %265 = vmatprep.subr.mxu0 0.0
  %266 = vmatpush2.msra.mxu0 0.0
  %267 = vmatprep.subr.mxu0 0.0
  %268 = vmatpush2.msra.mxu0 0.0
  %269 = vmatprep.subr.mxu0 0.0
  %270 = vmatpush2.msra.mxu0 0.0
  %271 = vmatprep.subr.mxu0 0.0
  %272 = vmatpush2.msra.mxu0 0.0
  %273 = vmatprep.subr.mxu0 0.0
  %274 = vmatpush2.msra.mxu0 0.0
  %275 = vmatprep.subr.mxu0 0.0
  %276 = vmatpush2.msra.mxu0 0.0
  %277 = vmatprep.subr.mxu0 0.0
  %278 = vmatpush2.msra.mxu0 0.0
  %279 = vmatprep.subr.mxu0 0.0
  %280 = vmatpush2.msra.mxu0 0.0
  %281 = vmatprep.subr.mxu0 0.0
  %282 = vmatpush2.msra.mxu0 0.0
  %283 = vmatprep.subr.mxu0 0.0
  %284 = vmatpush2.msra.mxu0 0.0
  %285 = vmatprep.subr.mxu0 0.0
  %286 = vmatpush2.msra.mxu0 0.0
  %287 = vmatprep.subr.mxu0 0.0
  %288 = vmatpush2.msra.mxu0 0.0
  %289 = vmatprep.subr.mxu0 0.0
  %290 = vmatpush2.msra.mxu0 0.0
  %291 = vmatprep.mubr.f32.mxu0 0.0
  %292 = vmatmul.mubr.f32.gmra.mxu0 %v136
  %v293 = vpop.f32.mrf.mxu0
  %v294 = vadd.f32 %v225, %v293
  %v295 = vpop.f32.mrf.mxu0
  %296 = vmatprep.mubr.f32.mxu0 0.0
  %297 = vmatmul.mubr.f32.gmra.mxu0 %v139
  %v298 = vpop.f32.mrf.mxu0
  %v299 = vadd.f32 %v225, %v298
  %v300 = vpop.f32.mrf.mxu0
  %301 = vdwg.mxu0
  %v302 = vld [vmem:[%s4] sm:$0xff]
  %v303 = vld [vmem:[%s4 + $0x8] sm:$0xff]
  %v304 = vld [vmem:[%s4 + $0x10] sm:$0xff]
  %v305 = vld [vmem:[%s4 + $0x18] sm:$0xff]
  %v306 = vld [vmem:[%s7] sm:$0x1]
  %v308 = vlaneseq
  %v309 = vshrl.u32 %v308, 7
  %v310 = vsub.s32 0, %v309
  %v311 = vrot.slane %v306, %v310
  %313 = vmatprep.subr.mxu0 0.0
  %314 = vmatpush1.msra.mxu0 0.0
  %315 = vmatprep.subr.mxu0 0.0
  %316 = vmatpush1.msra.mxu0 0.0
  %317 = vmatprep.subr.mxu0 0.0
  %318 = vmatpush1.msra.mxu0 0.0
  %319 = vmatprep.subr.mxu0 0.0
  %320 = vmatpush1.msra.mxu0 0.0
  %321 = vmatprep.subr.mxu0 0.0
  %322 = vmatpush1.msra.mxu0 0.0
  %323 = vmatprep.subr.mxu0 0.0
  %324 = vmatpush1.msra.mxu0 0.0
  %325 = vmatprep.subr.mxu0 0.0
  %326 = vmatpush1.msra.mxu0 0.0
  %327 = vmatprep.subr.mxu0 0.0
  %328 = vmatpush1.msra.mxu0 0.0
  %329 = vmatprep.subr.mxu0 0.0
  %330 = vmatpush1.msra.mxu0 0.0
  %331 = vmatprep.subr.mxu0 0.0
  %332 = vmatpush1.msra.mxu0 0.0
  %333 = vmatprep.subr.mxu0 0.0
  %334 = vmatpush1.msra.mxu0 0.0
  %335 = vmatprep.subr.mxu0 0.0
  %336 = vmatpush1.msra.mxu0 0.0
  %337 = vmatprep.subr.mxu0 0.0
  %338 = vmatpush1.msra.mxu0 %v305
  %339 = vmatprep.subr.mxu0 0.0
  %340 = vmatpush1.msra.mxu0 %v304
  %341 = vmatprep.subr.mxu0 0.0
  %342 = vmatpush1.msra.mxu0 %v303
  %343 = vmatprep.subr.mxu0 0.0
  %344 = vmatpush1.msra.mxu0 %v302
  %345 = vmatprep.subr.mxu0 0.0
  %346 = vmatpush2.msra.mxu0 0.0
  %347 = vmatprep.subr.mxu0 0.0
  %348 = vmatpush2.msra.mxu0 0.0
  %349 = vmatprep.subr.mxu0 0.0
  %350 = vmatpush2.msra.mxu0 0.0
  %351 = vmatprep.subr.mxu0 0.0
  %352 = vmatpush2.msra.mxu0 0.0
  %353 = vmatprep.subr.mxu0 0.0
  %354 = vmatpush2.msra.mxu0 0.0
  %355 = vmatprep.subr.mxu0 0.0
  %356 = vmatpush2.msra.mxu0 0.0
  %357 = vmatprep.subr.mxu0 0.0
  %358 = vmatpush2.msra.mxu0 0.0
  %359 = vmatprep.subr.mxu0 0.0
  %360 = vmatpush2.msra.mxu0 0.0
  %361 = vmatprep.subr.mxu0 0.0
  %362 = vmatpush2.msra.mxu0 0.0
  %363 = vmatprep.subr.mxu0 0.0
  %364 = vmatpush2.msra.mxu0 0.0
  %365 = vmatprep.subr.mxu0 0.0
  %366 = vmatpush2.msra.mxu0 0.0
  %367 = vmatprep.subr.mxu0 0.0
  %368 = vmatpush2.msra.mxu0 0.0
  %369 = vmatprep.subr.mxu0 0.0
  %370 = vmatpush2.msra.mxu0 0.0
  %371 = vmatprep.subr.mxu0 0.0
  %372 = vmatpush2.msra.mxu0 0.0
  %373 = vmatprep.subr.mxu0 0.0
  %374 = vmatpush2.msra.mxu0 0.0
  %375 = vmatprep.subr.mxu0 0.0
  %376 = vmatpush2.msra.mxu0 0.0
  %377 = vmatprep.mubr.f32.mxu0 0.0
  %378 = vmatmul.mubr.f32.gmra.mxu0 %v136
  %v379 = vpop.f32.mrf.mxu0
  %v380 = vadd.f32 %v311, %v379
  %v381 = vpop.f32.mrf.mxu0
  %382 = vmatprep.mubr.f32.mxu0 0.0
  %383 = vmatmul.mubr.f32.gmra.mxu0 %v139
  %v384 = vpop.f32.mrf.mxu0
  %v385 = vadd.f32 %v311, %v384
  %v386 = vpop.f32.mrf.mxu0
  %387 = vdwg.mxu0
  %vm388 = vcmask 130048
  %v390 = vsel %vm388, %v208, 0
  %v393 = vsel %vm388, %v213, 0
  %v396 = vsel %vm388, %v294, 0
  %v399 = vsel %vm388, %v299, 0
  %401 = vmatprep.subr.mxu0 0.0
  %402 = vmatpush1.xpose.msra.mxu0 0.0
  %403 = vmatprep.subr.mxu0 0.0
  %404 = vmatpush1.xpose.msra.mxu0 0.0
  %405 = vmatprep.subr.mxu0 0.0
  %406 = vmatpush1.xpose.msra.mxu0 0.0
  %407 = vmatprep.subr.mxu0 0.0
  %408 = vmatpush1.xpose.msra.mxu0 0.0
  %409 = vmatprep.subr.mxu0 0.0
  %410 = vmatpush1.xpose.msra.mxu0 0.0
  %411 = vmatprep.subr.mxu0 0.0
  %412 = vmatpush1.xpose.msra.mxu0 0.0
  %413 = vmatprep.subr.mxu0 0.0
  %414 = vmatpush1.xpose.msra.mxu0 0.0
  %415 = vmatprep.subr.mxu0 0.0
  %416 = vmatpush1.xpose.msra.mxu0 0.0
  %417 = vmatprep.subr.mxu0 0.0
  %418 = vmatpush1.xpose.msra.mxu0 0.0
  %419 = vmatprep.subr.mxu0 0.0
  %420 = vmatpush1.xpose.msra.mxu0 0.0
  %421 = vmatprep.subr.mxu0 0.0
  %422 = vmatpush1.xpose.msra.mxu0 0.0
  %423 = vmatprep.subr.mxu0 0.0
  %424 = vmatpush1.xpose.msra.mxu0 0.0
  %425 = vmatprep.subr.mxu0 0.0
  %426 = vmatpush1.xpose.msra.mxu0 0.0
  %427 = vmatprep.subr.mxu0 0.0
  %428 = vmatpush1.xpose.msra.mxu0 0.0
  %429 = vmatprep.subr.mxu0 0.0
  %430 = vmatpush1.xpose.msra.mxu0 %v399
  %431 = vmatprep.subr.mxu0 0.0
  %432 = vmatpush1.xpose.msra.mxu0 %v396
  %433 = vmatprep.subr.mxu0 0.0
  %434 = vmatpush2.xpose.msra.mxu0 0.0
  %435 = vmatprep.subr.mxu0 0.0
  %436 = vmatpush2.xpose.msra.mxu0 0.0
  %437 = vmatprep.subr.mxu0 0.0
  %438 = vmatpush2.xpose.msra.mxu0 0.0
  %439 = vmatprep.subr.mxu0 0.0
  %440 = vmatpush2.xpose.msra.mxu0 0.0
  %441 = vmatprep.subr.mxu0 0.0
  %442 = vmatpush2.xpose.msra.mxu0 0.0
  %443 = vmatprep.subr.mxu0 0.0
  %444 = vmatpush2.xpose.msra.mxu0 0.0
  %445 = vmatprep.subr.mxu0 0.0
  %446 = vmatpush2.xpose.msra.mxu0 0.0
  %447 = vmatprep.subr.mxu0 0.0
  %448 = vmatpush2.xpose.msra.mxu0 0.0
  %449 = vmatprep.subr.mxu0 0.0
  %450 = vmatpush2.xpose.msra.mxu0 0.0
  %451 = vmatprep.subr.mxu0 0.0
  %452 = vmatpush2.xpose.msra.mxu0 0.0
  %453 = vmatprep.subr.mxu0 0.0
  %454 = vmatpush2.xpose.msra.mxu0 0.0
  %455 = vmatprep.subr.mxu0 0.0
  %456 = vmatpush2.xpose.msra.mxu0 0.0
  %457 = vmatprep.subr.mxu0 0.0
  %458 = vmatpush2.xpose.msra.mxu0 0.0
  %459 = vmatprep.subr.mxu0 0.0
  %460 = vmatpush2.xpose.msra.mxu0 0.0
  %461 = vmatprep.subr.mxu0 0.0
  %462 = vmatpush2.xpose.msra.mxu0 0.0
  %463 = vmatprep.subr.mxu0 0.0
  %464 = vmatpush2.xpose.msra.mxu0 0.0
  %465 = vmatprep.mubr.f32.mxu0 0.0
  %466 = vmatmul.mubr.f32.gmra.mxu0 %v390
  %v467 = vpop.f32.mrf.mxu0
  %v468 = vadd.f32 0.0, %v467
  %v469 = vpop.f32.mrf.mxu0
  %470 = vmatprep.mubr.f32.mxu0 0.0
  %471 = vmatmul.mubr.f32.gmra.mxu0 %v393
  %v472 = vpop.f32.mrf.mxu0
  %v473 = vadd.f32 0.0, %v472
  %v474 = vpop.f32.mrf.mxu0
  %475 = vdwg.mxu0
  %v476 = vmul.f32 %v468, 0.25
  %v477 = vmul.f32 %v473, 0.25
  %v478 = vadd.f32 %v476, %v121
  %v479 = vadd.f32 %v477, %v122
  %v480 = vsel %vm388, %v478, -inf
  %481 = vmax.xlane.f32.xlu0 %v480
  %v482 = vpop.xlane.xlu0 %481
  %v483 = vsel %vm388, %v479, -inf
  %484 = vmax.xlane.f32.xlu0 %v483
  %v485 = vpop.xlane.xlu0 %484
  %v486 = vsub.f32 %v478, %v482
  %v487 = vsub.f32 %v479, %v485
  %v488 = vmul.f32 %v486, 1.442695
  %v489 = vpow.pop %v488
  %v490 = vmul.f32 %v487, 1.442695
  %v491 = vpow.pop %v490
  %v492 = vsel %vm388, %v489, 0.0
  %493 = vadd.xlane.f32.xlu0 %v492
  %v494 = vpop.xlane.xlu0 %493
  %v495 = vsel %vm388, %v491, 0.0
  %496 = vadd.xlane.f32.xlu0 %v495
  %v497 = vpop.xlane.xlu0 %496
  %v498 = vrcp.pop %v494
  %v499 = vrcp.pop %v497
  %v500 = vmul.f32 %v489, %v498
  %v501 = vmul.f32 %v491, %v499
  %v503 = vsel %vm388, %v500, 0
  %v506 = vsel %vm388, %v501, 0
  %508 = vmatprep.subr.mxu0 0.0
  %509 = vmatpush1.msra.mxu0 0.0
  %510 = vmatprep.subr.mxu0 0.0
  %511 = vmatpush1.msra.mxu0 0.0
  %512 = vmatprep.subr.mxu0 0.0
  %513 = vmatpush1.msra.mxu0 0.0
  %514 = vmatprep.subr.mxu0 0.0
  %515 = vmatpush1.msra.mxu0 0.0
  %516 = vmatprep.subr.mxu0 0.0
  %517 = vmatpush1.msra.mxu0 0.0
  %518 = vmatprep.subr.mxu0 0.0
  %519 = vmatpush1.msra.mxu0 0.0
  %520 = vmatprep.subr.mxu0 0.0
  %521 = vmatpush1.msra.mxu0 0.0
  %522 = vmatprep.subr.mxu0 0.0
  %523 = vmatpush1.msra.mxu0 0.0
  %524 = vmatprep.subr.mxu0 0.0
  %525 = vmatpush1.msra.mxu0 0.0
  %526 = vmatprep.subr.mxu0 0.0
  %527 = vmatpush1.msra.mxu0 0.0
  %528 = vmatprep.subr.mxu0 0.0
  %529 = vmatpush1.msra.mxu0 0.0
  %530 = vmatprep.subr.mxu0 0.0
  %531 = vmatpush1.msra.mxu0 0.0
  %532 = vmatprep.subr.mxu0 0.0
  %533 = vmatpush1.msra.mxu0 0.0
  %534 = vmatprep.subr.mxu0 0.0
  %535 = vmatpush1.msra.mxu0 0.0
  %536 = vmatprep.subr.mxu0 0.0
  %537 = vmatpush1.msra.mxu0 %v385
  %538 = vmatprep.subr.mxu0 0.0
  %539 = vmatpush1.msra.mxu0 %v380
  %540 = vmatprep.subr.mxu0 0.0
  %541 = vmatpush2.msra.mxu0 0.0
  %542 = vmatprep.subr.mxu0 0.0
  %543 = vmatpush2.msra.mxu0 0.0
  %544 = vmatprep.subr.mxu0 0.0
  %545 = vmatpush2.msra.mxu0 0.0
  %546 = vmatprep.subr.mxu0 0.0
  %547 = vmatpush2.msra.mxu0 0.0
  %548 = vmatprep.subr.mxu0 0.0
  %549 = vmatpush2.msra.mxu0 0.0
  %550 = vmatprep.subr.mxu0 0.0
  %551 = vmatpush2.msra.mxu0 0.0
  %552 = vmatprep.subr.mxu0 0.0
  %553 = vmatpush2.msra.mxu0 0.0
  %554 = vmatprep.subr.mxu0 0.0
  %555 = vmatpush2.msra.mxu0 0.0
  %556 = vmatprep.subr.mxu0 0.0
  %557 = vmatpush2.msra.mxu0 0.0
  %558 = vmatprep.subr.mxu0 0.0
  %559 = vmatpush2.msra.mxu0 0.0
  %560 = vmatprep.subr.mxu0 0.0
  %561 = vmatpush2.msra.mxu0 0.0
  %562 = vmatprep.subr.mxu0 0.0
  %563 = vmatpush2.msra.mxu0 0.0
  %564 = vmatprep.subr.mxu0 0.0
  %565 = vmatpush2.msra.mxu0 0.0
  %566 = vmatprep.subr.mxu0 0.0
  %567 = vmatpush2.msra.mxu0 0.0
  %568 = vmatprep.subr.mxu0 0.0
  %569 = vmatpush2.msra.mxu0 0.0
  %570 = vmatprep.subr.mxu0 0.0
  %571 = vmatpush2.msra.mxu0 0.0
  %572 = vmatprep.mubr.f32.mxu0 0.0
  %573 = vmatmul.mubr.f32.gmra.mxu0 %v503
  %v574 = vpop.f32.mrf.mxu0
  %v575 = vadd.f32 0.0, %v574
  %v576 = vpop.f32.mrf.mxu0
  %577 = vmatprep.mubr.f32.mxu0 0.0
  %578 = vmatmul.mubr.f32.gmra.mxu0 %v506
  %v579 = vpop.f32.mrf.mxu0
  %v580 = vadd.f32 0.0, %v579
  %v581 = vpop.f32.mrf.mxu0
  %582 = vdwg.mxu0
  %v583 = vld [vmem:[%s8] sm:$0xff]
  %v584 = vld [vmem:[%s8 + $0x8] sm:$0xff]
  %s585 = scalar_lea.vmem %s2, 32
  %v586 = vld [vmem:[%s585] sm:$0xff]
  %v587 = vld [vmem:[%s585 + $0x8] sm:$0xff]
  %v588 = vld [vmem:[%s585 + $0x10] sm:$0xff]
  %v589 = vld [vmem:[%s585 + $0x18] sm:$0xff]
  %s590 = scalar_lea.vmem %s5, 1
  %v591 = vld [vmem:[%s590] sm:$0x1]
  %v593 = vlaneseq
  %v594 = vshrl.u32 %v593, 7
  %v595 = vsub.s32 0, %v594
  %v596 = vrot.slane %v591, %v595
  %598 = vmatprep.subr.mxu0 0.0
  %599 = vmatpush1.msra.mxu0 0.0
  %600 = vmatprep.subr.mxu0 0.0
  %601 = vmatpush1.msra.mxu0 0.0
  %602 = vmatprep.subr.mxu0 0.0
  %603 = vmatpush1.msra.mxu0 0.0
  %604 = vmatprep.subr.mxu0 0.0
  %605 = vmatpush1.msra.mxu0 0.0
  %606 = vmatprep.subr.mxu0 0.0
  %607 = vmatpush1.msra.mxu0 0.0
  %608 = vmatprep.subr.mxu0 0.0
  %609 = vmatpush1.msra.mxu0 0.0
  %610 = vmatprep.subr.mxu0 0.0
  %611 = vmatpush1.msra.mxu0 0.0
  %612 = vmatprep.subr.mxu0 0.0
  %613 = vmatpush1.msra.mxu0 0.0
  %614 = vmatprep.subr.mxu0 0.0
  %615 = vmatpush1.msra.mxu0 0.0
  %616 = vmatprep.subr.mxu0 0.0
  %617 = vmatpush1.msra.mxu0 0.0
  %618 = vmatprep.subr.mxu0 0.0
  %619 = vmatpush1.msra.mxu0 0.0
  %620 = vmatprep.subr.mxu0 0.0
  %621 = vmatpush1.msra.mxu0 0.0
  %622 = vmatprep.subr.mxu0 0.0
  %623 = vmatpush1.msra.mxu0 %v589
  %624 = vmatprep.subr.mxu0 0.0
  %625 = vmatpush1.msra.mxu0 %v588
  %626 = vmatprep.subr.mxu0 0.0
  %627 = vmatpush1.msra.mxu0 %v587
  %628 = vmatprep.subr.mxu0 0.0
  %629 = vmatpush1.msra.mxu0 %v586
  %630 = vmatprep.subr.mxu0 0.0
  %631 = vmatpush2.msra.mxu0 0.0
  %632 = vmatprep.subr.mxu0 0.0
  %633 = vmatpush2.msra.mxu0 0.0
  %634 = vmatprep.subr.mxu0 0.0
  %635 = vmatpush2.msra.mxu0 0.0
  %636 = vmatprep.subr.mxu0 0.0
  %637 = vmatpush2.msra.mxu0 0.0
  %638 = vmatprep.subr.mxu0 0.0
  %639 = vmatpush2.msra.mxu0 0.0
  %640 = vmatprep.subr.mxu0 0.0
  %641 = vmatpush2.msra.mxu0 0.0
  %642 = vmatprep.subr.mxu0 0.0
  %643 = vmatpush2.msra.mxu0 0.0
  %644 = vmatprep.subr.mxu0 0.0
  %645 = vmatpush2.msra.mxu0 0.0
  %646 = vmatprep.subr.mxu0 0.0
  %647 = vmatpush2.msra.mxu0 0.0
  %648 = vmatprep.subr.mxu0 0.0
  %649 = vmatpush2.msra.mxu0 0.0
  %650 = vmatprep.subr.mxu0 0.0
  %651 = vmatpush2.msra.mxu0 0.0
  %652 = vmatprep.subr.mxu0 0.0
  %653 = vmatpush2.msra.mxu0 0.0
  %654 = vmatprep.subr.mxu0 0.0
  %655 = vmatpush2.msra.mxu0 0.0
  %656 = vmatprep.subr.mxu0 0.0
  %657 = vmatpush2.msra.mxu0 0.0
  %658 = vmatprep.subr.mxu0 0.0
  %659 = vmatpush2.msra.mxu0 0.0
  %660 = vmatprep.subr.mxu0 0.0
  %661 = vmatpush2.msra.mxu0 0.0
  %662 = vmatprep.mubr.f32.mxu0 0.0
  %663 = vmatmul.mubr.f32.gmra.mxu0 %v136
  %v664 = vpop.f32.mrf.mxu0
  %v665 = vadd.f32 %v596, %v664
  %v666 = vpop.f32.mrf.mxu0
  %667 = vmatprep.mubr.f32.mxu0 0.0
  %668 = vmatmul.mubr.f32.gmra.mxu0 %v139
  %v669 = vpop.f32.mrf.mxu0
  %v670 = vadd.f32 %v596, %v669
  %v671 = vpop.f32.mrf.mxu0
  %672 = vdwg.mxu0
  %s673 = scalar_lea.vmem %s3, 32
  %v674 = vld [vmem:[%s673] sm:$0xff]
  %v675 = vld [vmem:[%s673 + $0x8] sm:$0xff]
  %v676 = vld [vmem:[%s673 + $0x10] sm:$0xff]
  %v677 = vld [vmem:[%s673 + $0x18] sm:$0xff]
  %s678 = scalar_lea.vmem %s6, 1
  %v679 = vld [vmem:[%s678] sm:$0x1]
  %v681 = vlaneseq
  %v682 = vshrl.u32 %v681, 7
  %v683 = vsub.s32 0, %v682
  %v684 = vrot.slane %v679, %v683
  %686 = vmatprep.subr.mxu0 0.0
  %687 = vmatpush1.msra.mxu0 0.0
  %688 = vmatprep.subr.mxu0 0.0
  %689 = vmatpush1.msra.mxu0 0.0
  %690 = vmatprep.subr.mxu0 0.0
  %691 = vmatpush1.msra.mxu0 0.0
  %692 = vmatprep.subr.mxu0 0.0
  %693 = vmatpush1.msra.mxu0 0.0
  %694 = vmatprep.subr.mxu0 0.0
  %695 = vmatpush1.msra.mxu0 0.0
  %696 = vmatprep.subr.mxu0 0.0
  %697 = vmatpush1.msra.mxu0 0.0
  %698 = vmatprep.subr.mxu0 0.0
  %699 = vmatpush1.msra.mxu0 0.0
  %700 = vmatprep.subr.mxu0 0.0
  %701 = vmatpush1.msra.mxu0 0.0
  %702 = vmatprep.subr.mxu0 0.0
  %703 = vmatpush1.msra.mxu0 0.0
  %704 = vmatprep.subr.mxu0 0.0
  %705 = vmatpush1.msra.mxu0 0.0
  %706 = vmatprep.subr.mxu0 0.0
  %707 = vmatpush1.msra.mxu0 0.0
  %708 = vmatprep.subr.mxu0 0.0
  %709 = vmatpush1.msra.mxu0 0.0
  %710 = vmatprep.subr.mxu0 0.0
  %711 = vmatpush1.msra.mxu0 %v677
  %712 = vmatprep.subr.mxu0 0.0
  %713 = vmatpush1.msra.mxu0 %v676
  %714 = vmatprep.subr.mxu0 0.0
  %715 = vmatpush1.msra.mxu0 %v675
  %716 = vmatprep.subr.mxu0 0.0
  %717 = vmatpush1.msra.mxu0 %v674
  %718 = vmatprep.subr.mxu0 0.0
  %719 = vmatpush2.msra.mxu0 0.0
  %720 = vmatprep.subr.mxu0 0.0
  %721 = vmatpush2.msra.mxu0 0.0
  %722 = vmatprep.subr.mxu0 0.0
  %723 = vmatpush2.msra.mxu0 0.0
  %724 = vmatprep.subr.mxu0 0.0
  %725 = vmatpush2.msra.mxu0 0.0
  %726 = vmatprep.subr.mxu0 0.0
  %727 = vmatpush2.msra.mxu0 0.0
  %728 = vmatprep.subr.mxu0 0.0
  %729 = vmatpush2.msra.mxu0 0.0
  %730 = vmatprep.subr.mxu0 0.0
  %731 = vmatpush2.msra.mxu0 0.0
  %732 = vmatprep.subr.mxu0 0.0
  %733 = vmatpush2.msra.mxu0 0.0
  %734 = vmatprep.subr.mxu0 0.0
  %735 = vmatpush2.msra.mxu0 0.0
  %736 = vmatprep.subr.mxu0 0.0
  %737 = vmatpush2.msra.mxu0 0.0
  %738 = vmatprep.subr.mxu0 0.0
  %739 = vmatpush2.msra.mxu0 0.0
  %740 = vmatprep.subr.mxu0 0.0
  %741 = vmatpush2.msra.mxu0 0.0
  %742 = vmatprep.subr.mxu0 0.0
  %743 = vmatpush2.msra.mxu0 0.0
  %744 = vmatprep.subr.mxu0 0.0
  %745 = vmatpush2.msra.mxu0 0.0
  %746 = vmatprep.subr.mxu0 0.0
  %747 = vmatpush2.msra.mxu0 0.0
  %748 = vmatprep.subr.mxu0 0.0
  %749 = vmatpush2.msra.mxu0 0.0
  %750 = vmatprep.mubr.f32.mxu0 0.0
  %751 = vmatmul.mubr.f32.gmra.mxu0 %v136
  %v752 = vpop.f32.mrf.mxu0
  %v753 = vadd.f32 %v684, %v752
  %v754 = vpop.f32.mrf.mxu0
  %755 = vmatprep.mubr.f32.mxu0 0.0
  %756 = vmatmul.mubr.f32.gmra.mxu0 %v139
  %v757 = vpop.f32.mrf.mxu0
  %v758 = vadd.f32 %v684, %v757
  %v759 = vpop.f32.mrf.mxu0
  %760 = vdwg.mxu0
  %s761 = scalar_lea.vmem %s4, 32
  %v762 = vld [vmem:[%s761] sm:$0xff]
  %v763 = vld [vmem:[%s761 + $0x8] sm:$0xff]
  %v764 = vld [vmem:[%s761 + $0x10] sm:$0xff]
  %v765 = vld [vmem:[%s761 + $0x18] sm:$0xff]
  %s766 = scalar_lea.vmem %s7, 1
  %v767 = vld [vmem:[%s766] sm:$0x1]
  %v769 = vlaneseq
  %v770 = vshrl.u32 %v769, 7
  %v771 = vsub.s32 0, %v770
  %v772 = vrot.slane %v767, %v771
  %774 = vmatprep.subr.mxu0 0.0
  %775 = vmatpush1.msra.mxu0 0.0
  %776 = vmatprep.subr.mxu0 0.0
  %777 = vmatpush1.msra.mxu0 0.0
  %778 = vmatprep.subr.mxu0 0.0
  %779 = vmatpush1.msra.mxu0 0.0
  %780 = vmatprep.subr.mxu0 0.0
  %781 = vmatpush1.msra.mxu0 0.0
  %782 = vmatprep.subr.mxu0 0.0
  %783 = vmatpush1.msra.mxu0 0.0
  %784 = vmatprep.subr.mxu0 0.0
  %785 = vmatpush1.msra.mxu0 0.0
  %786 = vmatprep.subr.mxu0 0.0
  %787 = vmatpush1.msra.mxu0 0.0
  %788 = vmatprep.subr.mxu0 0.0
  %789 = vmatpush1.msra.mxu0 0.0
  %790 = vmatprep.subr.mxu0 0.0
  %791 = vmatpush1.msra.mxu0 0.0
  %792 = vmatprep.subr.mxu0 0.0
  %793 = vmatpush1.msra.mxu0 0.0
  %794 = vmatprep.subr.mxu0 0.0
  %795 = vmatpush1.msra.mxu0 0.0
  %796 = vmatprep.subr.mxu0 0.0
  %797 = vmatpush1.msra.mxu0 0.0
  %798 = vmatprep.subr.mxu0 0.0
  %799 = vmatpush1.msra.mxu0 %v765
  %800 = vmatprep.subr.mxu0 0.0
  %801 = vmatpush1.msra.mxu0 %v764
  %802 = vmatprep.subr.mxu0 0.0
  %803 = vmatpush1.msra.mxu0 %v763
  %804 = vmatprep.subr.mxu0 0.0
  %805 = vmatpush1.msra.mxu0 %v762
  %806 = vmatprep.subr.mxu0 0.0
  %807 = vmatpush2.msra.mxu0 0.0
  %808 = vmatprep.subr.mxu0 0.0
  %809 = vmatpush2.msra.mxu0 0.0
  %810 = vmatprep.subr.mxu0 0.0
  %811 = vmatpush2.msra.mxu0 0.0
  %812 = vmatprep.subr.mxu0 0.0
  %813 = vmatpush2.msra.mxu0 0.0
  %814 = vmatprep.subr.mxu0 0.0
  %815 = vmatpush2.msra.mxu0 0.0
  %816 = vmatprep.subr.mxu0 0.0
  %817 = vmatpush2.msra.mxu0 0.0
  %818 = vmatprep.subr.mxu0 0.0
  %819 = vmatpush2.msra.mxu0 0.0
  %820 = vmatprep.subr.mxu0 0.0
  %821 = vmatpush2.msra.mxu0 0.0
  %822 = vmatprep.subr.mxu0 0.0
  %823 = vmatpush2.msra.mxu0 0.0
  %824 = vmatprep.subr.mxu0 0.0
  %825 = vmatpush2.msra.mxu0 0.0
  %826 = vmatprep.subr.mxu0 0.0
  %827 = vmatpush2.msra.mxu0 0.0
  %828 = vmatprep.subr.mxu0 0.0
  %829 = vmatpush2.msra.mxu0 0.0
  %830 = vmatprep.subr.mxu0 0.0
  %831 = vmatpush2.msra.mxu0 0.0
  %832 = vmatprep.subr.mxu0 0.0
  %833 = vmatpush2.msra.mxu0 0.0
  %834 = vmatprep.subr.mxu0 0.0
  %835 = vmatpush2.msra.mxu0 0.0
  %836 = vmatprep.subr.mxu0 0.0
  %837 = vmatpush2.msra.mxu0 0.0
  %838 = vmatprep.mubr.f32.mxu0 0.0
  %839 = vmatmul.mubr.f32.gmra.mxu0 %v136
  %v840 = vpop.f32.mrf.mxu0
  %v841 = vadd.f32 %v772, %v840
  %v842 = vpop.f32.mrf.mxu0
  %843 = vmatprep.mubr.f32.mxu0 0.0
  %844 = vmatmul.mubr.f32.gmra.mxu0 %v139
  %v845 = vpop.f32.mrf.mxu0
  %v846 = vadd.f32 %v772, %v845
  %v847 = vpop.f32.mrf.mxu0
  %848 = vdwg.mxu0
  %v850 = vsel %vm388, %v665, 0
  %v853 = vsel %vm388, %v670, 0
  %v856 = vsel %vm388, %v753, 0
  %v859 = vsel %vm388, %v758, 0
  %861 = vmatprep.subr.mxu0 0.0
  %862 = vmatpush1.xpose.msra.mxu0 0.0
  %863 = vmatprep.subr.mxu0 0.0
  %864 = vmatpush1.xpose.msra.mxu0 0.0
  %865 = vmatprep.subr.mxu0 0.0
  %866 = vmatpush1.xpose.msra.mxu0 0.0
  %867 = vmatprep.subr.mxu0 0.0
  %868 = vmatpush1.xpose.msra.mxu0 0.0
  %869 = vmatprep.subr.mxu0 0.0
  %870 = vmatpush1.xpose.msra.mxu0 0.0
  %871 = vmatprep.subr.mxu0 0.0
  %872 = vmatpush1.xpose.msra.mxu0 0.0
  %873 = vmatprep.subr.mxu0 0.0
  %874 = vmatpush1.xpose.msra.mxu0 0.0
  %875 = vmatprep.subr.mxu0 0.0
  %876 = vmatpush1.xpose.msra.mxu0 0.0
  %877 = vmatprep.subr.mxu0 0.0
  %878 = vmatpush1.xpose.msra.mxu0 0.0
  %879 = vmatprep.subr.mxu0 0.0
  %880 = vmatpush1.xpose.msra.mxu0 0.0
  %881 = vmatprep.subr.mxu0 0.0
  %882 = vmatpush1.xpose.msra.mxu0 0.0
  %883 = vmatprep.subr.mxu0 0.0
  %884 = vmatpush1.xpose.msra.mxu0 0.0
  %885 = vmatprep.subr.mxu0 0.0
  %886 = vmatpush1.xpose.msra.mxu0 0.0
  %887 = vmatprep.subr.mxu0 0.0
  %888 = vmatpush1.xpose.msra.mxu0 0.0
  %889 = vmatprep.subr.mxu0 0.0
  %890 = vmatpush1.xpose.msra.mxu0 %v859
  %891 = vmatprep.subr.mxu0 0.0
  %892 = vmatpush1.xpose.msra.mxu0 %v856
  %893 = vmatprep.subr.mxu0 0.0
  %894 = vmatpush2.xpose.msra.mxu0 0.0
  %895 = vmatprep.subr.mxu0 0.0
  %896 = vmatpush2.xpose.msra.mxu0 0.0
  %897 = vmatprep.subr.mxu0 0.0
  %898 = vmatpush2.xpose.msra.mxu0 0.0
  %899 = vmatprep.subr.mxu0 0.0
  %900 = vmatpush2.xpose.msra.mxu0 0.0
  %901 = vmatprep.subr.mxu0 0.0
  %902 = vmatpush2.xpose.msra.mxu0 0.0
  %903 = vmatprep.subr.mxu0 0.0
  %904 = vmatpush2.xpose.msra.mxu0 0.0
  %905 = vmatprep.subr.mxu0 0.0
  %906 = vmatpush2.xpose.msra.mxu0 0.0
  %907 = vmatprep.subr.mxu0 0.0
  %908 = vmatpush2.xpose.msra.mxu0 0.0
  %909 = vmatprep.subr.mxu0 0.0
  %910 = vmatpush2.xpose.msra.mxu0 0.0
  %911 = vmatprep.subr.mxu0 0.0
  %912 = vmatpush2.xpose.msra.mxu0 0.0
  %913 = vmatprep.subr.mxu0 0.0
  %914 = vmatpush2.xpose.msra.mxu0 0.0
  %915 = vmatprep.subr.mxu0 0.0
  %916 = vmatpush2.xpose.msra.mxu0 0.0
  %917 = vmatprep.subr.mxu0 0.0
  %918 = vmatpush2.xpose.msra.mxu0 0.0
  %919 = vmatprep.subr.mxu0 0.0
  %920 = vmatpush2.xpose.msra.mxu0 0.0
  %921 = vmatprep.subr.mxu0 0.0
  %922 = vmatpush2.xpose.msra.mxu0 0.0
  %923 = vmatprep.subr.mxu0 0.0
  %924 = vmatpush2.xpose.msra.mxu0 0.0
  %925 = vmatprep.mubr.f32.mxu0 0.0
  %926 = vmatmul.mubr.f32.gmra.mxu0 %v850
  %v927 = vpop.f32.mrf.mxu0
  %v928 = vadd.f32 0.0, %v927
  %v929 = vpop.f32.mrf.mxu0
  %930 = vmatprep.mubr.f32.mxu0 0.0
  %931 = vmatmul.mubr.f32.gmra.mxu0 %v853
  %v932 = vpop.f32.mrf.mxu0
  %v933 = vadd.f32 0.0, %v932
  %v934 = vpop.f32.mrf.mxu0
  %935 = vdwg.mxu0
  %v936 = vmul.f32 %v928, 0.25
  %v937 = vmul.f32 %v933, 0.25
  %v938 = vadd.f32 %v936, %v121
  %v939 = vadd.f32 %v937, %v122
  %v940 = vsel %vm388, %v938, -inf
  %941 = vmax.xlane.f32.xlu0 %v940
  %v942 = vpop.xlane.xlu0 %941
  %v943 = vsel %vm388, %v939, -inf
  %944 = vmax.xlane.f32.xlu0 %v943
  %v945 = vpop.xlane.xlu0 %944
  %v946 = vsub.f32 %v938, %v942
  %v947 = vsub.f32 %v939, %v945
  %v948 = vmul.f32 %v946, 1.442695
  %v949 = vpow.pop %v948
  %v950 = vmul.f32 %v947, 1.442695
  %v951 = vpow.pop %v950
  %v952 = vsel %vm388, %v949, 0.0
  %953 = vadd.xlane.f32.xlu0 %v952
  %v954 = vpop.xlane.xlu0 %953
  %v955 = vsel %vm388, %v951, 0.0
  %956 = vadd.xlane.f32.xlu0 %v955
  %v957 = vpop.xlane.xlu0 %956
  %v958 = vrcp.pop %v954
  %v959 = vrcp.pop %v957
  %v960 = vmul.f32 %v949, %v958
  %v961 = vmul.f32 %v951, %v959
  %v963 = vsel %vm388, %v960, 0
  %v966 = vsel %vm388, %v961, 0
  %968 = vmatprep.subr.mxu0 0.0
  %969 = vmatpush1.msra.mxu0 0.0
  %970 = vmatprep.subr.mxu0 0.0
  %971 = vmatpush1.msra.mxu0 0.0
  %972 = vmatprep.subr.mxu0 0.0
  %973 = vmatpush1.msra.mxu0 0.0
  %974 = vmatprep.subr.mxu0 0.0
  %975 = vmatpush1.msra.mxu0 0.0
  %976 = vmatprep.subr.mxu0 0.0
  %977 = vmatpush1.msra.mxu0 0.0
  %978 = vmatprep.subr.mxu0 0.0
  %979 = vmatpush1.msra.mxu0 0.0
  %980 = vmatprep.subr.mxu0 0.0
  %981 = vmatpush1.msra.mxu0 0.0
  %982 = vmatprep.subr.mxu0 0.0
  %983 = vmatpush1.msra.mxu0 0.0
  %984 = vmatprep.subr.mxu0 0.0
  %985 = vmatpush1.msra.mxu0 0.0
  %986 = vmatprep.subr.mxu0 0.0
  %987 = vmatpush1.msra.mxu0 0.0
  %988 = vmatprep.subr.mxu0 0.0
  %989 = vmatpush1.msra.mxu0 0.0
  %990 = vmatprep.subr.mxu0 0.0
  %991 = vmatpush1.msra.mxu0 0.0
  %992 = vmatprep.subr.mxu0 0.0
  %993 = vmatpush1.msra.mxu0 0.0
  %994 = vmatprep.subr.mxu0 0.0
  %995 = vmatpush1.msra.mxu0 0.0
  %996 = vmatprep.subr.mxu0 0.0
  %997 = vmatpush1.msra.mxu0 %v846
  %998 = vmatprep.subr.mxu0 0.0
  %999 = vmatpush1.msra.mxu0 %v841
  %1000 = vmatprep.subr.mxu0 0.0
  %1001 = vmatpush2.msra.mxu0 0.0
  %1002 = vmatprep.subr.mxu0 0.0
  %1003 = vmatpush2.msra.mxu0 0.0
  %1004 = vmatprep.subr.mxu0 0.0
  %1005 = vmatpush2.msra.mxu0 0.0
  %1006 = vmatprep.subr.mxu0 0.0
  %1007 = vmatpush2.msra.mxu0 0.0
  %1008 = vmatprep.subr.mxu0 0.0
  %1009 = vmatpush2.msra.mxu0 0.0
  %1010 = vmatprep.subr.mxu0 0.0
  %1011 = vmatpush2.msra.mxu0 0.0
  %1012 = vmatprep.subr.mxu0 0.0
  %1013 = vmatpush2.msra.mxu0 0.0
  %1014 = vmatprep.subr.mxu0 0.0
  %1015 = vmatpush2.msra.mxu0 0.0
  %1016 = vmatprep.subr.mxu0 0.0
  %1017 = vmatpush2.msra.mxu0 0.0
  %1018 = vmatprep.subr.mxu0 0.0
  %1019 = vmatpush2.msra.mxu0 0.0
  %1020 = vmatprep.subr.mxu0 0.0
  %1021 = vmatpush2.msra.mxu0 0.0
  %1022 = vmatprep.subr.mxu0 0.0
  %1023 = vmatpush2.msra.mxu0 0.0
  %1024 = vmatprep.subr.mxu0 0.0
  %1025 = vmatpush2.msra.mxu0 0.0
  %1026 = vmatprep.subr.mxu0 0.0
  %1027 = vmatpush2.msra.mxu0 0.0
  %1028 = vmatprep.subr.mxu0 0.0
  %1029 = vmatpush2.msra.mxu0 0.0
  %1030 = vmatprep.subr.mxu0 0.0
  %1031 = vmatpush2.msra.mxu0 0.0
  %1032 = vmatprep.mubr.f32.mxu0 0.0
  %1033 = vmatmul.mubr.f32.gmra.mxu0 %v963
  %v1034 = vpop.f32.mrf.mxu0
  %v1035 = vadd.f32 0.0, %v1034
  %v1036 = vpop.f32.mrf.mxu0
  %1037 = vmatprep.mubr.f32.mxu0 0.0
  %1038 = vmatmul.mubr.f32.gmra.mxu0 %v966
  %v1039 = vpop.f32.mrf.mxu0
  %v1040 = vadd.f32 0.0, %v1039
  %v1041 = vpop.f32.mrf.mxu0
  %1042 = vdwg.mxu0
  %s1043 = scalar_lea.vmem %s8, 16
  %v1044 = vld [vmem:[%s1043] sm:$0xff]
  %v1045 = vld [vmem:[%s1043 + $0x8] sm:$0xff]
  %v1047 = vsel %vm388, %v1035, 0
  %v1050 = vsel %vm388, %v1040, 0
  %1052 = vmatprep.subr.mxu0 0.0
  %1053 = vmatpush1.msra.mxu0 0.0
  %1054 = vmatprep.subr.mxu0 0.0
  %1055 = vmatpush1.msra.mxu0 0.0
  %1056 = vmatprep.subr.mxu0 0.0
  %1057 = vmatpush1.msra.mxu0 0.0
  %1058 = vmatprep.subr.mxu0 0.0
  %1059 = vmatpush1.msra.mxu0 0.0
  %1060 = vmatprep.subr.mxu0 0.0
  %1061 = vmatpush1.msra.mxu0 0.0
  %1062 = vmatprep.subr.mxu0 0.0
  %1063 = vmatpush1.msra.mxu0 0.0
  %1064 = vmatprep.subr.mxu0 0.0
  %1065 = vmatpush1.msra.mxu0 0.0
  %1066 = vmatprep.subr.mxu0 0.0
  %1067 = vmatpush1.msra.mxu0 0.0
  %1068 = vmatprep.subr.mxu0 0.0
  %1069 = vmatpush1.msra.mxu0 0.0
  %1070 = vmatprep.subr.mxu0 0.0
  %1071 = vmatpush1.msra.mxu0 0.0
  %1072 = vmatprep.subr.mxu0 0.0
  %1073 = vmatpush1.msra.mxu0 0.0
  %1074 = vmatprep.subr.mxu0 0.0
  %1075 = vmatpush1.msra.mxu0 0.0
  %1076 = vmatprep.subr.mxu0 0.0
  %1077 = vmatpush1.msra.mxu0 0.0
  %1078 = vmatprep.subr.mxu0 0.0
  %1079 = vmatpush1.msra.mxu0 0.0
  %1080 = vmatprep.subr.mxu0 0.0
  %1081 = vmatpush1.msra.mxu0 %v1045
  %1082 = vmatprep.subr.mxu0 0.0
  %1083 = vmatpush1.msra.mxu0 %v1044
  %1084 = vmatprep.subr.mxu0 0.0
  %1085 = vmatpush2.msra.mxu0 0.0
  %1086 = vmatprep.subr.mxu0 0.0
  %1087 = vmatpush2.msra.mxu0 0.0
  %1088 = vmatprep.subr.mxu0 0.0
  %1089 = vmatpush2.msra.mxu0 0.0
  %1090 = vmatprep.subr.mxu0 0.0
  %1091 = vmatpush2.msra.mxu0 0.0
  %1092 = vmatprep.subr.mxu0 0.0
  %1093 = vmatpush2.msra.mxu0 0.0
  %1094 = vmatprep.subr.mxu0 0.0
  %1095 = vmatpush2.msra.mxu0 0.0
  %1096 = vmatprep.subr.mxu0 0.0
  %1097 = vmatpush2.msra.mxu0 0.0
  %1098 = vmatprep.subr.mxu0 0.0
  %1099 = vmatpush2.msra.mxu0 0.0
  %1100 = vmatprep.subr.mxu0 0.0
  %1101 = vmatpush2.msra.mxu0 0.0
  %1102 = vmatprep.subr.mxu0 0.0
  %1103 = vmatpush2.msra.mxu0 0.0
  %1104 = vmatprep.subr.mxu0 0.0
  %1105 = vmatpush2.msra.mxu0 0.0
  %1106 = vmatprep.subr.mxu0 0.0
  %1107 = vmatpush2.msra.mxu0 0.0
  %1108 = vmatprep.subr.mxu0 0.0
  %1109 = vmatpush2.msra.mxu0 0.0
  %1110 = vmatprep.subr.mxu0 0.0
  %1111 = vmatpush2.msra.mxu0 0.0
  %1112 = vmatprep.subr.mxu0 0.0
  %1113 = vmatpush2.msra.mxu0 0.0
  %1114 = vmatprep.subr.mxu0 0.0
  %1115 = vmatpush2.msra.mxu0 0.0
  %1116 = vmatprep.mubr.f32.mxu0 0.0
  %1117 = vmatmul.mubr.f32.gmra.mxu0 %v1047
  %v1118 = vpop.f32.mrf.mxu0
  %v1119 = vadd.f32 0.0, %v1118
  %v1120 = vpop.f32.mrf.mxu0
  %1121 = vmatprep.mubr.f32.mxu0 0.0
  %1122 = vmatmul.mubr.f32.gmra.mxu0 %v1050
  %v1123 = vpop.f32.mrf.mxu0
  %v1124 = vadd.f32 0.0, %v1123
  %v1125 = vpop.f32.mrf.mxu0
  %1126 = vdwg.mxu0
  %v1128 = vsel %vm388, %v575, 0
  %v1131 = vsel %vm388, %v580, 0
  %1133 = vmatprep.subr.mxu0 0.0
  %1134 = vmatpush1.msra.mxu0 0.0
  %1135 = vmatprep.subr.mxu0 0.0
  %1136 = vmatpush1.msra.mxu0 0.0
  %1137 = vmatprep.subr.mxu0 0.0
  %1138 = vmatpush1.msra.mxu0 0.0
  %1139 = vmatprep.subr.mxu0 0.0
  %1140 = vmatpush1.msra.mxu0 0.0
  %1141 = vmatprep.subr.mxu0 0.0
  %1142 = vmatpush1.msra.mxu0 0.0
  %1143 = vmatprep.subr.mxu0 0.0
  %1144 = vmatpush1.msra.mxu0 0.0
  %1145 = vmatprep.subr.mxu0 0.0
  %1146 = vmatpush1.msra.mxu0 0.0
  %1147 = vmatprep.subr.mxu0 0.0
  %1148 = vmatpush1.msra.mxu0 0.0
  %1149 = vmatprep.subr.mxu0 0.0
  %1150 = vmatpush1.msra.mxu0 0.0
  %1151 = vmatprep.subr.mxu0 0.0
  %1152 = vmatpush1.msra.mxu0 0.0
  %1153 = vmatprep.subr.mxu0 0.0
  %1154 = vmatpush1.msra.mxu0 0.0
  %1155 = vmatprep.subr.mxu0 0.0
  %1156 = vmatpush1.msra.mxu0 0.0
  %1157 = vmatprep.subr.mxu0 0.0
  %1158 = vmatpush1.msra.mxu0 0.0
  %1159 = vmatprep.subr.mxu0 0.0
  %1160 = vmatpush1.msra.mxu0 0.0
  %1161 = vmatprep.subr.mxu0 0.0
  %1162 = vmatpush1.msra.mxu0 %v584
  %1163 = vmatprep.subr.mxu0 0.0
  %1164 = vmatpush1.msra.mxu0 %v583
  %1165 = vmatprep.subr.mxu0 0.0
  %1166 = vmatpush2.msra.mxu0 0.0
  %1167 = vmatprep.subr.mxu0 0.0
  %1168 = vmatpush2.msra.mxu0 0.0
  %1169 = vmatprep.subr.mxu0 0.0
  %1170 = vmatpush2.msra.mxu0 0.0
  %1171 = vmatprep.subr.mxu0 0.0
  %1172 = vmatpush2.msra.mxu0 0.0
  %1173 = vmatprep.subr.mxu0 0.0
  %1174 = vmatpush2.msra.mxu0 0.0
  %1175 = vmatprep.subr.mxu0 0.0
  %1176 = vmatpush2.msra.mxu0 0.0
  %1177 = vmatprep.subr.mxu0 0.0
  %1178 = vmatpush2.msra.mxu0 0.0
  %1179 = vmatprep.subr.mxu0 0.0
  %1180 = vmatpush2.msra.mxu0 0.0
  %1181 = vmatprep.subr.mxu0 0.0
  %1182 = vmatpush2.msra.mxu0 0.0
  %1183 = vmatprep.subr.mxu0 0.0
  %1184 = vmatpush2.msra.mxu0 0.0
  %1185 = vmatprep.subr.mxu0 0.0
  %1186 = vmatpush2.msra.mxu0 0.0
  %1187 = vmatprep.subr.mxu0 0.0
  %1188 = vmatpush2.msra.mxu0 0.0
  %1189 = vmatprep.subr.mxu0 0.0
  %1190 = vmatpush2.msra.mxu0 0.0
  %1191 = vmatprep.subr.mxu0 0.0
  %1192 = vmatpush2.msra.mxu0 0.0
  %1193 = vmatprep.subr.mxu0 0.0
  %1194 = vmatpush2.msra.mxu0 0.0
  %1195 = vmatprep.subr.mxu0 0.0
  %1196 = vmatpush2.msra.mxu0 0.0
  %1197 = vmatprep.mubr.f32.mxu0 0.0
  %1198 = vmatmul.mubr.f32.gmra.mxu0 %v1128
  %v1199 = vpop.f32.mrf.mxu0
  %v1200 = vadd.f32 %v1119, %v1199
  %v1201 = vpop.f32.mrf.mxu0
  %1202 = vmatprep.mubr.f32.mxu0 0.0
  %1203 = vmatmul.mubr.f32.gmra.mxu0 %v1131
  %v1204 = vpop.f32.mrf.mxu0
  %v1205 = vadd.f32 %v1124, %v1204
  %v1206 = vpop.f32.mrf.mxu0
  %1207 = vdwg.mxu0
  %v1208 = vld [vmem:[%s9] sm:$0x1]
  %v1210 = vlaneseq
  %v1211 = vshrl.u32 %v1210, 7
  %v1212 = vsub.s32 0, %v1211
  %v1213 = vrot.slane %v1208, %v1212
  %v1215 = vadd.f32 %v1200, %v1213
  %v1216 = vadd.f32 %v1205, %v1213
  %v1217 = vadd.f32 %v74, %v1215
  %v1218 = vadd.f32 %v75, %v1216
  %v1219 = vld [vmem:[%s11] sm:$0x1]
  %v1220 = vld [vmem:[%s12] sm:$0x1]
  %v1221 = vsel %vm134, %v1217, 0.0
  %1222 = vadd.xlane.f32.xlu0 %v1221
  %v1223 = vpop.xlane.xlu0 %1222
  %v1224 = vsel %vm134, %v1218, 0.0
  %1225 = vadd.xlane.f32.xlu0 %v1224
  %v1226 = vpop.xlane.xlu0 %1225
  %v1227 = vrcp.pop 32.0
  %v1228 = vmul.f32 %v1223, %v1227
  %v1229 = vmul.f32 %v1226, %v1227
  %v1230 = vsub.f32 %v1217, %v1228
  %v1231 = vsub.f32 %v1218, %v1229
  %v1232 = vmul.f32 %v1230, %v1230
  %v1233 = vmul.f32 %v1231, %v1231
  %v1234 = vsel %vm134, %v1232, 0.0
  %1235 = vadd.xlane.f32.xlu0 %v1234
  %v1236 = vpop.xlane.xlu0 %1235
  %v1237 = vsel %vm134, %v1233, 0.0
  %1238 = vadd.xlane.f32.xlu0 %v1237
  %v1239 = vpop.xlane.xlu0 %1238
  %v1240 = vmul.f32 %v1236, %v1227
  %v1241 = vmul.f32 %v1239, %v1227
  %v1242 = vadd.f32 %v1240, 1e-05
  %v1243 = vadd.f32 %v1241, 1e-05
  %v1244 = vrsqrt.pop %v1242
  %v1245 = vrsqrt.pop %v1243
  %v1246 = vmul.f32 %v1230, %v1244
  %v1247 = vmul.f32 %v1231, %v1245
  %v1249 = vlaneseq
  %v1250 = vshrl.u32 %v1249, 7
  %v1251 = vsub.s32 0, %v1250
  %v1252 = vrot.slane %v1219, %v1251
  %v1254 = vmul.f32 %v1246, %v1252
  %v1255 = vmul.f32 %v1247, %v1252
  %v1257 = vlaneseq
  %v1258 = vshrl.u32 %v1257, 7
  %v1259 = vsub.s32 0, %v1258
  %v1260 = vrot.slane %v1220, %v1259
  %v1262 = vadd.f32 %v1254, %v1260
  %v1263 = vadd.f32 %v1255, %v1260
  %v1264 = vld [vmem:[%s10] sm:$0x1]
  %v1266 = vlaneseq
  %v1267 = vshrl.u32 %v1266, 7
  %v1268 = vsub.s32 0, %v1267
  %v1269 = vrot.slane %v1264, %v1268
  %v1271 = vadd.f32 %v1262, %v1269
  %v1272 = vadd.f32 %v1263, %v1269
  %v1273 = vld [vmem:[%s13] sm:$0x1]
  %v1274 = vld [vmem:[%s14] sm:$0x1]
  %v1275 = vsel %vm134, %v1271, 0.0
  %1276 = vadd.xlane.f32.xlu0 %v1275
  %v1277 = vpop.xlane.xlu0 %1276
  %v1278 = vsel %vm134, %v1272, 0.0
  %1279 = vadd.xlane.f32.xlu0 %v1278
  %v1280 = vpop.xlane.xlu0 %1279
  %v1281 = vmul.f32 %v1277, %v1227
  %v1282 = vmul.f32 %v1280, %v1227
  %v1283 = vsub.f32 %v1271, %v1281
  %v1284 = vsub.f32 %v1272, %v1282
  %v1285 = vmul.f32 %v1283, %v1283
  %v1286 = vmul.f32 %v1284, %v1284
  %v1287 = vsel %vm134, %v1285, 0.0
  %1288 = vadd.xlane.f32.xlu0 %v1287
  %v1289 = vpop.xlane.xlu0 %1288
  %v1290 = vsel %vm134, %v1286, 0.0
  %1291 = vadd.xlane.f32.xlu0 %v1290
  %v1292 = vpop.xlane.xlu0 %1291
  %v1293 = vmul.f32 %v1289, %v1227
  %v1294 = vmul.f32 %v1292, %v1227
  %v1295 = vadd.f32 %v1293, 1e-05
  %v1296 = vadd.f32 %v1294, 1e-05
  %v1297 = vrsqrt.pop %v1295
  %v1298 = vrsqrt.pop %v1296
  %v1299 = vmul.f32 %v1283, %v1297
  %v1300 = vmul.f32 %v1284, %v1298
  %v1302 = vlaneseq
  %v1303 = vshrl.u32 %v1302, 7
  %v1304 = vsub.s32 0, %v1303
  %v1305 = vrot.slane %v1273, %v1304
  %v1307 = vmul.f32 %v1299, %v1305
  %v1308 = vmul.f32 %v1300, %v1305
  %v1310 = vlaneseq
  %v1311 = vshrl.u32 %v1310, 7
  %v1312 = vsub.s32 0, %v1311
  %v1313 = vrot.slane %v1274, %v1312
  %v1315 = vadd.f32 %v1307, %v1313
  %v1316 = vadd.f32 %v1308, %v1313
  %v1317 = vld [vmem:[%s15] sm:$0xff]
  %v1318 = vld [vmem:[%s15 + $0x8] sm:$0xff]
  %v1319 = vld [vmem:[%s15 + $0x10] sm:$0xff]
  %v1320 = vld [vmem:[%s15 + $0x18] sm:$0xff]
  %v1321 = vld [vmem:[%s16] sm:$0x1]
  %v1323 = vlaneseq
  %v1324 = vshrl.u32 %v1323, 7
  %v1325 = vsub.s32 0, %v1324
  %v1326 = vrot.slane %v1321, %v1325
  %v1329 = vsel %vm134, %v1315, 0
  %v1332 = vsel %vm134, %v1316, 0
  %1334 = vmatprep.subr.mxu0 0.0
  %1335 = vmatpush1.msra.mxu0 0.0
  %1336 = vmatprep.subr.mxu0 0.0
  %1337 = vmatpush1.msra.mxu0 0.0
  %1338 = vmatprep.subr.mxu0 0.0
  %1339 = vmatpush1.msra.mxu0 0.0
  %1340 = vmatprep.subr.mxu0 0.0
  %1341 = vmatpush1.msra.mxu0 0.0
  %1342 = vmatprep.subr.mxu0 0.0
  %1343 = vmatpush1.msra.mxu0 0.0
  %1344 = vmatprep.subr.mxu0 0.0
  %1345 = vmatpush1.msra.mxu0 0.0
  %1346 = vmatprep.subr.mxu0 0.0
  %1347 = vmatpush1.msra.mxu0 0.0
  %1348 = vmatprep.subr.mxu0 0.0
  %1349 = vmatpush1.msra.mxu0 0.0
  %1350 = vmatprep.subr.mxu0 0.0
  %1351 = vmatpush1.msra.mxu0 0.0
  %1352 = vmatprep.subr.mxu0 0.0
  %1353 = vmatpush1.msra.mxu0 0.0
  %1354 = vmatprep.subr.mxu0 0.0
  %1355 = vmatpush1.msra.mxu0 0.0
  %1356 = vmatprep.subr.mxu0 0.0
  %1357 = vmatpush1.msra.mxu0 0.0
  %1358 = vmatprep.subr.mxu0 0.0
  %1359 = vmatpush1.msra.mxu0 %v1320
  %1360 = vmatprep.subr.mxu0 0.0
  %1361 = vmatpush1.msra.mxu0 %v1319
  %1362 = vmatprep.subr.mxu0 0.0
  %1363 = vmatpush1.msra.mxu0 %v1318
  %1364 = vmatprep.subr.mxu0 0.0
  %1365 = vmatpush1.msra.mxu0 %v1317
  %1366 = vmatprep.subr.mxu0 0.0
  %1367 = vmatpush2.msra.mxu0 0.0
  %1368 = vmatprep.subr.mxu0 0.0
  %1369 = vmatpush2.msra.mxu0 0.0
  %1370 = vmatprep.subr.mxu0 0.0
  %1371 = vmatpush2.msra.mxu0 0.0
  %1372 = vmatprep.subr.mxu0 0.0
  %1373 = vmatpush2.msra.mxu0 0.0
  %1374 = vmatprep.subr.mxu0 0.0
  %1375 = vmatpush2.msra.mxu0 0.0
  %1376 = vmatprep.subr.mxu0 0.0
  %1377 = vmatpush2.msra.mxu0 0.0
  %1378 = vmatprep.subr.mxu0 0.0
  %1379 = vmatpush2.msra.mxu0 0.0
  %1380 = vmatprep.subr.mxu0 0.0
  %1381 = vmatpush2.msra.mxu0 0.0
  %1382 = vmatprep.subr.mxu0 0.0
  %1383 = vmatpush2.msra.mxu0 0.0
  %1384 = vmatprep.subr.mxu0 0.0
  %1385 = vmatpush2.msra.mxu0 0.0
  %1386 = vmatprep.subr.mxu0 0.0
  %1387 = vmatpush2.msra.mxu0 0.0
  %1388 = vmatprep.subr.mxu0 0.0
  %1389 = vmatpush2.msra.mxu0 0.0
  %1390 = vmatprep.subr.mxu0 0.0
  %1391 = vmatpush2.msra.mxu0 0.0
  %1392 = vmatprep.subr.mxu0 0.0
  %1393 = vmatpush2.msra.mxu0 0.0
  %1394 = vmatprep.subr.mxu0 0.0
  %1395 = vmatpush2.msra.mxu0 0.0
  %1396 = vmatprep.subr.mxu0 0.0
  %1397 = vmatpush2.msra.mxu0 0.0
  %1398 = vmatprep.mubr.f32.mxu0 0.0
  %1399 = vmatmul.mubr.f32.gmra.mxu0 %v1329
  %v1400 = vpop.f32.mrf.mxu0
  %v1401 = vadd.f32 %v1326, %v1400
  %v1402 = vpop.f32.mrf.mxu0
  %1403 = vmatprep.mubr.f32.mxu0 0.0
  %1404 = vmatmul.mubr.f32.gmra.mxu0 %v1332
  %v1405 = vpop.f32.mrf.mxu0
  %v1406 = vadd.f32 %v1326, %v1405
  %v1407 = vpop.f32.mrf.mxu0
  %1408 = vdwg.mxu0
  %v1409 = vmax.f32 %v1401, 0.0
  %v1410 = vmax.f32 %v1406, 0.0
  %v1411 = vld [vmem:[%s17] sm:$0xff]
  %v1412 = vld [vmem:[%s17 + $0x8] sm:$0xff]
  %v1413 = vld [vmem:[%s17 + $0x10] sm:$0xff]
  %v1414 = vld [vmem:[%s17 + $0x18] sm:$0xff]
  %v1415 = vld [vmem:[%s17 + $0x20] sm:$0xff]
  %v1416 = vld [vmem:[%s17 + $0x28] sm:$0xff]
  %v1417 = vld [vmem:[%s17 + $0x30] sm:$0xff]
  %v1418 = vld [vmem:[%s17 + $0x38] sm:$0xff]
  %v1419 = vld [vmem:[%s18] sm:$0x1]
  %v1421 = vlaneseq
  %v1422 = vshrl.u32 %v1421, 7
  %v1423 = vsub.s32 0, %v1422
  %v1424 = vrot.slane %v1419, %v1423
  %vm1426 = vcmask 523264
  %v1428 = vsel %vm1426, %v1409, 0
  %v1431 = vsel %vm1426, %v1410, 0
  %1433 = vmatprep.subr.mxu0 0.0
  %1434 = vmatpush1.msra.mxu0 0.0
  %1435 = vmatprep.subr.mxu0 0.0
  %1436 = vmatpush1.msra.mxu0 0.0
  %1437 = vmatprep.subr.mxu0 0.0
  %1438 = vmatpush1.msra.mxu0 0.0
  %1439 = vmatprep.subr.mxu0 0.0
  %1440 = vmatpush1.msra.mxu0 0.0
  %1441 = vmatprep.subr.mxu0 0.0
  %1442 = vmatpush1.msra.mxu0 0.0
  %1443 = vmatprep.subr.mxu0 0.0
  %1444 = vmatpush1.msra.mxu0 0.0
  %1445 = vmatprep.subr.mxu0 0.0
  %1446 = vmatpush1.msra.mxu0 0.0
  %1447 = vmatprep.subr.mxu0 0.0
  %1448 = vmatpush1.msra.mxu0 0.0
  %1449 = vmatprep.subr.mxu0 0.0
  %1450 = vmatpush1.msra.mxu0 %v1418
  %1451 = vmatprep.subr.mxu0 0.0
  %1452 = vmatpush1.msra.mxu0 %v1417
  %1453 = vmatprep.subr.mxu0 0.0
  %1454 = vmatpush1.msra.mxu0 %v1416
  %1455 = vmatprep.subr.mxu0 0.0
  %1456 = vmatpush1.msra.mxu0 %v1415
  %1457 = vmatprep.subr.mxu0 0.0
  %1458 = vmatpush1.msra.mxu0 %v1414
  %1459 = vmatprep.subr.mxu0 0.0
  %1460 = vmatpush1.msra.mxu0 %v1413
  %1461 = vmatprep.subr.mxu0 0.0
  %1462 = vmatpush1.msra.mxu0 %v1412
  %1463 = vmatprep.subr.mxu0 0.0
  %1464 = vmatpush1.msra.mxu0 %v1411
  %1465 = vmatprep.subr.mxu0 0.0
  %1466 = vmatpush2.msra.mxu0 0.0
  %1467 = vmatprep.subr.mxu0 0.0
  %1468 = vmatpush2.msra.mxu0 0.0
  %1469 = vmatprep.subr.mxu0 0.0
  %1470 = vmatpush2.msra.mxu0 0.0
  %1471 = vmatprep.subr.mxu0 0.0
  %1472 = vmatpush2.msra.mxu0 0.0
  %1473 = vmatprep.subr.mxu0 0.0
  %1474 = vmatpush2.msra.mxu0 0.0
  %1475 = vmatprep.subr.mxu0 0.0
  %1476 = vmatpush2.msra.mxu0 0.0
  %1477 = vmatprep.subr.mxu0 0.0
  %1478 = vmatpush2.msra.mxu0 0.0
  %1479 = vmatprep.subr.mxu0 0.0
  %1480 = vmatpush2.msra.mxu0 0.0
  %1481 = vmatprep.subr.mxu0 0.0
  %1482 = vmatpush2.msra.mxu0 0.0
  %1483 = vmatprep.subr.mxu0 0.0
  %1484 = vmatpush2.msra.mxu0 0.0
  %1485 = vmatprep.subr.mxu0 0.0
  %1486 = vmatpush2.msra.mxu0 0.0
  %1487 = vmatprep.subr.mxu0 0.0
  %1488 = vmatpush2.msra.mxu0 0.0
  %1489 = vmatprep.subr.mxu0 0.0
  %1490 = vmatpush2.msra.mxu0 0.0
  %1491 = vmatprep.subr.mxu0 0.0
  %1492 = vmatpush2.msra.mxu0 0.0
  %1493 = vmatprep.subr.mxu0 0.0
  %1494 = vmatpush2.msra.mxu0 0.0
  %1495 = vmatprep.subr.mxu0 0.0
  %1496 = vmatpush2.msra.mxu0 0.0
  %1497 = vmatprep.mubr.f32.mxu0 0.0
  %1498 = vmatmul.mubr.f32.gmra.mxu0 %v1428
  %v1499 = vpop.f32.mrf.mxu0
  %v1500 = vadd.f32 %v1424, %v1499
  %v1501 = vpop.f32.mrf.mxu0
  %1502 = vmatprep.mubr.f32.mxu0 0.0
  %1503 = vmatmul.mubr.f32.gmra.mxu0 %v1431
  %v1504 = vpop.f32.mrf.mxu0
  %v1505 = vadd.f32 %v1424, %v1504
  %v1506 = vpop.f32.mrf.mxu0
  %1507 = vdwg.mxu0
  %v1508 = vadd.f32 %v1315, %v1500
  %v1509 = vadd.f32 %v1316, %v1505
  %v1510 = vld [vmem:[%s19] sm:$0x1]
  %v1511 = vld [vmem:[%s20] sm:$0x1]
  %v1512 = vsel %vm134, %v1508, 0.0
  %1513 = vadd.xlane.f32.xlu0 %v1512
  %v1514 = vpop.xlane.xlu0 %1513
  %v1515 = vsel %vm134, %v1509, 0.0
  %1516 = vadd.xlane.f32.xlu0 %v1515
  %v1517 = vpop.xlane.xlu0 %1516
  %v1518 = vmul.f32 %v1514, %v1227
  %v1519 = vmul.f32 %v1517, %v1227
  %v1520 = vsub.f32 %v1508, %v1518
  %v1521 = vsub.f32 %v1509, %v1519
  %v1522 = vmul.f32 %v1520, %v1520
  %v1523 = vmul.f32 %v1521, %v1521
  %v1524 = vsel %vm134, %v1522, 0.0
  %1525 = vadd.xlane.f32.xlu0 %v1524
  %v1526 = vpop.xlane.xlu0 %1525
  %v1527 = vsel %vm134, %v1523, 0.0
  %1528 = vadd.xlane.f32.xlu0 %v1527
  %v1529 = vpop.xlane.xlu0 %1528
  %v1530 = vmul.f32 %v1526, %v1227
  %v1531 = vmul.f32 %v1529, %v1227
  %v1532 = vadd.f32 %v1530, 1e-05
  %v1533 = vadd.f32 %v1531, 1e-05
  %v1534 = vrsqrt.pop %v1532
  %v1535 = vrsqrt.pop %v1533
  %v1536 = vmul.f32 %v1520, %v1534
  %v1537 = vmul.f32 %v1521, %v1535
  %v1539 = vlaneseq
  %v1540 = vshrl.u32 %v1539, 7
  %v1541 = vsub.s32 0, %v1540
  %v1542 = vrot.slane %v1510, %v1541
  %v1544 = vmul.f32 %v1536, %v1542
  %v1545 = vmul.f32 %v1537, %v1542
  %v1547 = vlaneseq
  %v1548 = vshrl.u32 %v1547, 7
  %v1549 = vsub.s32 0, %v1548
  %v1550 = vrot.slane %v1511, %v1549
  %v1552 = vadd.f32 %v1544, %v1550
  %v1553 = vadd.f32 %v1545, %v1550
  %s1554 = scalar_lea.vmem %s2, 64
  %v1555 = vld [vmem:[%s1554] sm:$0xff]
  %v1556 = vld [vmem:[%s1554 + $0x8] sm:$0xff]
  %v1557 = vld [vmem:[%s1554 + $0x10] sm:$0xff]
  %v1558 = vld [vmem:[%s1554 + $0x18] sm:$0xff]
  %s1559 = scalar_lea.vmem %s5, 2
  %v1560 = vld [vmem:[%s1559] sm:$0x1]
  %v1562 = vlaneseq
  %v1563 = vshrl.u32 %v1562, 7
  %v1564 = vsub.s32 0, %v1563
  %v1565 = vrot.slane %v1560, %v1564
  %v1568 = vsel %vm134, %v1552, 0
  %v1571 = vsel %vm134, %v1553, 0
  %1573 = vmatprep.subr.mxu0 0.0
  %1574 = vmatpush1.msra.mxu0 0.0
  %1575 = vmatprep.subr.mxu0 0.0
  %1576 = vmatpush1.msra.mxu0 0.0
  %1577 = vmatprep.subr.mxu0 0.0
  %1578 = vmatpush1.msra.mxu0 0.0
  %1579 = vmatprep.subr.mxu0 0.0
  %1580 = vmatpush1.msra.mxu0 0.0
  %1581 = vmatprep.subr.mxu0 0.0
  %1582 = vmatpush1.msra.mxu0 0.0
  %1583 = vmatprep.subr.mxu0 0.0
  %1584 = vmatpush1.msra.mxu0 0.0
  %1585 = vmatprep.subr.mxu0 0.0
  %1586 = vmatpush1.msra.mxu0 0.0
  %1587 = vmatprep.subr.mxu0 0.0
  %1588 = vmatpush1.msra.mxu0 0.0
  %1589 = vmatprep.subr.mxu0 0.0
  %1590 = vmatpush1.msra.mxu0 0.0
  %1591 = vmatprep.subr.mxu0 0.0
  %1592 = vmatpush1.msra.mxu0 0.0
  %1593 = vmatprep.subr.mxu0 0.0
  %1594 = vmatpush1.msra.mxu0 0.0
  %1595 = vmatprep.subr.mxu0 0.0
  %1596 = vmatpush1.msra.mxu0 0.0
  %1597 = vmatprep.subr.mxu0 0.0
  %1598 = vmatpush1.msra.mxu0 %v1558
  %1599 = vmatprep.subr.mxu0 0.0
  %1600 = vmatpush1.msra.mxu0 %v1557
  %1601 = vmatprep.subr.mxu0 0.0
  %1602 = vmatpush1.msra.mxu0 %v1556
  %1603 = vmatprep.subr.mxu0 0.0
  %1604 = vmatpush1.msra.mxu0 %v1555
  %1605 = vmatprep.subr.mxu0 0.0
  %1606 = vmatpush2.msra.mxu0 0.0
  %1607 = vmatprep.subr.mxu0 0.0
  %1608 = vmatpush2.msra.mxu0 0.0
  %1609 = vmatprep.subr.mxu0 0.0
  %1610 = vmatpush2.msra.mxu0 0.0
  %1611 = vmatprep.subr.mxu0 0.0
  %1612 = vmatpush2.msra.mxu0 0.0
  %1613 = vmatprep.subr.mxu0 0.0
  %1614 = vmatpush2.msra.mxu0 0.0
  %1615 = vmatprep.subr.mxu0 0.0
  %1616 = vmatpush2.msra.mxu0 0.0
  %1617 = vmatprep.subr.mxu0 0.0
  %1618 = vmatpush2.msra.mxu0 0.0
  %1619 = vmatprep.subr.mxu0 0.0
  %1620 = vmatpush2.msra.mxu0 0.0
  %1621 = vmatprep.subr.mxu0 0.0
  %1622 = vmatpush2.msra.mxu0 0.0
  %1623 = vmatprep.subr.mxu0 0.0
  %1624 = vmatpush2.msra.mxu0 0.0
  %1625 = vmatprep.subr.mxu0 0.0
  %1626 = vmatpush2.msra.mxu0 0.0
  %1627 = vmatprep.subr.mxu0 0.0
  %1628 = vmatpush2.msra.mxu0 0.0
  %1629 = vmatprep.subr.mxu0 0.0
  %1630 = vmatpush2.msra.mxu0 0.0
  %1631 = vmatprep.subr.mxu0 0.0
  %1632 = vmatpush2.msra.mxu0 0.0
  %1633 = vmatprep.subr.mxu0 0.0
  %1634 = vmatpush2.msra.mxu0 0.0
  %1635 = vmatprep.subr.mxu0 0.0
  %1636 = vmatpush2.msra.mxu0 0.0
  %1637 = vmatprep.mubr.f32.mxu0 0.0
  %1638 = vmatmul.mubr.f32.gmra.mxu0 %v1568
  %v1639 = vpop.f32.mrf.mxu0
  %v1640 = vadd.f32 %v1565, %v1639
  %v1641 = vpop.f32.mrf.mxu0
  %1642 = vmatprep.mubr.f32.mxu0 0.0
  %1643 = vmatmul.mubr.f32.gmra.mxu0 %v1571
  %v1644 = vpop.f32.mrf.mxu0
  %v1645 = vadd.f32 %v1565, %v1644
  %v1646 = vpop.f32.mrf.mxu0
  %1647 = vdwg.mxu0
  %s1648 = scalar_lea.vmem %s3, 64
  %v1649 = vld [vmem:[%s1648] sm:$0xff]
  %v1650 = vld [vmem:[%s1648 + $0x8] sm:$0xff]
  %v1651 = vld [vmem:[%s1648 + $0x10] sm:$0xff]
  %v1652 = vld [vmem:[%s1648 + $0x18] sm:$0xff]
  %s1653 = scalar_lea.vmem %s6, 2
  %v1654 = vld [vmem:[%s1653] sm:$0x1]
  %v1656 = vlaneseq
  %v1657 = vshrl.u32 %v1656, 7
  %v1658 = vsub.s32 0, %v1657
  %v1659 = vrot.slane %v1654, %v1658
  %1661 = vmatprep.subr.mxu0 0.0
  %1662 = vmatpush1.msra.mxu0 0.0
  %1663 = vmatprep.subr.mxu0 0.0
  %1664 = vmatpush1.msra.mxu0 0.0
  %1665 = vmatprep.subr.mxu0 0.0
  %1666 = vmatpush1.msra.mxu0 0.0
  %1667 = vmatprep.subr.mxu0 0.0
  %1668 = vmatpush1.msra.mxu0 0.0
  %1669 = vmatprep.subr.mxu0 0.0
  %1670 = vmatpush1.msra.mxu0 0.0
  %1671 = vmatprep.subr.mxu0 0.0
  %1672 = vmatpush1.msra.mxu0 0.0
  %1673 = vmatprep.subr.mxu0 0.0
  %1674 = vmatpush1.msra.mxu0 0.0
  %1675 = vmatprep.subr.mxu0 0.0
  %1676 = vmatpush1.msra.mxu0 0.0
  %1677 = vmatprep.subr.mxu0 0.0
  %1678 = vmatpush1.msra.mxu0 0.0
  %1679 = vmatprep.subr.mxu0 0.0
  %1680 = vmatpush1.msra.mxu0 0.0
  %1681 = vmatprep.subr.mxu0 0.0
  %1682 = vmatpush1.msra.mxu0 0.0
  %1683 = vmatprep.subr.mxu0 0.0
  %1684 = vmatpush1.msra.mxu0 0.0
  %1685 = vmatprep.subr.mxu0 0.0
  %1686 = vmatpush1.msra.mxu0 %v1652
  %1687 = vmatprep.subr.mxu0 0.0
  %1688 = vmatpush1.msra.mxu0 %v1651
  %1689 = vmatprep.subr.mxu0 0.0
  %1690 = vmatpush1.msra.mxu0 %v1650
  %1691 = vmatprep.subr.mxu0 0.0
  %1692 = vmatpush1.msra.mxu0 %v1649
  %1693 = vmatprep.subr.mxu0 0.0
  %1694 = vmatpush2.msra.mxu0 0.0
  %1695 = vmatprep.subr.mxu0 0.0
  %1696 = vmatpush2.msra.mxu0 0.0
  %1697 = vmatprep.subr.mxu0 0.0
  %1698 = vmatpush2.msra.mxu0 0.0
  %1699 = vmatprep.subr.mxu0 0.0
  %1700 = vmatpush2.msra.mxu0 0.0
  %1701 = vmatprep.subr.mxu0 0.0
  %1702 = vmatpush2.msra.mxu0 0.0
  %1703 = vmatprep.subr.mxu0 0.0
  %1704 = vmatpush2.msra.mxu0 0.0
  %1705 = vmatprep.subr.mxu0 0.0
  %1706 = vmatpush2.msra.mxu0 0.0
  %1707 = vmatprep.subr.mxu0 0.0
  %1708 = vmatpush2.msra.mxu0 0.0
  %1709 = vmatprep.subr.mxu0 0.0
  %1710 = vmatpush2.msra.mxu0 0.0
  %1711 = vmatprep.subr.mxu0 0.0
  %1712 = vmatpush2.msra.mxu0 0.0
  %1713 = vmatprep.subr.mxu0 0.0
  %1714 = vmatpush2.msra.mxu0 0.0
  %1715 = vmatprep.subr.mxu0 0.0
  %1716 = vmatpush2.msra.mxu0 0.0
  %1717 = vmatprep.subr.mxu0 0.0
  %1718 = vmatpush2.msra.mxu0 0.0
  %1719 = vmatprep.subr.mxu0 0.0
  %1720 = vmatpush2.msra.mxu0 0.0
  %1721 = vmatprep.subr.mxu0 0.0
  %1722 = vmatpush2.msra.mxu0 0.0
  %1723 = vmatprep.subr.mxu0 0.0
  %1724 = vmatpush2.msra.mxu0 0.0
  %1725 = vmatprep.mubr.f32.mxu0 0.0
  %1726 = vmatmul.mubr.f32.gmra.mxu0 %v1568
  %v1727 = vpop.f32.mrf.mxu0
  %v1728 = vadd.f32 %v1659, %v1727
  %v1729 = vpop.f32.mrf.mxu0
  %1730 = vmatprep.mubr.f32.mxu0 0.0
  %1731 = vmatmul.mubr.f32.gmra.mxu0 %v1571
  %v1732 = vpop.f32.mrf.mxu0
  %v1733 = vadd.f32 %v1659, %v1732
  %v1734 = vpop.f32.mrf.mxu0
  %1735 = vdwg.mxu0
  %s1736 = scalar_lea.vmem %s4, 64
  %v1737 = vld [vmem:[%s1736] sm:$0xff]
  %v1738 = vld [vmem:[%s1736 + $0x8] sm:$0xff]
  %v1739 = vld [vmem:[%s1736 + $0x10] sm:$0xff]
  %v1740 = vld [vmem:[%s1736 + $0x18] sm:$0xff]
  %s1741 = scalar_lea.vmem %s7, 2
  %v1742 = vld [vmem:[%s1741] sm:$0x1]
  %v1744 = vlaneseq
  %v1745 = vshrl.u32 %v1744, 7
  %v1746 = vsub.s32 0, %v1745
  %v1747 = vrot.slane %v1742, %v1746
  %1749 = vmatprep.subr.mxu0 0.0
  %1750 = vmatpush1.msra.mxu0 0.0
  %1751 = vmatprep.subr.mxu0 0.0
  %1752 = vmatpush1.msra.mxu0 0.0
  %1753 = vmatprep.subr.mxu0 0.0
  %1754 = vmatpush1.msra.mxu0 0.0
  %1755 = vmatprep.subr.mxu0 0.0
  %1756 = vmatpush1.msra.mxu0 0.0
  %1757 = vmatprep.subr.mxu0 0.0
  %1758 = vmatpush1.msra.mxu0 0.0
  %1759 = vmatprep.subr.mxu0 0.0
  %1760 = vmatpush1.msra.mxu0 0.0
  %1761 = vmatprep.subr.mxu0 0.0
  %1762 = vmatpush1.msra.mxu0 0.0
  %1763 = vmatprep.subr.mxu0 0.0
  %1764 = vmatpush1.msra.mxu0 0.0
  %1765 = vmatprep.subr.mxu0 0.0
  %1766 = vmatpush1.msra.mxu0 0.0
  %1767 = vmatprep.subr.mxu0 0.0
  %1768 = vmatpush1.msra.mxu0 0.0
  %1769 = vmatprep.subr.mxu0 0.0
  %1770 = vmatpush1.msra.mxu0 0.0
  %1771 = vmatprep.subr.mxu0 0.0
  %1772 = vmatpush1.msra.mxu0 0.0
  %1773 = vmatprep.subr.mxu0 0.0
  %1774 = vmatpush1.msra.mxu0 %v1740
  %1775 = vmatprep.subr.mxu0 0.0
  %1776 = vmatpush1.msra.mxu0 %v1739
  %1777 = vmatprep.subr.mxu0 0.0
  %1778 = vmatpush1.msra.mxu0 %v1738
  %1779 = vmatprep.subr.mxu0 0.0
  %1780 = vmatpush1.msra.mxu0 %v1737
  %1781 = vmatprep.subr.mxu0 0.0
  %1782 = vmatpush2.msra.mxu0 0.0
  %1783 = vmatprep.subr.mxu0 0.0
  %1784 = vmatpush2.msra.mxu0 0.0
  %1785 = vmatprep.subr.mxu0 0.0
  %1786 = vmatpush2.msra.mxu0 0.0
  %1787 = vmatprep.subr.mxu0 0.0
  %1788 = vmatpush2.msra.mxu0 0.0
  %1789 = vmatprep.subr.mxu0 0.0
  %1790 = vmatpush2.msra.mxu0 0.0
  %1791 = vmatprep.subr.mxu0 0.0
  %1792 = vmatpush2.msra.mxu0 0.0
  %1793 = vmatprep.subr.mxu0 0.0
  %1794 = vmatpush2.msra.mxu0 0.0
  %1795 = vmatprep.subr.mxu0 0.0
  %1796 = vmatpush2.msra.mxu0 0.0
  %1797 = vmatprep.subr.mxu0 0.0
  %1798 = vmatpush2.msra.mxu0 0.0
  %1799 = vmatprep.subr.mxu0 0.0
  %1800 = vmatpush2.msra.mxu0 0.0
  %1801 = vmatprep.subr.mxu0 0.0
  %1802 = vmatpush2.msra.mxu0 0.0
  %1803 = vmatprep.subr.mxu0 0.0
  %1804 = vmatpush2.msra.mxu0 0.0
  %1805 = vmatprep.subr.mxu0 0.0
  %1806 = vmatpush2.msra.mxu0 0.0
  %1807 = vmatprep.subr.mxu0 0.0
  %1808 = vmatpush2.msra.mxu0 0.0
  %1809 = vmatprep.subr.mxu0 0.0
  %1810 = vmatpush2.msra.mxu0 0.0
  %1811 = vmatprep.subr.mxu0 0.0
  %1812 = vmatpush2.msra.mxu0 0.0
  %1813 = vmatprep.mubr.f32.mxu0 0.0
  %1814 = vmatmul.mubr.f32.gmra.mxu0 %v1568
  %v1815 = vpop.f32.mrf.mxu0
  %v1816 = vadd.f32 %v1747, %v1815
  %v1817 = vpop.f32.mrf.mxu0
  %1818 = vmatprep.mubr.f32.mxu0 0.0
  %1819 = vmatmul.mubr.f32.gmra.mxu0 %v1571
  %v1820 = vpop.f32.mrf.mxu0
  %v1821 = vadd.f32 %v1747, %v1820
  %v1822 = vpop.f32.mrf.mxu0
  %1823 = vdwg.mxu0
  %v1825 = vsel %vm388, %v1640, 0
  %v1828 = vsel %vm388, %v1645, 0
  %v1831 = vsel %vm388, %v1728, 0
  %v1834 = vsel %vm388, %v1733, 0
  %1836 = vmatprep.subr.mxu0 0.0
  %1837 = vmatpush1.xpose.msra.mxu0 0.0
  %1838 = vmatprep.subr.mxu0 0.0
  %1839 = vmatpush1.xpose.msra.mxu0 0.0
  %1840 = vmatprep.subr.mxu0 0.0
  %1841 = vmatpush1.xpose.msra.mxu0 0.0
  %1842 = vmatprep.subr.mxu0 0.0
  %1843 = vmatpush1.xpose.msra.mxu0 0.0
  %1844 = vmatprep.subr.mxu0 0.0
  %1845 = vmatpush1.xpose.msra.mxu0 0.0
  %1846 = vmatprep.subr.mxu0 0.0
  %1847 = vmatpush1.xpose.msra.mxu0 0.0
  %1848 = vmatprep.subr.mxu0 0.0
  %1849 = vmatpush1.xpose.msra.mxu0 0.0
  %1850 = vmatprep.subr.mxu0 0.0
  %1851 = vmatpush1.xpose.msra.mxu0 0.0
  %1852 = vmatprep.subr.mxu0 0.0
  %1853 = vmatpush1.xpose.msra.mxu0 0.0
  %1854 = vmatprep.subr.mxu0 0.0
  %1855 = vmatpush1.xpose.msra.mxu0 0.0
  %1856 = vmatprep.subr.mxu0 0.0
  %1857 = vmatpush1.xpose.msra.mxu0 0.0
  %1858 = vmatprep.subr.mxu0 0.0
  %1859 = vmatpush1.xpose.msra.mxu0 0.0
  %1860 = vmatprep.subr.mxu0 0.0
  %1861 = vmatpush1.xpose.msra.mxu0 0.0
  %1862 = vmatprep.subr.mxu0 0.0
  %1863 = vmatpush1.xpose.msra.mxu0 0.0
  %1864 = vmatprep.subr.mxu0 0.0
  %1865 = vmatpush1.xpose.msra.mxu0 %v1834
  %1866 = vmatprep.subr.mxu0 0.0
  %1867 = vmatpush1.xpose.msra.mxu0 %v1831
  %1868 = vmatprep.subr.mxu0 0.0
  %1869 = vmatpush2.xpose.msra.mxu0 0.0
  %1870 = vmatprep.subr.mxu0 0.0
  %1871 = vmatpush2.xpose.msra.mxu0 0.0
  %1872 = vmatprep.subr.mxu0 0.0
  %1873 = vmatpush2.xpose.msra.mxu0 0.0
  %1874 = vmatprep.subr.mxu0 0.0
  %1875 = vmatpush2.xpose.msra.mxu0 0.0
  %1876 = vmatprep.subr.mxu0 0.0
  %1877 = vmatpush2.xpose.msra.mxu0 0.0
  %1878 = vmatprep.subr.mxu0 0.0
  %1879 = vmatpush2.xpose.msra.mxu0 0.0
  %1880 = vmatprep.subr.mxu0 0.0
  %1881 = vmatpush2.xpose.msra.mxu0 0.0
  %1882 = vmatprep.subr.mxu0 0.0
  %1883 = vmatpush2.xpose.msra.mxu0 0.0
  %1884 = vmatprep.subr.mxu0 0.0
  %1885 = vmatpush2.xpose.msra.mxu0 0.0
  %1886 = vmatprep.subr.mxu0 0.0
  %1887 = vmatpush2.xpose.msra.mxu0 0.0
  %1888 = vmatprep.subr.mxu0 0.0
  %1889 = vmatpush2.xpose.msra.mxu0 0.0
  %1890 = vmatprep.subr.mxu0 0.0
  %1891 = vmatpush2.xpose.msra.mxu0 0.0
  %1892 = vmatprep.subr.mxu0 0.0
  %1893 = vmatpush2.xpose.msra.mxu0 0.0
  %1894 = vmatprep.subr.mxu0 0.0
  %1895 = vmatpush2.xpose.msra.mxu0 0.0
  %1896 = vmatprep.subr.mxu0 0.0
  %1897 = vmatpush2.xpose.msra.mxu0 0.0
  %1898 = vmatprep.subr.mxu0 0.0
  %1899 = vmatpush2.xpose.msra.mxu0 0.0
  %1900 = vmatprep.mubr.f32.mxu0 0.0
  %1901 = vmatmul.mubr.f32.gmra.mxu0 %v1825
  %v1902 = vpop.f32.mrf.mxu0
  %v1903 = vadd.f32 0.0, %v1902
  %v1904 = vpop.f32.mrf.mxu0
  %1905 = vmatprep.mubr.f32.mxu0 0.0
  %1906 = vmatmul.mubr.f32.gmra.mxu0 %v1828
  %v1907 = vpop.f32.mrf.mxu0
  %v1908 = vadd.f32 0.0, %v1907
  %v1909 = vpop.f32.mrf.mxu0
  %1910 = vdwg.mxu0
  %v1911 = vmul.f32 %v1903, 0.25
  %v1912 = vmul.f32 %v1908, 0.25
  %v1913 = vadd.f32 %v1911, %v121
  %v1914 = vadd.f32 %v1912, %v122
  %v1915 = vsel %vm388, %v1913, -inf
  %1916 = vmax.xlane.f32.xlu0 %v1915
  %v1917 = vpop.xlane.xlu0 %1916
  %v1918 = vsel %vm388, %v1914, -inf
  %1919 = vmax.xlane.f32.xlu0 %v1918
  %v1920 = vpop.xlane.xlu0 %1919
  %v1921 = vsub.f32 %v1913, %v1917
  %v1922 = vsub.f32 %v1914, %v1920
  %v1923 = vmul.f32 %v1921, 1.442695
  %v1924 = vpow.pop %v1923
  %v1925 = vmul.f32 %v1922, 1.442695
  %v1926 = vpow.pop %v1925
  %v1927 = vsel %vm388, %v1924, 0.0
  %1928 = vadd.xlane.f32.xlu0 %v1927
  %v1929 = vpop.xlane.xlu0 %1928
  %v1930 = vsel %vm388, %v1926, 0.0
  %1931 = vadd.xlane.f32.xlu0 %v1930
  %v1932 = vpop.xlane.xlu0 %1931
  %v1933 = vrcp.pop %v1929
  %v1934 = vrcp.pop %v1932
  %v1935 = vmul.f32 %v1924, %v1933
  %v1936 = vmul.f32 %v1926, %v1934
  %v1938 = vsel %vm388, %v1935, 0
  %v1941 = vsel %vm388, %v1936, 0
  %1943 = vmatprep.subr.mxu0 0.0
  %1944 = vmatpush1.msra.mxu0 0.0
  %1945 = vmatprep.subr.mxu0 0.0
  %1946 = vmatpush1.msra.mxu0 0.0
  %1947 = vmatprep.subr.mxu0 0.0
  %1948 = vmatpush1.msra.mxu0 0.0
  %1949 = vmatprep.subr.mxu0 0.0
  %1950 = vmatpush1.msra.mxu0 0.0
  %1951 = vmatprep.subr.mxu0 0.0
  %1952 = vmatpush1.msra.mxu0 0.0
  %1953 = vmatprep.subr.mxu0 0.0
  %1954 = vmatpush1.msra.mxu0 0.0
  %1955 = vmatprep.subr.mxu0 0.0
  %1956 = vmatpush1.msra.mxu0 0.0
  %1957 = vmatprep.subr.mxu0 0.0
  %1958 = vmatpush1.msra.mxu0 0.0
  %1959 = vmatprep.subr.mxu0 0.0
  %1960 = vmatpush1.msra.mxu0 0.0
  %1961 = vmatprep.subr.mxu0 0.0
  %1962 = vmatpush1.msra.mxu0 0.0
  %1963 = vmatprep.subr.mxu0 0.0
  %1964 = vmatpush1.msra.mxu0 0.0
  %1965 = vmatprep.subr.mxu0 0.0
  %1966 = vmatpush1.msra.mxu0 0.0
  %1967 = vmatprep.subr.mxu0 0.0
  %1968 = vmatpush1.msra.mxu0 0.0
  %1969 = vmatprep.subr.mxu0 0.0
  %1970 = vmatpush1.msra.mxu0 0.0
  %1971 = vmatprep.subr.mxu0 0.0
  %1972 = vmatpush1.msra.mxu0 %v1821
  %1973 = vmatprep.subr.mxu0 0.0
  %1974 = vmatpush1.msra.mxu0 %v1816
  %1975 = vmatprep.subr.mxu0 0.0
  %1976 = vmatpush2.msra.mxu0 0.0
  %1977 = vmatprep.subr.mxu0 0.0
  %1978 = vmatpush2.msra.mxu0 0.0
  %1979 = vmatprep.subr.mxu0 0.0
  %1980 = vmatpush2.msra.mxu0 0.0
  %1981 = vmatprep.subr.mxu0 0.0
  %1982 = vmatpush2.msra.mxu0 0.0
  %1983 = vmatprep.subr.mxu0 0.0
  %1984 = vmatpush2.msra.mxu0 0.0
  %1985 = vmatprep.subr.mxu0 0.0
  %1986 = vmatpush2.msra.mxu0 0.0
  %1987 = vmatprep.subr.mxu0 0.0
  %1988 = vmatpush2.msra.mxu0 0.0
  %1989 = vmatprep.subr.mxu0 0.0
  %1990 = vmatpush2.msra.mxu0 0.0
  %1991 = vmatprep.subr.mxu0 0.0
  %1992 = vmatpush2.msra.mxu0 0.0
  %1993 = vmatprep.subr.mxu0 0.0
  %1994 = vmatpush2.msra.mxu0 0.0
  %1995 = vmatprep.subr.mxu0 0.0
  %1996 = vmatpush2.msra.mxu0 0.0
  %1997 = vmatprep.subr.mxu0 0.0
  %1998 = vmatpush2.msra.mxu0 0.0
  %1999 = vmatprep.subr.mxu0 0.0
  %2000 = vmatpush2.msra.mxu0 0.0
  %2001 = vmatprep.subr.mxu0 0.0
  %2002 = vmatpush2.msra.mxu0 0.0
  %2003 = vmatprep.subr.mxu0 0.0
  %2004 = vmatpush2.msra.mxu0 0.0
  %2005 = vmatprep.subr.mxu0 0.0
  %2006 = vmatpush2.msra.mxu0 0.0
  %2007 = vmatprep.mubr.f32.mxu0 0.0
  %2008 = vmatmul.mubr.f32.gmra.mxu0 %v1938
  %v2009 = vpop.f32.mrf.mxu0
  %v2010 = vadd.f32 0.0, %v2009
  %v2011 = vpop.f32.mrf.mxu0
  %2012 = vmatprep.mubr.f32.mxu0 0.0
  %2013 = vmatmul.mubr.f32.gmra.mxu0 %v1941
  %v2014 = vpop.f32.mrf.mxu0
  %v2015 = vadd.f32 0.0, %v2014
  %v2016 = vpop.f32.mrf.mxu0
  %2017 = vdwg.mxu0
  %s2018 = scalar_lea.vmem %s8, 32
  %v2019 = vld [vmem:[%s2018] sm:$0xff]
  %v2020 = vld [vmem:[%s2018 + $0x8] sm:$0xff]
  %s2021 = scalar_lea.vmem %s2, 96
  %v2022 = vld [vmem:[%s2021] sm:$0xff]
  %v2023 = vld [vmem:[%s2021 + $0x8] sm:$0xff]
  %v2024 = vld [vmem:[%s2021 + $0x10] sm:$0xff]
  %v2025 = vld [vmem:[%s2021 + $0x18] sm:$0xff]
  %s2026 = scalar_lea.vmem %s5, 3
  %v2027 = vld [vmem:[%s2026] sm:$0x1]
  %v2029 = vlaneseq
  %v2030 = vshrl.u32 %v2029, 7
  %v2031 = vsub.s32 0, %v2030
  %v2032 = vrot.slane %v2027, %v2031
  %2034 = vmatprep.subr.mxu0 0.0
  %2035 = vmatpush1.msra.mxu0 0.0
  %2036 = vmatprep.subr.mxu0 0.0
  %2037 = vmatpush1.msra.mxu0 0.0
  %2038 = vmatprep.subr.mxu0 0.0
  %2039 = vmatpush1.msra.mxu0 0.0
  %2040 = vmatprep.subr.mxu0 0.0
  %2041 = vmatpush1.msra.mxu0 0.0
  %2042 = vmatprep.subr.mxu0 0.0
  %2043 = vmatpush1.msra.mxu0 0.0
  %2044 = vmatprep.subr.mxu0 0.0
  %2045 = vmatpush1.msra.mxu0 0.0
  %2046 = vmatprep.subr.mxu0 0.0
  %2047 = vmatpush1.msra.mxu0 0.0
  %2048 = vmatprep.subr.mxu0 0.0
  %2049 = vmatpush1.msra.mxu0 0.0
  %2050 = vmatprep.subr.mxu0 0.0
  %2051 = vmatpush1.msra.mxu0 0.0
  %2052 = vmatprep.subr.mxu0 0.0
  %2053 = vmatpush1.msra.mxu0 0.0
  %2054 = vmatprep.subr.mxu0 0.0
  %2055 = vmatpush1.msra.mxu0 0.0
  %2056 = vmatprep.subr.mxu0 0.0
  %2057 = vmatpush1.msra.mxu0 0.0
  %2058 = vmatprep.subr.mxu0 0.0
  %2059 = vmatpush1.msra.mxu0 %v2025
  %2060 = vmatprep.subr.mxu0 0.0
  %2061 = vmatpush1.msra.mxu0 %v2024
  %2062 = vmatprep.subr.mxu0 0.0
  %2063 = vmatpush1.msra.mxu0 %v2023
  %2064 = vmatprep.subr.mxu0 0.0
  %2065 = vmatpush1.msra.mxu0 %v2022
  %2066 = vmatprep.subr.mxu0 0.0
  %2067 = vmatpush2.msra.mxu0 0.0
  %2068 = vmatprep.subr.mxu0 0.0
  %2069 = vmatpush2.msra.mxu0 0.0
  %2070 = vmatprep.subr.mxu0 0.0
  %2071 = vmatpush2.msra.mxu0 0.0
  %2072 = vmatprep.subr.mxu0 0.0
  %2073 = vmatpush2.msra.mxu0 0.0
  %2074 = vmatprep.subr.mxu0 0.0
  %2075 = vmatpush2.msra.mxu0 0.0
  %2076 = vmatprep.subr.mxu0 0.0
  %2077 = vmatpush2.msra.mxu0 0.0
  %2078 = vmatprep.subr.mxu0 0.0
  %2079 = vmatpush2.msra.mxu0 0.0
  %2080 = vmatprep.subr.mxu0 0.0
  %2081 = vmatpush2.msra.mxu0 0.0
  %2082 = vmatprep.subr.mxu0 0.0
  %2083 = vmatpush2.msra.mxu0 0.0
  %2084 = vmatprep.subr.mxu0 0.0
  %2085 = vmatpush2.msra.mxu0 0.0
  %2086 = vmatprep.subr.mxu0 0.0
  %2087 = vmatpush2.msra.mxu0 0.0
  %2088 = vmatprep.subr.mxu0 0.0
  %2089 = vmatpush2.msra.mxu0 0.0
  %2090 = vmatprep.subr.mxu0 0.0
  %2091 = vmatpush2.msra.mxu0 0.0
  %2092 = vmatprep.subr.mxu0 0.0
  %2093 = vmatpush2.msra.mxu0 0.0
  %2094 = vmatprep.subr.mxu0 0.0
  %2095 = vmatpush2.msra.mxu0 0.0
  %2096 = vmatprep.subr.mxu0 0.0
  %2097 = vmatpush2.msra.mxu0 0.0
  %2098 = vmatprep.mubr.f32.mxu0 0.0
  %2099 = vmatmul.mubr.f32.gmra.mxu0 %v1568
  %v2100 = vpop.f32.mrf.mxu0
  %v2101 = vadd.f32 %v2032, %v2100
  %v2102 = vpop.f32.mrf.mxu0
  %2103 = vmatprep.mubr.f32.mxu0 0.0
  %2104 = vmatmul.mubr.f32.gmra.mxu0 %v1571
  %v2105 = vpop.f32.mrf.mxu0
  %v2106 = vadd.f32 %v2032, %v2105
  %v2107 = vpop.f32.mrf.mxu0
  %2108 = vdwg.mxu0
  %s2109 = scalar_lea.vmem %s3, 96
  %v2110 = vld [vmem:[%s2109] sm:$0xff]
  %v2111 = vld [vmem:[%s2109 + $0x8] sm:$0xff]
  %v2112 = vld [vmem:[%s2109 + $0x10] sm:$0xff]
  %v2113 = vld [vmem:[%s2109 + $0x18] sm:$0xff]
  %s2114 = scalar_lea.vmem %s6, 3
  %v2115 = vld [vmem:[%s2114] sm:$0x1]
  %v2117 = vlaneseq
  %v2118 = vshrl.u32 %v2117, 7
  %v2119 = vsub.s32 0, %v2118
  %v2120 = vrot.slane %v2115, %v2119
  %2122 = vmatprep.subr.mxu0 0.0
  %2123 = vmatpush1.msra.mxu0 0.0
  %2124 = vmatprep.subr.mxu0 0.0
  %2125 = vmatpush1.msra.mxu0 0.0
  %2126 = vmatprep.subr.mxu0 0.0
  %2127 = vmatpush1.msra.mxu0 0.0
  %2128 = vmatprep.subr.mxu0 0.0
  %2129 = vmatpush1.msra.mxu0 0.0
  %2130 = vmatprep.subr.mxu0 0.0
  %2131 = vmatpush1.msra.mxu0 0.0
  %2132 = vmatprep.subr.mxu0 0.0
  %2133 = vmatpush1.msra.mxu0 0.0
  %2134 = vmatprep.subr.mxu0 0.0
  %2135 = vmatpush1.msra.mxu0 0.0
  %2136 = vmatprep.subr.mxu0 0.0
  %2137 = vmatpush1.msra.mxu0 0.0
  %2138 = vmatprep.subr.mxu0 0.0
  %2139 = vmatpush1.msra.mxu0 0.0
  %2140 = vmatprep.subr.mxu0 0.0
  %2141 = vmatpush1.msra.mxu0 0.0
  %2142 = vmatprep.subr.mxu0 0.0
  %2143 = vmatpush1.msra.mxu0 0.0
  %2144 = vmatprep.subr.mxu0 0.0
  %2145 = vmatpush1.msra.mxu0 0.0
  %2146 = vmatprep.subr.mxu0 0.0
  %2147 = vmatpush1.msra.mxu0 %v2113
  %2148 = vmatprep.subr.mxu0 0.0
  %2149 = vmatpush1.msra.mxu0 %v2112
  %2150 = vmatprep.subr.mxu0 0.0
  %2151 = vmatpush1.msra.mxu0 %v2111
  %2152 = vmatprep.subr.mxu0 0.0
  %2153 = vmatpush1.msra.mxu0 %v2110
  %2154 = vmatprep.subr.mxu0 0.0
  %2155 = vmatpush2.msra.mxu0 0.0
  %2156 = vmatprep.subr.mxu0 0.0
  %2157 = vmatpush2.msra.mxu0 0.0
  %2158 = vmatprep.subr.mxu0 0.0
  %2159 = vmatpush2.msra.mxu0 0.0
  %2160 = vmatprep.subr.mxu0 0.0
  %2161 = vmatpush2.msra.mxu0 0.0
  %2162 = vmatprep.subr.mxu0 0.0
  %2163 = vmatpush2.msra.mxu0 0.0
  %2164 = vmatprep.subr.mxu0 0.0
  %2165 = vmatpush2.msra.mxu0 0.0
  %2166 = vmatprep.subr.mxu0 0.0
  %2167 = vmatpush2.msra.mxu0 0.0
  %2168 = vmatprep.subr.mxu0 0.0
  %2169 = vmatpush2.msra.mxu0 0.0
  %2170 = vmatprep.subr.mxu0 0.0
  %2171 = vmatpush2.msra.mxu0 0.0
  %2172 = vmatprep.subr.mxu0 0.0
  %2173 = vmatpush2.msra.mxu0 0.0
  %2174 = vmatprep.subr.mxu0 0.0
  %2175 = vmatpush2.msra.mxu0 0.0
  %2176 = vmatprep.subr.mxu0 0.0
  %2177 = vmatpush2.msra.mxu0 0.0
  %2178 = vmatprep.subr.mxu0 0.0
  %2179 = vmatpush2.msra.mxu0 0.0
  %2180 = vmatprep.subr.mxu0 0.0
  %2181 = vmatpush2.msra.mxu0 0.0
  %2182 = vmatprep.subr.mxu0 0.0
  %2183 = vmatpush2.msra.mxu0 0.0
  %2184 = vmatprep.subr.mxu0 0.0
  %2185 = vmatpush2.msra.mxu0 0.0
  %2186 = vmatprep.mubr.f32.mxu0 0.0
  %2187 = vmatmul.mubr.f32.gmra.mxu0 %v1568
  %v2188 = vpop.f32.mrf.mxu0
  %v2189 = vadd.f32 %v2120, %v2188
  %v2190 = vpop.f32.mrf.mxu0
  %2191 = vmatprep.mubr.f32.mxu0 0.0
  %2192 = vmatmul.mubr.f32.gmra.mxu0 %v1571
  %v2193 = vpop.f32.mrf.mxu0
  %v2194 = vadd.f32 %v2120, %v2193
  %v2195 = vpop.f32.mrf.mxu0
  %2196 = vdwg.mxu0
  %s2197 = scalar_lea.vmem %s4, 96
  %v2198 = vld [vmem:[%s2197] sm:$0xff]
  %v2199 = vld [vmem:[%s2197 + $0x8] sm:$0xff]
  %v2200 = vld [vmem:[%s2197 + $0x10] sm:$0xff]
  %v2201 = vld [vmem:[%s2197 + $0x18] sm:$0xff]
  %s2202 = scalar_lea.vmem %s7, 3
  %v2203 = vld [vmem:[%s2202] sm:$0x1]
  %v2205 = vlaneseq
  %v2206 = vshrl.u32 %v2205, 7
  %v2207 = vsub.s32 0, %v2206
  %v2208 = vrot.slane %v2203, %v2207
  %2210 = vmatprep.subr.mxu0 0.0
  %2211 = vmatpush1.msra.mxu0 0.0
  %2212 = vmatprep.subr.mxu0 0.0
  %2213 = vmatpush1.msra.mxu0 0.0
  %2214 = vmatprep.subr.mxu0 0.0
  %2215 = vmatpush1.msra.mxu0 0.0
  %2216 = vmatprep.subr.mxu0 0.0
  %2217 = vmatpush1.msra.mxu0 0.0
  %2218 = vmatprep.subr.mxu0 0.0
  %2219 = vmatpush1.msra.mxu0 0.0
  %2220 = vmatprep.subr.mxu0 0.0
  %2221 = vmatpush1.msra.mxu0 0.0
  %2222 = vmatprep.subr.mxu0 0.0
  %2223 = vmatpush1.msra.mxu0 0.0
  %2224 = vmatprep.subr.mxu0 0.0
  %2225 = vmatpush1.msra.mxu0 0.0
  %2226 = vmatprep.subr.mxu0 0.0
  %2227 = vmatpush1.msra.mxu0 0.0
  %2228 = vmatprep.subr.mxu0 0.0
  %2229 = vmatpush1.msra.mxu0 0.0
  %2230 = vmatprep.subr.mxu0 0.0
  %2231 = vmatpush1.msra.mxu0 0.0
  %2232 = vmatprep.subr.mxu0 0.0
  %2233 = vmatpush1.msra.mxu0 0.0
  %2234 = vmatprep.subr.mxu0 0.0
  %2235 = vmatpush1.msra.mxu0 %v2201
  %2236 = vmatprep.subr.mxu0 0.0
  %2237 = vmatpush1.msra.mxu0 %v2200
  %2238 = vmatprep.subr.mxu0 0.0
  %2239 = vmatpush1.msra.mxu0 %v2199
  %2240 = vmatprep.subr.mxu0 0.0
  %2241 = vmatpush1.msra.mxu0 %v2198
  %2242 = vmatprep.subr.mxu0 0.0
  %2243 = vmatpush2.msra.mxu0 0.0
  %2244 = vmatprep.subr.mxu0 0.0
  %2245 = vmatpush2.msra.mxu0 0.0
  %2246 = vmatprep.subr.mxu0 0.0
  %2247 = vmatpush2.msra.mxu0 0.0
  %2248 = vmatprep.subr.mxu0 0.0
  %2249 = vmatpush2.msra.mxu0 0.0
  %2250 = vmatprep.subr.mxu0 0.0
  %2251 = vmatpush2.msra.mxu0 0.0
  %2252 = vmatprep.subr.mxu0 0.0
  %2253 = vmatpush2.msra.mxu0 0.0
  %2254 = vmatprep.subr.mxu0 0.0
  %2255 = vmatpush2.msra.mxu0 0.0
  %2256 = vmatprep.subr.mxu0 0.0
  %2257 = vmatpush2.msra.mxu0 0.0
  %2258 = vmatprep.subr.mxu0 0.0
  %2259 = vmatpush2.msra.mxu0 0.0
  %2260 = vmatprep.subr.mxu0 0.0
  %2261 = vmatpush2.msra.mxu0 0.0
  %2262 = vmatprep.subr.mxu0 0.0
  %2263 = vmatpush2.msra.mxu0 0.0
  %2264 = vmatprep.subr.mxu0 0.0
  %2265 = vmatpush2.msra.mxu0 0.0
  %2266 = vmatprep.subr.mxu0 0.0
  %2267 = vmatpush2.msra.mxu0 0.0
  %2268 = vmatprep.subr.mxu0 0.0
  %2269 = vmatpush2.msra.mxu0 0.0
  %2270 = vmatprep.subr.mxu0 0.0
  %2271 = vmatpush2.msra.mxu0 0.0
  %2272 = vmatprep.subr.mxu0 0.0
  %2273 = vmatpush2.msra.mxu0 0.0
  %2274 = vmatprep.mubr.f32.mxu0 0.0
  %2275 = vmatmul.mubr.f32.gmra.mxu0 %v1568
  %v2276 = vpop.f32.mrf.mxu0
  %v2277 = vadd.f32 %v2208, %v2276
  %v2278 = vpop.f32.mrf.mxu0
  %2279 = vmatprep.mubr.f32.mxu0 0.0
  %2280 = vmatmul.mubr.f32.gmra.mxu0 %v1571
  %v2281 = vpop.f32.mrf.mxu0
  %v2282 = vadd.f32 %v2208, %v2281
  %v2283 = vpop.f32.mrf.mxu0
  %2284 = vdwg.mxu0
  %v2286 = vsel %vm388, %v2101, 0
  %v2289 = vsel %vm388, %v2106, 0
  %v2292 = vsel %vm388, %v2189, 0
  %v2295 = vsel %vm388, %v2194, 0
  %2297 = vmatprep.subr.mxu0 0.0
  %2298 = vmatpush1.xpose.msra.mxu0 0.0
  %2299 = vmatprep.subr.mxu0 0.0
  %2300 = vmatpush1.xpose.msra.mxu0 0.0
  %2301 = vmatprep.subr.mxu0 0.0
  %2302 = vmatpush1.xpose.msra.mxu0 0.0
  %2303 = vmatprep.subr.mxu0 0.0
  %2304 = vmatpush1.xpose.msra.mxu0 0.0
  %2305 = vmatprep.subr.mxu0 0.0
  %2306 = vmatpush1.xpose.msra.mxu0 0.0
  %2307 = vmatprep.subr.mxu0 0.0
  %2308 = vmatpush1.xpose.msra.mxu0 0.0
  %2309 = vmatprep.subr.mxu0 0.0
  %2310 = vmatpush1.xpose.msra.mxu0 0.0
  %2311 = vmatprep.subr.mxu0 0.0
  %2312 = vmatpush1.xpose.msra.mxu0 0.0
  %2313 = vmatprep.subr.mxu0 0.0
  %2314 = vmatpush1.xpose.msra.mxu0 0.0
  %2315 = vmatprep.subr.mxu0 0.0
  %2316 = vmatpush1.xpose.msra.mxu0 0.0
  %2317 = vmatprep.subr.mxu0 0.0
  %2318 = vmatpush1.xpose.msra.mxu0 0.0
  %2319 = vmatprep.subr.mxu0 0.0
  %2320 = vmatpush1.xpose.msra.mxu0 0.0
  %2321 = vmatprep.subr.mxu0 0.0
  %2322 = vmatpush1.xpose.msra.mxu0 0.0
  %2323 = vmatprep.subr.mxu0 0.0
  %2324 = vmatpush1.xpose.msra.mxu0 0.0
  %2325 = vmatprep.subr.mxu0 0.0
  %2326 = vmatpush1.xpose.msra.mxu0 %v2295
  %2327 = vmatprep.subr.mxu0 0.0
  %2328 = vmatpush1.xpose.msra.mxu0 %v2292
  %2329 = vmatprep.subr.mxu0 0.0
  %2330 = vmatpush2.xpose.msra.mxu0 0.0
  %2331 = vmatprep.subr.mxu0 0.0
  %2332 = vmatpush2.xpose.msra.mxu0 0.0
  %2333 = vmatprep.subr.mxu0 0.0
  %2334 = vmatpush2.xpose.msra.mxu0 0.0
  %2335 = vmatprep.subr.mxu0 0.0
  %2336 = vmatpush2.xpose.msra.mxu0 0.0
  %2337 = vmatprep.subr.mxu0 0.0
  %2338 = vmatpush2.xpose.msra.mxu0 0.0
  %2339 = vmatprep.subr.mxu0 0.0
  %2340 = vmatpush2.xpose.msra.mxu0 0.0
  %2341 = vmatprep.subr.mxu0 0.0
  %2342 = vmatpush2.xpose.msra.mxu0 0.0
  %2343 = vmatprep.subr.mxu0 0.0
  %2344 = vmatpush2.xpose.msra.mxu0 0.0
  %2345 = vmatprep.subr.mxu0 0.0
  %2346 = vmatpush2.xpose.msra.mxu0 0.0
  %2347 = vmatprep.subr.mxu0 0.0
  %2348 = vmatpush2.xpose.msra.mxu0 0.0
  %2349 = vmatprep.subr.mxu0 0.0
  %2350 = vmatpush2.xpose.msra.mxu0 0.0
  %2351 = vmatprep.subr.mxu0 0.0
  %2352 = vmatpush2.xpose.msra.mxu0 0.0
  %2353 = vmatprep.subr.mxu0 0.0
  %2354 = vmatpush2.xpose.msra.mxu0 0.0
  %2355 = vmatprep.subr.mxu0 0.0
  %2356 = vmatpush2.xpose.msra.mxu0 0.0
  %2357 = vmatprep.subr.mxu0 0.0
  %2358 = vmatpush2.xpose.msra.mxu0 0.0
  %2359 = vmatprep.subr.mxu0 0.0
  %2360 = vmatpush2.xpose.msra.mxu0 0.0
  %2361 = vmatprep.mubr.f32.mxu0 0.0
  %2362 = vmatmul.mubr.f32.gmra.mxu0 %v2286
  %v2363 = vpop.f32.mrf.mxu0
  %v2364 = vadd.f32 0.0, %v2363
  %v2365 = vpop.f32.mrf.mxu0
  %2366 = vmatprep.mubr.f32.mxu0 0.0
  %2367 = vmatmul.mubr.f32.gmra.mxu0 %v2289
  %v2368 = vpop.f32.mrf.mxu0
  %v2369 = vadd.f32 0.0, %v2368
  %v2370 = vpop.f32.mrf.mxu0
  %2371 = vdwg.mxu0
  %v2372 = vmul.f32 %v2364, 0.25
  %v2373 = vmul.f32 %v2369, 0.25
  %v2374 = vadd.f32 %v2372, %v121
  %v2375 = vadd.f32 %v2373, %v122
  %v2376 = vsel %vm388, %v2374, -inf
  %2377 = vmax.xlane.f32.xlu0 %v2376
  %v2378 = vpop.xlane.xlu0 %2377
  %v2379 = vsel %vm388, %v2375, -inf
  %2380 = vmax.xlane.f32.xlu0 %v2379
  %v2381 = vpop.xlane.xlu0 %2380
  %v2382 = vsub.f32 %v2374, %v2378
  %v2383 = vsub.f32 %v2375, %v2381
  %v2384 = vmul.f32 %v2382, 1.442695
  %v2385 = vpow.pop %v2384
  %v2386 = vmul.f32 %v2383, 1.442695
  %v2387 = vpow.pop %v2386
  %v2388 = vsel %vm388, %v2385, 0.0
  %2389 = vadd.xlane.f32.xlu0 %v2388
  %v2390 = vpop.xlane.xlu0 %2389
  %v2391 = vsel %vm388, %v2387, 0.0
  %2392 = vadd.xlane.f32.xlu0 %v2391
  %v2393 = vpop.xlane.xlu0 %2392
  %v2394 = vrcp.pop %v2390
  %v2395 = vrcp.pop %v2393
  %v2396 = vmul.f32 %v2385, %v2394
  %v2397 = vmul.f32 %v2387, %v2395
  %v2399 = vsel %vm388, %v2396, 0
  %v2402 = vsel %vm388, %v2397, 0
  %2404 = vmatprep.subr.mxu0 0.0
  %2405 = vmatpush1.msra.mxu0 0.0
  %2406 = vmatprep.subr.mxu0 0.0
  %2407 = vmatpush1.msra.mxu0 0.0
  %2408 = vmatprep.subr.mxu0 0.0
  %2409 = vmatpush1.msra.mxu0 0.0
  %2410 = vmatprep.subr.mxu0 0.0
  %2411 = vmatpush1.msra.mxu0 0.0
  %2412 = vmatprep.subr.mxu0 0.0
  %2413 = vmatpush1.msra.mxu0 0.0
  %2414 = vmatprep.subr.mxu0 0.0
  %2415 = vmatpush1.msra.mxu0 0.0
  %2416 = vmatprep.subr.mxu0 0.0
  %2417 = vmatpush1.msra.mxu0 0.0
  %2418 = vmatprep.subr.mxu0 0.0
  %2419 = vmatpush1.msra.mxu0 0.0
  %2420 = vmatprep.subr.mxu0 0.0
  %2421 = vmatpush1.msra.mxu0 0.0
  %2422 = vmatprep.subr.mxu0 0.0
  %2423 = vmatpush1.msra.mxu0 0.0
  %2424 = vmatprep.subr.mxu0 0.0
  %2425 = vmatpush1.msra.mxu0 0.0
  %2426 = vmatprep.subr.mxu0 0.0
  %2427 = vmatpush1.msra.mxu0 0.0
  %2428 = vmatprep.subr.mxu0 0.0
  %2429 = vmatpush1.msra.mxu0 0.0
  %2430 = vmatprep.subr.mxu0 0.0
  %2431 = vmatpush1.msra.mxu0 0.0
  %2432 = vmatprep.subr.mxu0 0.0
  %2433 = vmatpush1.msra.mxu0 %v2282
  %2434 = vmatprep.subr.mxu0 0.0
  %2435 = vmatpush1.msra.mxu0 %v2277
  %2436 = vmatprep.subr.mxu0 0.0
  %2437 = vmatpush2.msra.mxu0 0.0
  %2438 = vmatprep.subr.mxu0 0.0
  %2439 = vmatpush2.msra.mxu0 0.0
  %2440 = vmatprep.subr.mxu0 0.0
  %2441 = vmatpush2.msra.mxu0 0.0
  %2442 = vmatprep.subr.mxu0 0.0
  %2443 = vmatpush2.msra.mxu0 0.0
  %2444 = vmatprep.subr.mxu0 0.0
  %2445 = vmatpush2.msra.mxu0 0.0
  %2446 = vmatprep.subr.mxu0 0.0
  %2447 = vmatpush2.msra.mxu0 0.0
  %2448 = vmatprep.subr.mxu0 0.0
  %2449 = vmatpush2.msra.mxu0 0.0
  %2450 = vmatprep.subr.mxu0 0.0
  %2451 = vmatpush2.msra.mxu0 0.0
  %2452 = vmatprep.subr.mxu0 0.0
  %2453 = vmatpush2.msra.mxu0 0.0
  %2454 = vmatprep.subr.mxu0 0.0
  %2455 = vmatpush2.msra.mxu0 0.0
  %2456 = vmatprep.subr.mxu0 0.0
  %2457 = vmatpush2.msra.mxu0 0.0
  %2458 = vmatprep.subr.mxu0 0.0
  %2459 = vmatpush2.msra.mxu0 0.0
  %2460 = vmatprep.subr.mxu0 0.0
  %2461 = vmatpush2.msra.mxu0 0.0
  %2462 = vmatprep.subr.mxu0 0.0
  %2463 = vmatpush2.msra.mxu0 0.0
  %2464 = vmatprep.subr.mxu0 0.0
  %2465 = vmatpush2.msra.mxu0 0.0
  %2466 = vmatprep.subr.mxu0 0.0
  %2467 = vmatpush2.msra.mxu0 0.0
  %2468 = vmatprep.mubr.f32.mxu0 0.0
  %2469 = vmatmul.mubr.f32.gmra.mxu0 %v2399
  %v2470 = vpop.f32.mrf.mxu0
  %v2471 = vadd.f32 0.0, %v2470
  %v2472 = vpop.f32.mrf.mxu0
  %2473 = vmatprep.mubr.f32.mxu0 0.0
  %2474 = vmatmul.mubr.f32.gmra.mxu0 %v2402
  %v2475 = vpop.f32.mrf.mxu0
  %v2476 = vadd.f32 0.0, %v2475
  %v2477 = vpop.f32.mrf.mxu0
  %2478 = vdwg.mxu0
  %s2479 = scalar_lea.vmem %s8, 48
  %v2480 = vld [vmem:[%s2479] sm:$0xff]
  %v2481 = vld [vmem:[%s2479 + $0x8] sm:$0xff]
  %v2483 = vsel %vm388, %v2471, 0
  %v2486 = vsel %vm388, %v2476, 0
  %2488 = vmatprep.subr.mxu0 0.0
  %2489 = vmatpush1.msra.mxu0 0.0
  %2490 = vmatprep.subr.mxu0 0.0
  %2491 = vmatpush1.msra.mxu0 0.0
  %2492 = vmatprep.subr.mxu0 0.0
  %2493 = vmatpush1.msra.mxu0 0.0
  %2494 = vmatprep.subr.mxu0 0.0
  %2495 = vmatpush1.msra.mxu0 0.0
  %2496 = vmatprep.subr.mxu0 0.0
  %2497 = vmatpush1.msra.mxu0 0.0
  %2498 = vmatprep.subr.mxu0 0.0
  %2499 = vmatpush1.msra.mxu0 0.0
  %2500 = vmatprep.subr.mxu0 0.0
  %2501 = vmatpush1.msra.mxu0 0.0
  %2502 = vmatprep.subr.mxu0 0.0
  %2503 = vmatpush1.msra.mxu0 0.0
  %2504 = vmatprep.subr.mxu0 0.0
  %2505 = vmatpush1.msra.mxu0 0.0
  %2506 = vmatprep.subr.mxu0 0.0
  %2507 = vmatpush1.msra.mxu0 0.0
  %2508 = vmatprep.subr.mxu0 0.0
  %2509 = vmatpush1.msra.mxu0 0.0
  %2510 = vmatprep.subr.mxu0 0.0
  %2511 = vmatpush1.msra.mxu0 0.0
  %2512 = vmatprep.subr.mxu0 0.0
  %2513 = vmatpush1.msra.mxu0 0.0
  %2514 = vmatprep.subr.mxu0 0.0
  %2515 = vmatpush1.msra.mxu0 0.0
  %2516 = vmatprep.subr.mxu0 0.0
  %2517 = vmatpush1.msra.mxu0 %v2481
  %2518 = vmatprep.subr.mxu0 0.0
  %2519 = vmatpush1.msra.mxu0 %v2480
  %2520 = vmatprep.subr.mxu0 0.0
  %2521 = vmatpush2.msra.mxu0 0.0
  %2522 = vmatprep.subr.mxu0 0.0
  %2523 = vmatpush2.msra.mxu0 0.0
  %2524 = vmatprep.subr.mxu0 0.0
  %2525 = vmatpush2.msra.mxu0 0.0
  %2526 = vmatprep.subr.mxu0 0.0
  %2527 = vmatpush2.msra.mxu0 0.0
  %2528 = vmatprep.subr.mxu0 0.0
  %2529 = vmatpush2.msra.mxu0 0.0
  %2530 = vmatprep.subr.mxu0 0.0
  %2531 = vmatpush2.msra.mxu0 0.0
  %2532 = vmatprep.subr.mxu0 0.0
  %2533 = vmatpush2.msra.mxu0 0.0
  %2534 = vmatprep.subr.mxu0 0.0
  %2535 = vmatpush2.msra.mxu0 0.0
  %2536 = vmatprep.subr.mxu0 0.0
  %2537 = vmatpush2.msra.mxu0 0.0
  %2538 = vmatprep.subr.mxu0 0.0
  %2539 = vmatpush2.msra.mxu0 0.0
  %2540 = vmatprep.subr.mxu0 0.0
  %2541 = vmatpush2.msra.mxu0 0.0
  %2542 = vmatprep.subr.mxu0 0.0
  %2543 = vmatpush2.msra.mxu0 0.0
  %2544 = vmatprep.subr.mxu0 0.0
  %2545 = vmatpush2.msra.mxu0 0.0
  %2546 = vmatprep.subr.mxu0 0.0
  %2547 = vmatpush2.msra.mxu0 0.0
  %2548 = vmatprep.subr.mxu0 0.0
  %2549 = vmatpush2.msra.mxu0 0.0
  %2550 = vmatprep.subr.mxu0 0.0
  %2551 = vmatpush2.msra.mxu0 0.0
  %2552 = vmatprep.mubr.f32.mxu0 0.0
  %2553 = vmatmul.mubr.f32.gmra.mxu0 %v2483
  %v2554 = vpop.f32.mrf.mxu0
  %v2555 = vadd.f32 0.0, %v2554
  %v2556 = vpop.f32.mrf.mxu0
  %2557 = vmatprep.mubr.f32.mxu0 0.0
  %2558 = vmatmul.mubr.f32.gmra.mxu0 %v2486
  %v2559 = vpop.f32.mrf.mxu0
  %v2560 = vadd.f32 0.0, %v2559
  %v2561 = vpop.f32.mrf.mxu0
  %2562 = vdwg.mxu0
  %v2564 = vsel %vm388, %v2010, 0
  %v2567 = vsel %vm388, %v2015, 0
  %2569 = vmatprep.subr.mxu0 0.0
  %2570 = vmatpush1.msra.mxu0 0.0
  %2571 = vmatprep.subr.mxu0 0.0
  %2572 = vmatpush1.msra.mxu0 0.0
  %2573 = vmatprep.subr.mxu0 0.0
  %2574 = vmatpush1.msra.mxu0 0.0
  %2575 = vmatprep.subr.mxu0 0.0
  %2576 = vmatpush1.msra.mxu0 0.0
  %2577 = vmatprep.subr.mxu0 0.0
  %2578 = vmatpush1.msra.mxu0 0.0
  %2579 = vmatprep.subr.mxu0 0.0
  %2580 = vmatpush1.msra.mxu0 0.0
  %2581 = vmatprep.subr.mxu0 0.0
  %2582 = vmatpush1.msra.mxu0 0.0
  %2583 = vmatprep.subr.mxu0 0.0
  %2584 = vmatpush1.msra.mxu0 0.0
  %2585 = vmatprep.subr.mxu0 0.0
  %2586 = vmatpush1.msra.mxu0 0.0
  %2587 = vmatprep.subr.mxu0 0.0
  %2588 = vmatpush1.msra.mxu0 0.0
  %2589 = vmatprep.subr.mxu0 0.0
  %2590 = vmatpush1.msra.mxu0 0.0
  %2591 = vmatprep.subr.mxu0 0.0
  %2592 = vmatpush1.msra.mxu0 0.0
  %2593 = vmatprep.subr.mxu0 0.0
  %2594 = vmatpush1.msra.mxu0 0.0
  %2595 = vmatprep.subr.mxu0 0.0
  %2596 = vmatpush1.msra.mxu0 0.0
  %2597 = vmatprep.subr.mxu0 0.0
  %2598 = vmatpush1.msra.mxu0 %v2020
  %2599 = vmatprep.subr.mxu0 0.0
  %2600 = vmatpush1.msra.mxu0 %v2019
  %2601 = vmatprep.subr.mxu0 0.0
  %2602 = vmatpush2.msra.mxu0 0.0
  %2603 = vmatprep.subr.mxu0 0.0
  %2604 = vmatpush2.msra.mxu0 0.0
  %2605 = vmatprep.subr.mxu0 0.0
  %2606 = vmatpush2.msra.mxu0 0.0
  %2607 = vmatprep.subr.mxu0 0.0
  %2608 = vmatpush2.msra.mxu0 0.0
  %2609 = vmatprep.subr.mxu0 0.0
  %2610 = vmatpush2.msra.mxu0 0.0
  %2611 = vmatprep.subr.mxu0 0.0
  %2612 = vmatpush2.msra.mxu0 0.0
  %2613 = vmatprep.subr.mxu0 0.0
  %2614 = vmatpush2.msra.mxu0 0.0
  %2615 = vmatprep.subr.mxu0 0.0
  %2616 = vmatpush2.msra.mxu0 0.0
  %2617 = vmatprep.subr.mxu0 0.0
  %2618 = vmatpush2.msra.mxu0 0.0
  %2619 = vmatprep.subr.mxu0 0.0
  %2620 = vmatpush2.msra.mxu0 0.0
  %2621 = vmatprep.subr.mxu0 0.0
  %2622 = vmatpush2.msra.mxu0 0.0
  %2623 = vmatprep.subr.mxu0 0.0
  %2624 = vmatpush2.msra.mxu0 0.0
  %2625 = vmatprep.subr.mxu0 0.0
  %2626 = vmatpush2.msra.mxu0 0.0
  %2627 = vmatprep.subr.mxu0 0.0
  %2628 = vmatpush2.msra.mxu0 0.0
  %2629 = vmatprep.subr.mxu0 0.0
  %2630 = vmatpush2.msra.mxu0 0.0
  %2631 = vmatprep.subr.mxu0 0.0
  %2632 = vmatpush2.msra.mxu0 0.0
  %2633 = vmatprep.mubr.f32.mxu0 0.0
  %2634 = vmatmul.mubr.f32.gmra.mxu0 %v2564
  %v2635 = vpop.f32.mrf.mxu0
  %v2636 = vadd.f32 %v2555, %v2635
  %v2637 = vpop.f32.mrf.mxu0
  %2638 = vmatprep.mubr.f32.mxu0 0.0
  %2639 = vmatmul.mubr.f32.gmra.mxu0 %v2567
  %v2640 = vpop.f32.mrf.mxu0
  %v2641 = vadd.f32 %v2560, %v2640
  %v2642 = vpop.f32.mrf.mxu0
  %2643 = vdwg.mxu0
  %s2644 = scalar_lea.vmem %s9, 1
  %v2645 = vld [vmem:[%s2644] sm:$0x1]
  %v2647 = vlaneseq
  %v2648 = vshrl.u32 %v2647, 7
  %v2649 = vsub.s32 0, %v2648
  %v2650 = vrot.slane %v2645, %v2649
  %v2652 = vadd.f32 %v2636, %v2650
  %v2653 = vadd.f32 %v2641, %v2650
  %v2654 = vadd.f32 %v1552, %v2652
  %v2655 = vadd.f32 %v1553, %v2653
  %s2656 = scalar_lea.vmem %s11, 1
  %v2657 = vld [vmem:[%s2656] sm:$0x1]
  %s2658 = scalar_lea.vmem %s12, 1
  %v2659 = vld [vmem:[%s2658] sm:$0x1]
  %v2660 = vsel %vm134, %v2654, 0.0
  %2661 = vadd.xlane.f32.xlu0 %v2660
  %v2662 = vpop.xlane.xlu0 %2661
  %v2663 = vsel %vm134, %v2655, 0.0
  %2664 = vadd.xlane.f32.xlu0 %v2663
  %v2665 = vpop.xlane.xlu0 %2664
  %v2666 = vmul.f32 %v2662, %v1227
  %v2667 = vmul.f32 %v2665, %v1227
  %v2668 = vsub.f32 %v2654, %v2666
  %v2669 = vsub.f32 %v2655, %v2667
  %v2670 = vmul.f32 %v2668, %v2668
  %v2671 = vmul.f32 %v2669, %v2669
  %v2672 = vsel %vm134, %v2670, 0.0
  %2673 = vadd.xlane.f32.xlu0 %v2672
  %v2674 = vpop.xlane.xlu0 %2673
  %v2675 = vsel %vm134, %v2671, 0.0
  %2676 = vadd.xlane.f32.xlu0 %v2675
  %v2677 = vpop.xlane.xlu0 %2676
  %v2678 = vmul.f32 %v2674, %v1227
  %v2679 = vmul.f32 %v2677, %v1227
  %v2680 = vadd.f32 %v2678, 1e-05
  %v2681 = vadd.f32 %v2679, 1e-05
  %v2682 = vrsqrt.pop %v2680
  %v2683 = vrsqrt.pop %v2681
  %v2684 = vmul.f32 %v2668, %v2682
  %v2685 = vmul.f32 %v2669, %v2683
  %v2687 = vlaneseq
  %v2688 = vshrl.u32 %v2687, 7
  %v2689 = vsub.s32 0, %v2688
  %v2690 = vrot.slane %v2657, %v2689
  %v2692 = vmul.f32 %v2684, %v2690
  %v2693 = vmul.f32 %v2685, %v2690
  %v2695 = vlaneseq
  %v2696 = vshrl.u32 %v2695, 7
  %v2697 = vsub.s32 0, %v2696
  %v2698 = vrot.slane %v2659, %v2697
  %v2700 = vadd.f32 %v2692, %v2698
  %v2701 = vadd.f32 %v2693, %v2698
  %s2702 = scalar_lea.vmem %s10, 1
  %v2703 = vld [vmem:[%s2702] sm:$0x1]
  %v2705 = vlaneseq
  %v2706 = vshrl.u32 %v2705, 7
  %v2707 = vsub.s32 0, %v2706
  %v2708 = vrot.slane %v2703, %v2707
  %v2710 = vadd.f32 %v2700, %v2708
  %v2711 = vadd.f32 %v2701, %v2708
  %s2712 = scalar_lea.vmem %s13, 1
  %v2713 = vld [vmem:[%s2712] sm:$0x1]
  %s2714 = scalar_lea.vmem %s14, 1
  %v2715 = vld [vmem:[%s2714] sm:$0x1]
  %v2716 = vsel %vm134, %v2710, 0.0
  %2717 = vadd.xlane.f32.xlu0 %v2716
  %v2718 = vpop.xlane.xlu0 %2717
  %v2719 = vsel %vm134, %v2711, 0.0
  %2720 = vadd.xlane.f32.xlu0 %v2719
  %v2721 = vpop.xlane.xlu0 %2720
  %v2722 = vmul.f32 %v2718, %v1227
  %v2723 = vmul.f32 %v2721, %v1227
  %v2724 = vsub.f32 %v2710, %v2722
  %v2725 = vsub.f32 %v2711, %v2723
  %v2726 = vmul.f32 %v2724, %v2724
  %v2727 = vmul.f32 %v2725, %v2725
  %v2728 = vsel %vm134, %v2726, 0.0
  %2729 = vadd.xlane.f32.xlu0 %v2728
  %v2730 = vpop.xlane.xlu0 %2729
  %v2731 = vsel %vm134, %v2727, 0.0
  %2732 = vadd.xlane.f32.xlu0 %v2731
  %v2733 = vpop.xlane.xlu0 %2732
  %v2734 = vmul.f32 %v2730, %v1227
  %v2735 = vmul.f32 %v2733, %v1227
  %v2736 = vadd.f32 %v2734, 1e-05
  %v2737 = vadd.f32 %v2735, 1e-05
  %v2738 = vrsqrt.pop %v2736
  %v2739 = vrsqrt.pop %v2737
  %v2740 = vmul.f32 %v2724, %v2738
  %v2741 = vmul.f32 %v2725, %v2739
  %v2743 = vlaneseq
  %v2744 = vshrl.u32 %v2743, 7
  %v2745 = vsub.s32 0, %v2744
  %v2746 = vrot.slane %v2713, %v2745
  %v2748 = vmul.f32 %v2740, %v2746
  %v2749 = vmul.f32 %v2741, %v2746
  %v2751 = vlaneseq
  %v2752 = vshrl.u32 %v2751, 7
  %v2753 = vsub.s32 0, %v2752
  %v2754 = vrot.slane %v2715, %v2753
  %v2756 = vadd.f32 %v2748, %v2754
  %v2757 = vadd.f32 %v2749, %v2754
  %s2758 = scalar_lea.vmem %s15, 32
  %v2759 = vld [vmem:[%s2758] sm:$0xff]
  %v2760 = vld [vmem:[%s2758 + $0x8] sm:$0xff]
  %v2761 = vld [vmem:[%s2758 + $0x10] sm:$0xff]
  %v2762 = vld [vmem:[%s2758 + $0x18] sm:$0xff]
  %s2763 = scalar_lea.vmem %s16, 1
  %v2764 = vld [vmem:[%s2763] sm:$0x1]
  %v2766 = vlaneseq
  %v2767 = vshrl.u32 %v2766, 7
  %v2768 = vsub.s32 0, %v2767
  %v2769 = vrot.slane %v2764, %v2768
  %v2772 = vsel %vm134, %v2756, 0
  %v2775 = vsel %vm134, %v2757, 0
  %2777 = vmatprep.subr.mxu0 0.0
  %2778 = vmatpush1.msra.mxu0 0.0
  %2779 = vmatprep.subr.mxu0 0.0
  %2780 = vmatpush1.msra.mxu0 0.0
  %2781 = vmatprep.subr.mxu0 0.0
  %2782 = vmatpush1.msra.mxu0 0.0
  %2783 = vmatprep.subr.mxu0 0.0
  %2784 = vmatpush1.msra.mxu0 0.0
  %2785 = vmatprep.subr.mxu0 0.0
  %2786 = vmatpush1.msra.mxu0 0.0
  %2787 = vmatprep.subr.mxu0 0.0
  %2788 = vmatpush1.msra.mxu0 0.0
  %2789 = vmatprep.subr.mxu0 0.0
  %2790 = vmatpush1.msra.mxu0 0.0
  %2791 = vmatprep.subr.mxu0 0.0
  %2792 = vmatpush1.msra.mxu0 0.0
  %2793 = vmatprep.subr.mxu0 0.0
  %2794 = vmatpush1.msra.mxu0 0.0
  %2795 = vmatprep.subr.mxu0 0.0
  %2796 = vmatpush1.msra.mxu0 0.0
  %2797 = vmatprep.subr.mxu0 0.0
  %2798 = vmatpush1.msra.mxu0 0.0
  %2799 = vmatprep.subr.mxu0 0.0
  %2800 = vmatpush1.msra.mxu0 0.0
  %2801 = vmatprep.subr.mxu0 0.0
  %2802 = vmatpush1.msra.mxu0 %v2762
  %2803 = vmatprep.subr.mxu0 0.0
  %2804 = vmatpush1.msra.mxu0 %v2761
  %2805 = vmatprep.subr.mxu0 0.0
  %2806 = vmatpush1.msra.mxu0 %v2760
  %2807 = vmatprep.subr.mxu0 0.0
  %2808 = vmatpush1.msra.mxu0 %v2759
  %2809 = vmatprep.subr.mxu0 0.0
  %2810 = vmatpush2.msra.mxu0 0.0
  %2811 = vmatprep.subr.mxu0 0.0
  %2812 = vmatpush2.msra.mxu0 0.0
  %2813 = vmatprep.subr.mxu0 0.0
  %2814 = vmatpush2.msra.mxu0 0.0
  %2815 = vmatprep.subr.mxu0 0.0
  %2816 = vmatpush2.msra.mxu0 0.0
  %2817 = vmatprep.subr.mxu0 0.0
  %2818 = vmatpush2.msra.mxu0 0.0
  %2819 = vmatprep.subr.mxu0 0.0
  %2820 = vmatpush2.msra.mxu0 0.0
  %2821 = vmatprep.subr.mxu0 0.0
  %2822 = vmatpush2.msra.mxu0 0.0
  %2823 = vmatprep.subr.mxu0 0.0
  %2824 = vmatpush2.msra.mxu0 0.0
  %2825 = vmatprep.subr.mxu0 0.0
  %2826 = vmatpush2.msra.mxu0 0.0
  %2827 = vmatprep.subr.mxu0 0.0
  %2828 = vmatpush2.msra.mxu0 0.0
  %2829 = vmatprep.subr.mxu0 0.0
  %2830 = vmatpush2.msra.mxu0 0.0
  %2831 = vmatprep.subr.mxu0 0.0
  %2832 = vmatpush2.msra.mxu0 0.0
  %2833 = vmatprep.subr.mxu0 0.0
  %2834 = vmatpush2.msra.mxu0 0.0
  %2835 = vmatprep.subr.mxu0 0.0
  %2836 = vmatpush2.msra.mxu0 0.0
  %2837 = vmatprep.subr.mxu0 0.0
  %2838 = vmatpush2.msra.mxu0 0.0
  %2839 = vmatprep.subr.mxu0 0.0
  %2840 = vmatpush2.msra.mxu0 0.0
  %2841 = vmatprep.mubr.f32.mxu0 0.0
  %2842 = vmatmul.mubr.f32.gmra.mxu0 %v2772
  %v2843 = vpop.f32.mrf.mxu0
  %v2844 = vadd.f32 %v2769, %v2843
  %v2845 = vpop.f32.mrf.mxu0
  %2846 = vmatprep.mubr.f32.mxu0 0.0
  %2847 = vmatmul.mubr.f32.gmra.mxu0 %v2775
  %v2848 = vpop.f32.mrf.mxu0
  %v2849 = vadd.f32 %v2769, %v2848
  %v2850 = vpop.f32.mrf.mxu0
  %2851 = vdwg.mxu0
  %v2852 = vmax.f32 %v2844, 0.0
  %v2853 = vmax.f32 %v2849, 0.0
  %s2854 = scalar_lea.vmem %s17, 64
  %v2855 = vld [vmem:[%s2854] sm:$0xff]
  %v2856 = vld [vmem:[%s2854 + $0x8] sm:$0xff]
  %v2857 = vld [vmem:[%s2854 + $0x10] sm:$0xff]
  %v2858 = vld [vmem:[%s2854 + $0x18] sm:$0xff]
  %v2859 = vld [vmem:[%s2854 + $0x20] sm:$0xff]
  %v2860 = vld [vmem:[%s2854 + $0x28] sm:$0xff]
  %v2861 = vld [vmem:[%s2854 + $0x30] sm:$0xff]
  %v2862 = vld [vmem:[%s2854 + $0x38] sm:$0xff]
  %s2863 = scalar_lea.vmem %s18, 1
  %v2864 = vld [vmem:[%s2863] sm:$0x1]
  %v2866 = vlaneseq
  %v2867 = vshrl.u32 %v2866, 7
  %v2868 = vsub.s32 0, %v2867
  %v2869 = vrot.slane %v2864, %v2868
  %v2872 = vsel %vm1426, %v2852, 0
  %v2875 = vsel %vm1426, %v2853, 0
  %2877 = vmatprep.subr.mxu0 0.0
  %2878 = vmatpush1.msra.mxu0 0.0
  %2879 = vmatprep.subr.mxu0 0.0
  %2880 = vmatpush1.msra.mxu0 0.0
  %2881 = vmatprep.subr.mxu0 0.0
  %2882 = vmatpush1.msra.mxu0 0.0
  %2883 = vmatprep.subr.mxu0 0.0
  %2884 = vmatpush1.msra.mxu0 0.0
  %2885 = vmatprep.subr.mxu0 0.0
  %2886 = vmatpush1.msra.mxu0 0.0
  %2887 = vmatprep.subr.mxu0 0.0
  %2888 = vmatpush1.msra.mxu0 0.0
  %2889 = vmatprep.subr.mxu0 0.0
  %2890 = vmatpush1.msra.mxu0 0.0
  %2891 = vmatprep.subr.mxu0 0.0
  %2892 = vmatpush1.msra.mxu0 0.0
  %2893 = vmatprep.subr.mxu0 0.0
  %2894 = vmatpush1.msra.mxu0 %v2862
  %2895 = vmatprep.subr.mxu0 0.0
  %2896 = vmatpush1.msra.mxu0 %v2861
  %2897 = vmatprep.subr.mxu0 0.0
  %2898 = vmatpush1.msra.mxu0 %v2860
  %2899 = vmatprep.subr.mxu0 0.0
  %2900 = vmatpush1.msra.mxu0 %v2859
  %2901 = vmatprep.subr.mxu0 0.0
  %2902 = vmatpush1.msra.mxu0 %v2858
  %2903 = vmatprep.subr.mxu0 0.0
  %2904 = vmatpush1.msra.mxu0 %v2857
  %2905 = vmatprep.subr.mxu0 0.0
  %2906 = vmatpush1.msra.mxu0 %v2856
  %2907 = vmatprep.subr.mxu0 0.0
  %2908 = vmatpush1.msra.mxu0 %v2855
  %2909 = vmatprep.subr.mxu0 0.0
  %2910 = vmatpush2.msra.mxu0 0.0
  %2911 = vmatprep.subr.mxu0 0.0
  %2912 = vmatpush2.msra.mxu0 0.0
  %2913 = vmatprep.subr.mxu0 0.0
  %2914 = vmatpush2.msra.mxu0 0.0
  %2915 = vmatprep.subr.mxu0 0.0
  %2916 = vmatpush2.msra.mxu0 0.0
  %2917 = vmatprep.subr.mxu0 0.0
  %2918 = vmatpush2.msra.mxu0 0.0
  %2919 = vmatprep.subr.mxu0 0.0
  %2920 = vmatpush2.msra.mxu0 0.0
  %2921 = vmatprep.subr.mxu0 0.0
  %2922 = vmatpush2.msra.mxu0 0.0
  %2923 = vmatprep.subr.mxu0 0.0
  %2924 = vmatpush2.msra.mxu0 0.0
  %2925 = vmatprep.subr.mxu0 0.0
  %2926 = vmatpush2.msra.mxu0 0.0
  %2927 = vmatprep.subr.mxu0 0.0
  %2928 = vmatpush2.msra.mxu0 0.0
  %2929 = vmatprep.subr.mxu0 0.0
  %2930 = vmatpush2.msra.mxu0 0.0
  %2931 = vmatprep.subr.mxu0 0.0
  %2932 = vmatpush2.msra.mxu0 0.0
  %2933 = vmatprep.subr.mxu0 0.0
  %2934 = vmatpush2.msra.mxu0 0.0
  %2935 = vmatprep.subr.mxu0 0.0
  %2936 = vmatpush2.msra.mxu0 0.0
  %2937 = vmatprep.subr.mxu0 0.0
  %2938 = vmatpush2.msra.mxu0 0.0
  %2939 = vmatprep.subr.mxu0 0.0
  %2940 = vmatpush2.msra.mxu0 0.0
  %2941 = vmatprep.mubr.f32.mxu0 0.0
  %2942 = vmatmul.mubr.f32.gmra.mxu0 %v2872
  %v2943 = vpop.f32.mrf.mxu0
  %v2944 = vadd.f32 %v2869, %v2943
  %v2945 = vpop.f32.mrf.mxu0
  %2946 = vmatprep.mubr.f32.mxu0 0.0
  %2947 = vmatmul.mubr.f32.gmra.mxu0 %v2875
  %v2948 = vpop.f32.mrf.mxu0
  %v2949 = vadd.f32 %v2869, %v2948
  %v2950 = vpop.f32.mrf.mxu0
  %2951 = vdwg.mxu0
  %v2952 = vadd.f32 %v2756, %v2944
  %v2953 = vadd.f32 %v2757, %v2949
  %s2954 = scalar_lea.vmem %s19, 1
  %v2955 = vld [vmem:[%s2954] sm:$0x1]
  %s2956 = scalar_lea.vmem %s20, 1
  %v2957 = vld [vmem:[%s2956] sm:$0x1]
  %v2958 = vsel %vm134, %v2952, 0.0
  %2959 = vadd.xlane.f32.xlu0 %v2958
  %v2960 = vpop.xlane.xlu0 %2959
  %v2961 = vsel %vm134, %v2953, 0.0
  %2962 = vadd.xlane.f32.xlu0 %v2961
  %v2963 = vpop.xlane.xlu0 %2962
  %v2964 = vmul.f32 %v2960, %v1227
  %v2965 = vmul.f32 %v2963, %v1227
  %v2966 = vsub.f32 %v2952, %v2964
  %v2967 = vsub.f32 %v2953, %v2965
  %v2968 = vmul.f32 %v2966, %v2966
  %v2969 = vmul.f32 %v2967, %v2967
  %v2970 = vsel %vm134, %v2968, 0.0
  %2971 = vadd.xlane.f32.xlu0 %v2970
  %v2972 = vpop.xlane.xlu0 %2971
  %v2973 = vsel %vm134, %v2969, 0.0
  %2974 = vadd.xlane.f32.xlu0 %v2973
  %v2975 = vpop.xlane.xlu0 %2974
  %v2976 = vmul.f32 %v2972, %v1227
  %v2977 = vmul.f32 %v2975, %v1227
  %v2978 = vadd.f32 %v2976, 1e-05
  %v2979 = vadd.f32 %v2977, 1e-05
  %v2980 = vrsqrt.pop %v2978
  %v2981 = vrsqrt.pop %v2979
  %v2982 = vmul.f32 %v2966, %v2980
  %v2983 = vmul.f32 %v2967, %v2981
  %v2985 = vlaneseq
  %v2986 = vshrl.u32 %v2985, 7
  %v2987 = vsub.s32 0, %v2986
  %v2988 = vrot.slane %v2955, %v2987
  %v2990 = vmul.f32 %v2982, %v2988
  %v2991 = vmul.f32 %v2983, %v2988
  %v2993 = vlaneseq
  %v2994 = vshrl.u32 %v2993, 7
  %v2995 = vsub.s32 0, %v2994
  %v2996 = vrot.slane %v2957, %v2995
  %v2998 = vadd.f32 %v2990, %v2996
  %v2999 = vadd.f32 %v2991, %v2996
  %v3000 = vld [vmem:[%s21] sm:$0xff]
  %v3001 = vld [vmem:[%s21 + $0x8] sm:$0xff]
  %v3002 = vld [vmem:[%s21 + $0x10] sm:$0xff]
  %v3003 = vld [vmem:[%s21 + $0x18] sm:$0xff]
  %v3004 = vld [vmem:[%s22] sm:$0x1]
  %v3006 = vlaneseq
  %v3007 = vshrl.u32 %v3006, 7
  %v3008 = vsub.s32 0, %v3007
  %v3009 = vrot.slane %v3004, %v3008
  %v3012 = vsel %vm134, %v2998, 0
  %v3015 = vsel %vm134, %v2999, 0
  %3017 = vmatprep.subr.mxu0 0.0
  %3018 = vmatpush1.msra.mxu0 0.0
  %3019 = vmatprep.subr.mxu0 0.0
  %3020 = vmatpush1.msra.mxu0 0.0
  %3021 = vmatprep.subr.mxu0 0.0
  %3022 = vmatpush1.msra.mxu0 0.0
  %3023 = vmatprep.subr.mxu0 0.0
  %3024 = vmatpush1.msra.mxu0 0.0
  %3025 = vmatprep.subr.mxu0 0.0
  %3026 = vmatpush1.msra.mxu0 0.0
  %3027 = vmatprep.subr.mxu0 0.0
  %3028 = vmatpush1.msra.mxu0 0.0
  %3029 = vmatprep.subr.mxu0 0.0
  %3030 = vmatpush1.msra.mxu0 0.0
  %3031 = vmatprep.subr.mxu0 0.0
  %3032 = vmatpush1.msra.mxu0 0.0
  %3033 = vmatprep.subr.mxu0 0.0
  %3034 = vmatpush1.msra.mxu0 0.0
  %3035 = vmatprep.subr.mxu0 0.0
  %3036 = vmatpush1.msra.mxu0 0.0
  %3037 = vmatprep.subr.mxu0 0.0
  %3038 = vmatpush1.msra.mxu0 0.0
  %3039 = vmatprep.subr.mxu0 0.0
  %3040 = vmatpush1.msra.mxu0 0.0
  %3041 = vmatprep.subr.mxu0 0.0
  %3042 = vmatpush1.msra.mxu0 %v3003
  %3043 = vmatprep.subr.mxu0 0.0
  %3044 = vmatpush1.msra.mxu0 %v3002
  %3045 = vmatprep.subr.mxu0 0.0
  %3046 = vmatpush1.msra.mxu0 %v3001
  %3047 = vmatprep.subr.mxu0 0.0
  %3048 = vmatpush1.msra.mxu0 %v3000
  %3049 = vmatprep.subr.mxu0 0.0
  %3050 = vmatpush2.msra.mxu0 0.0
  %3051 = vmatprep.subr.mxu0 0.0
  %3052 = vmatpush2.msra.mxu0 0.0
  %3053 = vmatprep.subr.mxu0 0.0
  %3054 = vmatpush2.msra.mxu0 0.0
  %3055 = vmatprep.subr.mxu0 0.0
  %3056 = vmatpush2.msra.mxu0 0.0
  %3057 = vmatprep.subr.mxu0 0.0
  %3058 = vmatpush2.msra.mxu0 0.0
  %3059 = vmatprep.subr.mxu0 0.0
  %3060 = vmatpush2.msra.mxu0 0.0
  %3061 = vmatprep.subr.mxu0 0.0
  %3062 = vmatpush2.msra.mxu0 0.0
  %3063 = vmatprep.subr.mxu0 0.0
  %3064 = vmatpush2.msra.mxu0 0.0
  %3065 = vmatprep.subr.mxu0 0.0
  %3066 = vmatpush2.msra.mxu0 0.0
  %3067 = vmatprep.subr.mxu0 0.0
  %3068 = vmatpush2.msra.mxu0 0.0
  %3069 = vmatprep.subr.mxu0 0.0
  %3070 = vmatpush2.msra.mxu0 0.0
  %3071 = vmatprep.subr.mxu0 0.0
  %3072 = vmatpush2.msra.mxu0 0.0
  %3073 = vmatprep.subr.mxu0 0.0
  %3074 = vmatpush2.msra.mxu0 0.0
  %3075 = vmatprep.subr.mxu0 0.0
  %3076 = vmatpush2.msra.mxu0 0.0
  %3077 = vmatprep.subr.mxu0 0.0
  %3078 = vmatpush2.msra.mxu0 0.0
  %3079 = vmatprep.subr.mxu0 0.0
  %3080 = vmatpush2.msra.mxu0 0.0
  %3081 = vmatprep.mubr.f32.mxu0 0.0
  %3082 = vmatmul.mubr.f32.gmra.mxu0 %v3012
  %v3083 = vpop.f32.mrf.mxu0
  %v3084 = vadd.f32 %v3009, %v3083
  %v3085 = vpop.f32.mrf.mxu0
  %3086 = vmatprep.mubr.f32.mxu0 0.0
  %3087 = vmatmul.mubr.f32.gmra.mxu0 %v3015
  %v3088 = vpop.f32.mrf.mxu0
  %v3089 = vadd.f32 %v3009, %v3088
  %v3090 = vpop.f32.mrf.mxu0
  %3091 = vdwg.mxu0
  %3092 = vst [vmem:[%s23] sm:$0xff] %v3084
  %3093 = vst [vmem:[%s23 + $0x8] sm:$0xff] %v3089
  // Predicated region
  $region94: #{sample_net_forward.1} parent=0 // pred_check
    _
  $region95: #{sample_net_forward.1} parent=0 // pred_check_branch
    %3095 = sbr.rel (0) target = $region97
  $region96: #{sample_net_forward.1} parent=0 // pred_region
    _
  $region97: #{sample_net_forward.1} parent=0 // pred_fallthru
    _
  // Predicated region
  $region98: #{sample_net_forward.1} parent=0 // pred_check
    _
  $region99: #{sample_net_forward.1} parent=0 // pred_check_branch
    %3097 = sbr.rel (0) target = $region101
  $region100: #{sample_net_forward.1} parent=0 // pred_region
    _
  $region101: #{sample_net_forward.1} parent=0 // pred_fallthru
    _

</llo_original>
